<compile_context>
chip_gen: v7x
topology: tpu7x:2x2x1
jax: 0.10.0
libtpu: 0.0.40
codegen_flags: <defaults>
</compile_context>

<pallas_src>
import functools

import jax
import jax.numpy as jnp
from jax.experimental import pallas as pl
from jax.experimental.pallas import tpu as pltpu

_VMEM_LIMIT = 64 * 1024 * 1024


# ---------------------------------------------------------------------------
# helpers
# ---------------------------------------------------------------------------
def _round_up(x, m):
    return -(-x // m) * m


def _pad_rows(a, rows):
    pad = rows - a.shape[0]
    if pad == 0:
        return a
    return jnp.pad(a, ((0, pad), (0, 0)))


def _pick_tile(n, max_tile):
    """Row tile (multiple of 8); prefers >=2 grid steps so v7x's 2nd TensorCore has work."""
    n8 = _round_up(max(n, 1), 8)
    tile = min(max_tile, n8)
    if tile == n8 and n8 >= 16:
        tile = _round_up(n8 // 2, 8)
    n_pad = _round_up(n8, tile)
    return tile, n_pad


def _mosaic():
    return pltpu.CompilerParams(dimension_semantics=("parallel",),
                                vmem_limit_bytes=_VMEM_LIMIT)


# ---------------------------------------------------------------------------
# Kernel 1a: fused QKV projection -> packed bf16 [V | Q] + pre-transposed bf16 K^T.
# ---------------------------------------------------------------------------
def _qkv_proj_kernel(x_ref, wqkv_ref, bqkv_ref, vq_ref, kt_ref, *, d):
    x = x_ref[...].astype(jnp.bfloat16)
    qkv = jnp.dot(x, wqkv_ref[...], preferred_element_type=jnp.float32) + bqkv_ref[...]
    # pack [V | Q]: the attention kernel slices V out of the full resident copy, so the
    # big slice stays at lane offset 0; Q (per-tile, small) sits at offset d.
    vq_ref[...] = jnp.concatenate([qkv[:, 2 * d:], qkv[:, :d]], axis=-1).astype(jnp.bfloat16)
    # K written pre-transposed so the attention dot is (tile, d) @ (d, n_pad), no relayout.
    kt_ref[...] = qkv[:, d:2 * d].T.astype(jnp.bfloat16)


# ---------------------------------------------------------------------------
# Kernel 1b: attention (h = 1) with resident K^T / V + fc_o + residual + LayerNorm.
# Grid: (query tiles,) "parallel".  Scale is pre-folded into the Q projection.
# TODO(synk): chunk the KV axis with an online softmax for very large N (scores are
# (tile, n_pad) here, which is fine for graph-sized inputs).
# ---------------------------------------------------------------------------
def _mha_attn_ln_kernel(x_ref, vq_ref, vq_all_ref, kt_ref, wo_ref, bo_ref,
                        g_ref, b_ref, o_ref, *, d, n_valid):
    q = vq_ref[...][:, d:]                          # (tile, d) bf16, scale pre-folded
    kt = kt_ref[...]                                # (d, n_pad) bf16, resident in VMEM
    s = jnp.dot(q, kt, preferred_element_type=jnp.float32)     # (tile, n_pad) f32
    key_idx = jax.lax.broadcasted_iota(jnp.int32, s.shape, 1)
    s = jnp.where(key_idx < n_valid, s, -1e30)      # mask padded keys (finite -> no NaN)
    m = jnp.max(s, axis=-1, keepdims=True)
    p = jnp.exp(s - m)
    l = jnp.sum(p, axis=-1, keepdims=True)
    v = vq_all_ref[...][:, :d]                      # (n_pad, d) bf16, resident in VMEM
    ctx = jnp.dot(p.astype(jnp.bfloat16), v, preferred_element_type=jnp.float32) / l
    out = jnp.dot(ctx.astype(jnp.bfloat16), wo_ref[...],
                  preferred_element_type=jnp.float32) + bo_ref[...]
    y = x_ref[...] + out                            # residual (dropout = eval identity)
    mu = jnp.mean(y, axis=-1, keepdims=True)
    var = jnp.mean((y - mu) ** 2, axis=-1, keepdims=True)
    o_ref[...] = (y - mu) * jax.lax.rsqrt(var + 1e-5) * g_ref[...] + b_ref[...]


def mha_layer(x, p, *, num_heads=1):
    n, d = x.shape
    assert num_heads == 1  # TODO(synk): per-head channel split for num_heads > 1
    n8 = _round_up(n, 8)
    if n8 <= 256:
        tile = n8                  # single block (tiny graph)
    elif n8 <= 2048:
        tile = 256                 # multiple of 128 -> lane-dense transposed-K store, grid >= 2
    else:
        tile = 512
    n_pad = _round_up(n8, tile)
    x_p = _pad_rows(x, n_pad)

    vq, kt = pl.pallas_call(
        functools.partial(_qkv_proj_kernel, d=d),
        grid=(n_pad // tile,),
        in_specs=[pl.BlockSpec((tile, d), lambda i: (i, 0)),
                  pl.BlockSpec(p['wqkv'].shape, lambda i: (0, 0)),
                  pl.BlockSpec(p['bqkv'].shape, lambda i: (0, 0))],
        out_specs=[pl.BlockSpec((tile, 2 * d), lambda i: (i, 0)),
                   pl.BlockSpec((d, tile), lambda i: (0, i))],
        out_shape=(jax.ShapeDtypeStruct((n_pad, 2 * d), jnp.bfloat16),
                   jax.ShapeDtypeStruct((d, n_pad), jnp.bfloat16)),
        compiler_params=_mosaic(),
    )(x_p, p['wqkv'], p['bqkv'])

    out = pl.pallas_call(
        functools.partial(_mha_attn_ln_kernel, d=d, n_valid=n),
        grid=(n_pad // tile,),
        in_specs=[pl.BlockSpec((tile, d), lambda i: (i, 0)),       # x (residual)
                  pl.BlockSpec((tile, 2 * d), lambda i: (i, 0)),   # [V|Q] tile (Q)
                  pl.BlockSpec((n_pad, 2 * d), lambda i: (0, 0)),  # [V|Q] full, resident (V)
                  pl.BlockSpec((d, n_pad), lambda i: (0, 0)),      # K^T full, resident
                  pl.BlockSpec(p['wo'].shape, lambda i: (0, 0)),
                  pl.BlockSpec(p['bo'].shape, lambda i: (0, 0)),
                  pl.BlockSpec(p['ln_g'].shape, lambda i: (0, 0)),
                  pl.BlockSpec(p['ln_b'].shape, lambda i: (0, 0))],
        out_specs=pl.BlockSpec((tile, d), lambda i: (i, 0)),
        out_shape=jax.ShapeDtypeStruct((n_pad, d), jnp.float32),
        compiler_params=_mosaic(),
    )(x_p, vq, vq, kt, p['wo'], p['bo'], p['ln_g'], p['ln_b'])
    return out[:n]


# ---------------------------------------------------------------------------
# Kernel 2: MultiHeadedEdgeAttention ('fat', use_edge=True, num_heads=1), edge-row tiled.
#   x_i / x_j gathered IN-KERNEL (one-hot MXU matmul against the resident bf16 node table),
#   big = [x_i|e|x_j] @ w_all with 128-lane-aligned column groups:
#     cols [0, g1)        nn_edge layer 1 (padded)
#     cols [g1, g1+g2)    [proj_query | proj_edge] (padded)
#     cols [g1+g2, ...)   proj_value
#   gcn_edge = Linear(ReLU(group1)); prob = softmax(Linear(ReLU(group2 @ wn1 + bn1)));
#   x_out = prob * value.  Output packed as [x_out | gcn_edge].
# TODO(synk): generalize to num_heads > 1 (per-head channel split of the softmax).
# ---------------------------------------------------------------------------
def _edge_attn_kernel(src_ref, dst_ref, e_ref, x_ref, w_all_ref, b_all_ref,
                      w2_ref, b2_ref, wn1_ref, bn1_ref, wn2_ref, bn2_ref,
                      out_ref, *, g1, g2, apply_relu_edge):
    tile = src_ref.shape[0]
    n_nodes = x_ref.shape[0]

    # in-kernel row gather via one-hot matmuls (exact: one bf16 row copied per edge)
    node_ids = jax.lax.broadcasted_iota(jnp.int32, (tile, n_nodes), 1)
    x_tbl = x_ref[...]
    oh_i = (src_ref[...] == node_ids).astype(jnp.bfloat16)
    oh_j = (dst_ref[...] == node_ids).astype(jnp.bfloat16)
    x_i = jnp.dot(oh_i, x_tbl, preferred_element_type=jnp.float32).astype(jnp.bfloat16)
    x_j = jnp.dot(oh_j, x_tbl, preferred_element_type=jnp.float32).astype(jnp.bfloat16)

    xcat = jnp.concatenate([x_i, e_ref[...], x_j], axis=-1)          # (tile, 2dn+de) bf16
    big = jnp.dot(xcat, w_all_ref[...], preferred_element_type=jnp.float32) + b_all_ref[...]

    # all slice boundaries are multiples of 128 lanes -> no lane-shift relayouts
    h1 = jnp.maximum(big[:, :g1], 0.0)                               # nn_edge L1 + ReLU
    qe = big[:, g1:g1 + g2]                                          # [proj_query | proj_edge]
    value = big[:, g1 + g2:]                                         # proj_value

    e_new = jnp.dot(h1.astype(jnp.bfloat16), w2_ref[...],
                    preferred_element_type=jnp.float32) + b2_ref[...]
    if apply_relu_edge:
        e_new = jnp.maximum(e_new, 0.0)                              # fused post-layer ReLU

    h2 = jnp.maximum(jnp.dot(qe.astype(jnp.bfloat16), wn1_ref[...],
                             preferred_element_type=jnp.float32) + bn1_ref[...], 0.0)
    logits = jnp.dot(h2.astype(jnp.bfloat16), wn2_ref[...],
                     preferred_element_type=jnp.float32) + bn2_ref[...]
    m = jnp.max(logits, axis=-1, keepdims=True)
    ex = jnp.exp(logits - m)
    prob = ex / jnp.sum(ex, axis=-1, keepdims=True)                  # exact softmax
    x_out = prob * value                                             # einsum('bm,bm->bm')

    # TODO(synk): repack two edge rows per 128-lane output row for an unmasked store.
    out_ref[...] = jnp.concatenate([x_out, e_new], axis=-1)


def edge_atten(x_nodes, e, src2d, dst2d, gp, *, apply_relu_edge, tile_rows=1024):
    n, dn = x_nodes.shape
    E, de = e.shape
    g1 = gp['w2'].shape[0]
    g2 = gp['wn1'].shape[0]
    da = gp['wn2'].shape[1]
    n8 = _round_up(n, 8)
    # bound the two (tile, n8) one-hot gather operands in VMEM
    max_tile = min(tile_rows, max(8, ((1 << 21) // n8) // 8 * 8))
    tile, E_pad = _pick_tile(E, max_tile)

    x_bf = _pad_rows(x_nodes, n8).astype(jnp.bfloat16)      # resident node table
    e_bf = _pad_rows(e, E_pad).astype(jnp.bfloat16)
    src_p = _pad_rows(src2d, E_pad)
    dst_p = _pad_rows(dst2d, E_pad)

    weights = [gp[k] for k in ('w_all', 'b_all', 'w2', 'b2', 'wn1', 'bn1', 'wn2', 'bn2')]
    w_specs = [pl.BlockSpec(w.shape, lambda i: (0, 0)) for w in weights]

    flops = E_pad * (4 * n8 * dn + 2 * (2 * dn + de) * (g1 + g2 + da)
                     + 2 * g1 * de + 2 * g2 * g2 + 2 * g2 * da)
    bytes_acc = (E_pad * (2 * de + 2 * 4 + (da + de) * 4) + n8 * dn * 2
                 + sum(int(w.size) * w.dtype.itemsize for w in weights))

    out = pl.pallas_call(
        functools.partial(_edge_attn_kernel, g1=g1, g2=g2,
                          apply_relu_edge=apply_relu_edge),
        grid=(E_pad // tile,),
        in_specs=[pl.BlockSpec((tile, 1), lambda i: (i, 0)),      # src indices
                  pl.BlockSpec((tile, 1), lambda i: (i, 0)),      # dst indices
                  pl.BlockSpec((tile, de), lambda i: (i, 0)),     # edge features (bf16)
                  pl.BlockSpec((n8, dn), lambda i: (0, 0))]       # node table, resident
                 + w_specs,
        out_specs=pl.BlockSpec((tile, da + de), lambda i: (i, 0)),
        out_shape=jax.ShapeDtypeStruct((E_pad, da + de), jnp.float32),
        compiler_params=_mosaic(),
        cost_estimate=pl.CostEstimate(flops=int(flops), transcendentals=int(E_pad * da),
                                      bytes_accessed=int(bytes_acc)),
    )(src_p, dst_p, e_bf, x_bf, *weights)
    return out[:E, :da], out[:E, da:]


# ---------------------------------------------------------------------------
# Kernel 3: prop MLP  x_out = Linear(ReLU(Linear([x, aggr])))  (+ optional fused ReLU)
# Single K = dn+da matmul on the in-kernel-concatenated operand.
# ---------------------------------------------------------------------------
def _prop_kernel(x_ref, a_ref, w1_ref, b1_ref, w2_ref, b2_ref, o_ref, *, apply_relu):
    xa = jnp.concatenate([x_ref[...], a_ref[...]], axis=-1)          # (tile, dn+da) bf16
    h = jnp.maximum(jnp.dot(xa, w1_ref[...], preferred_element_type=jnp.float32)
                    + b1_ref[...], 0.0)
    out = jnp.dot(h.astype(jnp.bfloat16), w2_ref[...],
                  preferred_element_type=jnp.float32) + b2_ref[...]
    if apply_relu:
        out = jnp.maximum(out, 0.0)                                  # fused post-layer ReLU
    o_ref[...] = out


def prop_layer(x, agg, gp, *, apply_relu, tile_rows=2048):
    N, dn = x.shape
    da = agg.shape[1]
    tile, N_pad = _pick_tile(N, tile_rows)
    x_bf = _pad_rows(x, N_pad).astype(jnp.bfloat16)
    a_bf = _pad_rows(agg, N_pad).astype(jnp.bfloat16)

    ws = [gp[k] for k in ('wp1', 'bp1', 'wp2', 'bp2')]
    flops = N_pad * (2 * (dn + da) * (dn + da) + 2 * (dn + da) * dn)
    bytes_acc = (N_pad * (dn + da) * 2 + N_pad * dn * 4
                 + sum(int(w.size) * w.dtype.itemsize for w in ws))

    out = pl.pallas_call(
        functools.partial(_prop_kernel, apply_relu=apply_relu),
        grid=(N_pad // tile,),
        in_specs=[pl.BlockSpec((tile, dn), lambda i: (i, 0)),
                  pl.BlockSpec((tile, da), lambda i: (i, 0))]
                 + [pl.BlockSpec(w.shape, lambda i: (0, 0)) for w in ws],
        out_specs=pl.BlockSpec((tile, dn), lambda i: (i, 0)),
        out_shape=jax.ShapeDtypeStruct((N_pad, dn), jnp.float32),
        compiler_params=_mosaic(),
        cost_estimate=pl.CostEstimate(flops=int(flops), transcendentals=0,
                                      bytes_accessed=int(bytes_acc)),
    )(x_bf, a_bf, *ws)
    return out[:N]


# ---------------------------------------------------------------------------
# Parameter init (deterministic, synthetic) with packed / padded / bf16 weights.
# ---------------------------------------------------------------------------
def init_params(key, dim_node, dim_edge, dim_atten, depth=1, num_heads=1):
    keys = iter(jax.random.split(key, 256))

    def lin(din, dout):
        kw, kb = jax.random.split(next(keys))
        w = jax.random.normal(kw, (din, dout), jnp.float32) * 0.1
        b = jax.random.normal(kb, (1, dout), jnp.float32) * 0.01
        return w, b

    def mha_params(d):
        d_k = d // num_heads
        scale = 1.0 / (d_k ** 0.5)
        wq, bq = lin(d, d)
        wk, bk = lin(d, d)
        wv, bv = lin(d, d)
        wo, bo = lin(d, d)
        return dict(
            # attention scale folded into the Q projection (weights AND bias)
            wqkv=jnp.concatenate([wq * scale, wk, wv], axis=1).astype(jnp.bfloat16),
            bqkv=jnp.concatenate([bq * scale, bk, bv], axis=1),
            wo=wo.astype(jnp.bfloat16), bo=bo,
            ln_g=jnp.ones((1, d), jnp.float32),
            ln_b=jnp.zeros((1, d), jnp.float32))

    dn, de, da = dim_node, dim_edge, dim_atten
    dh = dn + de
    g1 = _round_up(dh, 128)          # padded nn_edge hidden group
    g2 = _round_up(dn + de, 128)     # padded [proj_query | proj_edge] group
    gcns = []
    for _ in range(depth):
        w1, b1 = lin(2 * dn + de, dh)          # nn_edge layer 1
        w2, b2 = lin(dh, de)                   # nn_edge layer 2
        wv, bv = lin(dn, da)                   # proj_value
        wq, bq = lin(dn, dn)                   # proj_query
        we, be = lin(de, de)                   # proj_edge
        wn1, bn1 = lin(dn + de, dn + de)       # attn MLP layer 1
        wn2, bn2 = lin(dn + de, da)            # attn MLP layer 2
        wp1, bp1 = lin(dn + da, dn + da)       # prop layer 1
        wp2, bp2 = lin(dn + da, dn)            # prop layer 2

        din = 2 * dn + de
        w_all = jnp.zeros((din, g1 + g2 + da), jnp.float32)
        b_all = jnp.zeros((1, g1 + g2 + da), jnp.float32)
        # group 1: nn_edge layer 1 on [x_i | e | x_j]
        w_all = w_all.at[:, :dh].set(w1)
        b_all = b_all.at[:, :dh].set(b1)
        # group 2: [proj_query(x_i) | proj_edge(e)], 128-lane aligned
        w_all = w_all.at[:dn, g1:g1 + dn].set(wq)
        b_all = b_all.at[:, g1:g1 + dn].set(bq)
        w_all = w_all.at[dn:dn + de, g1 + dn:g1 + dn + de].set(we)
        b_all = b_all.at[:, g1 + dn:g1 + dn + de].set(be)
        # group 3: proj_value(x_j)
        w_all = w_all.at[dn + de:, g1 + g2:].set(wv)
        b_all = b_all.at[:, g1 + g2:].set(bv)

        w2p = jnp.zeros((g1, de), jnp.float32).at[:dh].set(w2)
        wn1p = jnp.zeros((g2, g2), jnp.float32).at[:dn + de, :dn + de].set(wn1)
        bn1p = jnp.zeros((1, g2), jnp.float32).at[:, :dn + de].set(bn1)
        wn2p = jnp.zeros((g2, da), jnp.float32).at[:dn + de].set(wn2)

        gcns.append(dict(
            w_all=w_all.astype(jnp.bfloat16), b_all=b_all,
            w2=w2p.astype(jnp.bfloat16), b2=b2,
            wn1=wn1p.astype(jnp.bfloat16), bn1=bn1p,
            wn2=wn2p.astype(jnp.bfloat16), bn2=bn2,
            wp1=wp1.astype(jnp.bfloat16), bp1=bp1,
            wp2=wp2.astype(jnp.bfloat16), bp2=bp2))
    return dict(attn_before=mha_params(dn), attn_after=mha_params(dn), gcns=gcns)


# ---------------------------------------------------------------------------
# Forward glue
# ---------------------------------------------------------------------------
def mmg_student_forward(params, obj_feature, edge_feature, edge_index,
                        depth=1, num_heads=1):
    assert num_heads == 1  # kernels specialised to the module's default head count
    # obj_center is None -> no attention mask / distance bias ('mul' way is a no-op)
    x = mha_layer(obj_feature, params['attn_before'], num_heads=num_heads)
    obj_feature_mimic = x
    x = mha_layer(x, params['attn_after'], num_heads=num_heads)

    src = edge_index[0].astype(jnp.int32)
    dst = edge_index[1].astype(jnp.int32)
    N = x.shape[0]
    # hoisted out of the depth loop: edge_index does not change per layer
    counts = jax.ops.segment_sum(jnp.ones_like(src, dtype=jnp.int32), src, num_segments=N)
    has_edge = (counts > 0)[:, None]
    src2d = src[:, None]
    dst2d = dst[:, None]

    for d in range(depth):
        gp = params['gcns'][d]
        apply_act = (d < depth - 1) or (depth == 1)   # matches PyTorch relu/drop condition
        xx_e, new_edge = edge_atten(x, edge_feature, src2d, dst2d, gp,
                                    apply_relu_edge=apply_act)
        # Aggre_Index aggr='max' onto edge_index[0]; empty segments -> 0.
        # TODO(synk): fuse the scatter-max + empty-segment masking + prop MLP into one
        # Pallas kernel (sorted edges + scalar-prefetch segment offsets) to remove the
        # xx_e / agg HBM round trips.
        agg = jax.ops.segment_max(xx_e, src, num_segments=N)
        agg = jnp.where(has_edge, agg, 0.0)
        x = prop_layer(x, agg, gp, apply_relu=apply_act)
        edge_feature = new_edge
    return x, edge_feature, obj_feature_mimic


if __name__ == "__main__":
    DIM_NODE = DIM_EDGE = DIM_ATTEN = 32
    NUM_HEADS = 1
    DEPTH = 1
    N_NODES, N_EDGES = 8, 16

    root = jax.random.PRNGKey(0)
    kp, ko, ke = jax.random.split(root, 3)
    params = init_params(kp, DIM_NODE, DIM_EDGE, DIM_ATTEN, depth=DEPTH, num_heads=NUM_HEADS)

    obj_feature = jax.random.normal(ko, (N_NODES, DIM_NODE), jnp.float32)
    edge_feature = jax.random.normal(ke, (N_EDGES, DIM_EDGE), jnp.float32)
    src = jnp.arange(N_EDGES, dtype=jnp.int32) % N_NODES          # every node has edges
    dst = (jnp.arange(N_EDGES, dtype=jnp.int32) + 3) % N_NODES
    edge_index = jnp.stack([src, dst], axis=0)

    fwd = jax.jit(functools.partial(mmg_student_forward, params,
                                    depth=DEPTH, num_heads=NUM_HEADS))
    out_obj, out_edge, mimic = fwd(obj_feature, edge_feature, edge_index)
    jax.block_until_ready((out_obj, out_edge, mimic))
    assert out_obj.shape == (N_NODES, DIM_NODE)
    assert out_edge.shape == (N_EDGES, DIM_EDGE)
    assert mimic.shape == (N_NODES, DIM_NODE)
    assert bool(jnp.all(jnp.isfinite(out_obj)))
    assert bool(jnp.all(jnp.isfinite(out_edge)))
    print("KERNEL_OK")
</pallas_src>

<mosaic_0001>
module attributes {stable_mosaic.version = 11 : i64} {
  func.func private @main(%arg0: i32) attributes {dimension_semantics = [#tpu.dimension_semantics<core_parallel>], iteration_bounds = array<i64: 2>, tpu.core_type = #tpu.core_type<sc_scalar_subcore>, window_params = []} {
    return
  }
}

module attributes {stable_mosaic.version = 11 : i64} {
  func.func private @main(%arg0: i32) attributes {dimension_semantics = [#tpu.dimension_semantics<core_parallel>], iteration_bounds = array<i64: 2>, tpu.core_type = #tpu.core_type<sc_scalar_subcore>, window_params = []} {
    return
  }
}

module attributes {stable_mosaic.version = 11 : i64} {
  func.func @_qkv_proj_kernel(%arg0: i32, %arg1: memref<8x32xf32, #tpu.memory_space<vmem>>, %arg2: memref<32x96xbf16, #tpu.memory_space<vmem>>, %arg3: memref<1x96xf32, #tpu.memory_space<vmem>>, %arg4: memref<8x64xbf16, #tpu.memory_space<vmem>>, %arg5: memref<32x8xbf16, #tpu.memory_space<vmem>>) attributes {dimension_semantics = [#tpu.dimension_semantics<parallel>], iteration_bounds = array<i64: 1>, scalar_prefetch = 0 : i64, scratch_operands = 0 : i64, tpu.core_type = #tpu.core_type<tc>, window_params = [{transform_indices = @transform_0, window_bounds = array<i64: 8, 32>}, {pipeline_mode = #tpu.pipeline_mode<synchronous>, transform_indices = @transform_1, window_bounds = array<i64: 32, 96>}, {pipeline_mode = #tpu.pipeline_mode<synchronous>, transform_indices = @transform_2, window_bounds = array<i64: 1, 96>}, {transform_indices = @transform_3, window_bounds = array<i64: 8, 64>}, {transform_indices = @transform_4, window_bounds = array<i64: 32, 8>}]} {
    %c0 = arith.constant 0 : index
    %c0_0 = arith.constant 0 : index
    %0 = vector.load %arg1[%c0, %c0_0] : memref<8x32xf32, #tpu.memory_space<vmem>>, vector<8x32xf32>
    %1 = arith.truncf %0 : vector<8x32xf32> to vector<8x32xbf16>
    %c0_1 = arith.constant 0 : index
    %c0_2 = arith.constant 0 : index
    %2 = vector.load %arg2[%c0_1, %c0_2] : memref<32x96xbf16, #tpu.memory_space<vmem>>, vector<32x96xbf16>
    %cst = arith.constant dense<0.000000e+00> : vector<8x96xf32>
    %3 = tpu.matmul %1, %2, %cst {dimension_numbers = #tpu.dot_dimension_numbers<[1], [0], [0], [1], [0, 0, 1, 1], [], []>} : vector<8x32xbf16>, vector<32x96xbf16>, vector<8x96xf32> -> vector<8x96xf32>
    %c0_3 = arith.constant 0 : index
    %c0_4 = arith.constant 0 : index
    %4 = vector.load %arg3[%c0_3, %c0_4] : memref<1x96xf32, #tpu.memory_space<vmem>>, vector<1x96xf32>
    %5 = vector.broadcast %4 : vector<1x96xf32> to vector<8x96xf32>
    %6 = arith.addf %3, %5 : vector<8x96xf32>
    %7 = vector.extract_strided_slice %6 {offsets = [0, 64], sizes = [8, 32], strides = [1, 1]} : vector<8x96xf32> to vector<8x32xf32>
    %8 = vector.extract_strided_slice %6 {offsets = [0, 0], sizes = [8, 32], strides = [1, 1]} : vector<8x96xf32> to vector<8x32xf32>
    %9 = tpu.concatenate %7, %8 in 1 : vector<8x32xf32>, vector<8x32xf32> -> vector<8x64xf32>
    %10 = arith.truncf %9 : vector<8x64xf32> to vector<8x64xbf16>
    %c0_5 = arith.constant 0 : index
    %c0_6 = arith.constant 0 : index
    %11 = vector.load %arg4[%c0_5, %c0_6] : memref<8x64xbf16, #tpu.memory_space<vmem>>, vector<8x64xbf16>
    tpu.vector_store %arg4[%c0_5, %c0_6], %10 {strides = array<i32>} : memref<8x64xbf16, #tpu.memory_space<vmem>>, vector<8x64xbf16>,
    %12 = vector.extract_strided_slice %6 {offsets = [0, 32], sizes = [8, 32], strides = [1, 1]} : vector<8x96xf32> to vector<8x32xf32>
    %13 = tpu.transpose %12, [1, 0] : vector<8x32xf32> -> vector<32x8xf32>
    %14 = arith.truncf %13 : vector<32x8xf32> to vector<32x8xbf16>
    %c0_7 = arith.constant 0 : index
    %c0_8 = arith.constant 0 : index
    %15 = vector.load %arg5[%c0_7, %c0_8] : memref<32x8xbf16, #tpu.memory_space<vmem>>, vector<32x8xbf16>
    tpu.vector_store %arg5[%c0_7, %c0_8], %14 {strides = array<i32>} : memref<32x8xbf16, #tpu.memory_space<vmem>>, vector<32x8xbf16>,
    return
  }
  func.func @transform_0(%arg0: i32) -> (i32, i32) {
    %c0_i32 = arith.constant 0 : i32
    %c0_i32_0 = arith.constant 0 : i32
    return %arg0, %c0_i32 : i32, i32
  }
  func.func @transform_1(%arg0: i32) -> (i32, i32) {
    %c0_i32 = arith.constant 0 : i32
    %c0_i32_0 = arith.constant 0 : i32
    %c0_i32_1 = arith.constant 0 : i32
    return %c0_i32, %c0_i32_0 : i32, i32
  }
  func.func @transform_2(%arg0: i32) -> (i32, i32) {
    %c0_i32 = arith.constant 0 : i32
    %c0_i32_0 = arith.constant 0 : i32
    %c0_i32_1 = arith.constant 0 : i32
    return %c0_i32, %c0_i32_0 : i32, i32
  }
  func.func @transform_3(%arg0: i32) -> (i32, i32) {
    %c0_i32 = arith.constant 0 : i32
    %c0_i32_0 = arith.constant 0 : i32
    return %arg0, %c0_i32 : i32, i32
  }
  func.func @transform_4(%arg0: i32) -> (i32, i32) {
    %c0_i32 = arith.constant 0 : i32
    %c0_i32_0 = arith.constant 0 : i32
    return %c0_i32, %arg0 : i32, i32
  }
}

module attributes {stable_mosaic.version = 11 : i64} {
  func.func @_mha_attn_ln_kernel(%arg0: i32, %arg1: memref<8x32xf32, #tpu.memory_space<vmem>>, %arg2: memref<8x64xbf16, #tpu.memory_space<vmem>>, %arg3: memref<8x64xbf16, #tpu.memory_space<vmem>>, %arg4: memref<32x8xbf16, #tpu.memory_space<vmem>>, %arg5: memref<32x32xbf16, #tpu.memory_space<vmem>>, %arg6: memref<1x32xf32, #tpu.memory_space<vmem>>, %arg7: memref<1x32xf32, #tpu.memory_space<vmem>>, %arg8: memref<1x32xf32, #tpu.memory_space<vmem>>, %arg9: memref<8x32xf32, #tpu.memory_space<vmem>>) attributes {dimension_semantics = [#tpu.dimension_semantics<parallel>], iteration_bounds = array<i64: 1>, scalar_prefetch = 0 : i64, scratch_operands = 0 : i64, tpu.core_type = #tpu.core_type<tc>, window_params = [{transform_indices = @transform_0, window_bounds = array<i64: 8, 32>}, {transform_indices = @transform_1, window_bounds = array<i64: 8, 64>}, {pipeline_mode = #tpu.pipeline_mode<synchronous>, transform_indices = @transform_2, window_bounds = array<i64: 8, 64>}, {pipeline_mode = #tpu.pipeline_mode<synchronous>, transform_indices = @transform_3, window_bounds = array<i64: 32, 8>}, {pipeline_mode = #tpu.pipeline_mode<synchronous>, transform_indices = @transform_4, window_bounds = array<i64: 32, 32>}, {pipeline_mode = #tpu.pipeline_mode<synchronous>, transform_indices = @transform_5, window_bounds = array<i64: 1, 32>}, {pipeline_mode = #tpu.pipeline_mode<synchronous>, transform_indices = @transform_6, window_bounds = array<i64: 1, 32>}, {pipeline_mode = #tpu.pipeline_mode<synchronous>, transform_indices = @transform_7, window_bounds = array<i64: 1, 32>}, {transform_indices = @transform_8, window_bounds = array<i64: 8, 32>}]} {
    %c0 = arith.constant 0 : index
    %c0_0 = arith.constant 0 : index
    %0 = vector.load %arg2[%c0, %c0_0] : memref<8x64xbf16, #tpu.memory_space<vmem>>, vector<8x64xbf16>
    %1 = vector.extract_strided_slice %0 {offsets = [0, 32], sizes = [8, 32], strides = [1, 1]} : vector<8x64xbf16> to vector<8x32xbf16>
    %c0_1 = arith.constant 0 : index
    %c0_2 = arith.constant 0 : index
    %2 = vector.load %arg4[%c0_1, %c0_2] : memref<32x8xbf16, #tpu.memory_space<vmem>>, vector<32x8xbf16>
    %cst = arith.constant dense<0.000000e+00> : vector<8x8xf32>
    %3 = tpu.matmul %1, %2, %cst {dimension_numbers = #tpu.dot_dimension_numbers<[1], [0], [0], [1], [0, 0, 1, 1], [], []>} : vector<8x32xbf16>, vector<32x8xbf16>, vector<8x8xf32> -> vector<8x8xf32>
    %4 = tpu.iota {dimensions = array<i32: 1>} : vector<8x8xi32>
    %c8_i32 = arith.constant 8 : i32
    %5 = vector.broadcast %c8_i32 : i32 to vector<8x8xi32>
    %6 = arith.cmpi slt, %4, %5 : vector<8x8xi32>
    %cst_3 = arith.constant -1.000000e+30 : f32
    %7 = vector.broadcast %cst_3 : f32 to vector<8x8xf32>
    %8 = arith.select %6, %3, %7 : vector<8x8xi1>, vector<8x8xf32>
    %cst_4 = arith.constant dense<0xFF800000> : vector<8xf32>
    %9 = vector.multi_reduction <maximumf>, %8, %cst_4 [1] : vector<8x8xf32> to vector<8xf32>
    %10 = vector.shape_cast %9 : vector<8xf32> to vector<8x1xf32>
    %11 = vector.broadcast %10 : vector<8x1xf32> to vector<8x8xf32>
    %12 = arith.subf %8, %11 : vector<8x8xf32>
    %13 = math.exp %12 : vector<8x8xf32>
    %cst_5 = arith.constant dense<0.000000e+00> : vector<8xf32>
    %14 = vector.multi_reduction <add>, %13, %cst_5 [1] : vector<8x8xf32> to vector<8xf32>
    %15 = vector.shape_cast %14 : vector<8xf32> to vector<8x1xf32>
    %c0_6 = arith.constant 0 : index
    %c0_7 = arith.constant 0 : index
    %16 = vector.load %arg3[%c0_6, %c0_7] : memref<8x64xbf16, #tpu.memory_space<vmem>>, vector<8x64xbf16>
    %17 = vector.extract_strided_slice %16 {offsets = [0, 0], sizes = [8, 32], strides = [1, 1]} : vector<8x64xbf16> to vector<8x32xbf16>
    %18 = arith.truncf %13 : vector<8x8xf32> to vector<8x8xbf16>
    %cst_8 = arith.constant dense<0.000000e+00> : vector<8x32xf32>
    %19 = tpu.matmul %18, %17, %cst_8 {dimension_numbers = #tpu.dot_dimension_numbers<[1], [0], [0], [1], [0, 0, 1, 1], [], []>} : vector<8x8xbf16>, vector<8x32xbf16>, vector<8x32xf32> -> vector<8x32xf32>
    %20 = vector.broadcast %15 : vector<8x1xf32> to vector<8x32xf32>
    %21 = arith.divf %19, %20 : vector<8x32xf32>
    %22 = arith.truncf %21 : vector<8x32xf32> to vector<8x32xbf16>
    %c0_9 = arith.constant 0 : index
    %c0_10 = arith.constant 0 : index
    %23 = vector.load %arg5[%c0_9, %c0_10] : memref<32x32xbf16, #tpu.memory_space<vmem>>, vector<32x32xbf16>
    %cst_11 = arith.constant dense<0.000000e+00> : vector<8x32xf32>
    %24 = tpu.matmul %22, %23, %cst_11 {dimension_numbers = #tpu.dot_dimension_numbers<[1], [0], [0], [1], [0, 0, 1, 1], [], []>} : vector<8x32xbf16>, vector<32x32xbf16>, vector<8x32xf32> -> vector<8x32xf32>
    %c0_12 = arith.constant 0 : index
    %c0_13 = arith.constant 0 : index
    %25 = vector.load %arg6[%c0_12, %c0_13] : memref<1x32xf32, #tpu.memory_space<vmem>>, vector<1x32xf32>
    %26 = vector.broadcast %25 : vector<1x32xf32> to vector<8x32xf32>
    %27 = arith.addf %24, %26 : vector<8x32xf32>
    %c0_14 = arith.constant 0 : index
    %c0_15 = arith.constant 0 : index
    %28 = vector.load %arg1[%c0_14, %c0_15] : memref<8x32xf32, #tpu.memory_space<vmem>>, vector<8x32xf32>
    %29 = arith.addf %28, %27 : vector<8x32xf32>
    %cst_16 = arith.constant dense<0.000000e+00> : vector<8xf32>
    %30 = vector.multi_reduction <add>, %29, %cst_16 [1] : vector<8x32xf32> to vector<8xf32>
    %31 = vector.shape_cast %30 : vector<8xf32> to vector<8x1xf32>
    %cst_17 = arith.constant 3.200000e+01 : f32
    %32 = vector.broadcast %cst_17 : f32 to vector<8x1xf32>
    %33 = arith.divf %31, %32 : vector<8x1xf32>
    %34 = vector.broadcast %33 : vector<8x1xf32> to vector<8x32xf32>
    %35 = arith.subf %29, %34 : vector<8x32xf32>
    %36 = arith.mulf %35, %35 : vector<8x32xf32>
    %cst_18 = arith.constant dense<0.000000e+00> : vector<8xf32>
    %37 = vector.multi_reduction <add>, %36, %cst_18 [1] : vector<8x32xf32> to vector<8xf32>
    %38 = vector.shape_cast %37 : vector<8xf32> to vector<8x1xf32>
    %cst_19 = arith.constant 3.200000e+01 : f32
    %39 = vector.broadcast %cst_19 : f32 to vector<8x1xf32>
    %40 = arith.divf %38, %39 : vector<8x1xf32>
    %41 = vector.broadcast %33 : vector<8x1xf32> to vector<8x32xf32>
    %42 = arith.subf %29, %41 : vector<8x32xf32>
    %cst_20 = arith.constant 9.99999974E-6 : f32
    %43 = vector.broadcast %cst_20 : f32 to vector<8x1xf32>
    %44 = arith.addf %40, %43 : vector<8x1xf32>
    %45 = math.rsqrt %44 : vector<8x1xf32>
    %46 = vector.broadcast %45 : vector<8x1xf32> to vector<8x32xf32>
    %47 = arith.mulf %42, %46 : vector<8x32xf32>
    %c0_21 = arith.constant 0 : index
    %c0_22 = arith.constant 0 : index
    %48 = vector.load %arg7[%c0_21, %c0_22] : memref<1x32xf32, #tpu.memory_space<vmem>>, vector<1x32xf32>
    %49 = vector.broadcast %48 : vector<1x32xf32> to vector<8x32xf32>
    %50 = arith.mulf %47, %49 : vector<8x32xf32>
    %c0_23 = arith.constant 0 : index
    %c0_24 = arith.constant 0 : index
    %51 = vector.load %arg8[%c0_23, %c0_24] : memref<1x32xf32, #tpu.memory_space<vmem>>, vector<1x32xf32>
    %52 = vector.broadcast %51 : vector<1x32xf32> to vector<8x32xf32>
    %53 = arith.addf %50, %52 : vector<8x32xf32>
    %c0_25 = arith.constant 0 : index
    %c0_26 = arith.constant 0 : index
    %54 = vector.load %arg9[%c0_25, %c0_26] : memref<8x32xf32, #tpu.memory_space<vmem>>, vector<8x32xf32>
    tpu.vector_store %arg9[%c0_25, %c0_26], %53 {strides = array<i32>} : memref<8x32xf32, #tpu.memory_space<vmem>>, vector<8x32xf32>,
    return
  }
  func.func @transform_0(%arg0: i32) -> (i32, i32) {
    %c0_i32 = arith.constant 0 : i32
    %c0_i32_0 = arith.constant 0 : i32
    return %arg0, %c0_i32 : i32, i32
  }
  func.func @transform_1(%arg0: i32) -> (i32, i32) {
    %c0_i32 = arith.constant 0 : i32
    %c0_i32_0 = arith.constant 0 : i32
    return %arg0, %c0_i32 : i32, i32
  }
  func.func @transform_2(%arg0: i32) -> (i32, i32) {
    %c0_i32 = arith.constant 0 : i32
    %c0_i32_0 = arith.constant 0 : i32
    %c0_i32_1 = arith.constant 0 : i32
    return %c0_i32, %c0_i32_0 : i32, i32
  }
  func.func @transform_3(%arg0: i32) -> (i32, i32) {
    %c0_i32 = arith.constant 0 : i32
    %c0_i32_0 = arith.constant 0 : i32
    %c0_i32_1 = arith.constant 0 : i32
    return %c0_i32, %c0_i32_0 : i32, i32
  }
  func.func @transform_4(%arg0: i32) -> (i32, i32) {
    %c0_i32 = arith.constant 0 : i32
    %c0_i32_0 = arith.constant 0 : i32
    %c0_i32_1 = arith.constant 0 : i32
    return %c0_i32, %c0_i32_0 : i32, i32
  }
  func.func @transform_5(%arg0: i32) -> (i32, i32) {
    %c0_i32 = arith.constant 0 : i32
    %c0_i32_0 = arith.constant 0 : i32
    %c0_i32_1 = arith.constant 0 : i32
    return %c0_i32, %c0_i32_0 : i32, i32
  }
  func.func @transform_6(%arg0: i32) -> (i32, i32) {
    %c0_i32 = arith.constant 0 : i32
    %c0_i32_0 = arith.constant 0 : i32
    %c0_i32_1 = arith.constant 0 : i32
    return %c0_i32, %c0_i32_0 : i32, i32
  }
  func.func @transform_7(%arg0: i32) -> (i32, i32) {
    %c0_i32 = arith.constant 0 : i32
    %c0_i32_0 = arith.constant 0 : i32
    %c0_i32_1 = arith.constant 0 : i32
    return %c0_i32, %c0_i32_0 : i32, i32
  }
  func.func @transform_8(%arg0: i32) -> (i32, i32) {
    %c0_i32 = arith.constant 0 : i32
    %c0_i32_0 = arith.constant 0 : i32
    return %arg0, %c0_i32 : i32, i32
  }
}

module attributes {stable_mosaic.version = 11 : i64} {
  func.func @_edge_attn_kernel(%arg0: i32, %arg1: memref<8x1xi32, #tpu.memory_space<vmem>>, %arg2: memref<8x1xi32, #tpu.memory_space<vmem>>, %arg3: memref<8x32xbf16, #tpu.memory_space<vmem>>, %arg4: memref<8x32xbf16, #tpu.memory_space<vmem>>, %arg5: memref<96x288xbf16, #tpu.memory_space<vmem>>, %arg6: memref<1x288xf32, #tpu.memory_space<vmem>>, %arg7: memref<128x32xbf16, #tpu.memory_space<vmem>>, %arg8: memref<1x32xf32, #tpu.memory_space<vmem>>, %arg9: memref<128x128xbf16, #tpu.memory_space<vmem>>, %arg10: memref<1x128xf32, #tpu.memory_space<vmem>>, %arg11: memref<128x32xbf16, #tpu.memory_space<vmem>>, %arg12: memref<1x32xf32, #tpu.memory_space<vmem>>, %arg13: memref<8x64xf32, #tpu.memory_space<vmem>>) attributes {dimension_semantics = [#tpu.dimension_semantics<parallel>], iteration_bounds = array<i64: 2>, scalar_prefetch = 0 : i64, scratch_operands = 0 : i64, tpu.core_type = #tpu.core_type<tc>, window_params = [{transform_indices = @transform_0, window_bounds = array<i64: 8, 1>}, {transform_indices = @transform_1, window_bounds = array<i64: 8, 1>}, {transform_indices = @transform_2, window_bounds = array<i64: 8, 32>}, {pipeline_mode = #tpu.pipeline_mode<synchronous>, transform_indices = @transform_3, window_bounds = array<i64: 8, 32>}, {pipeline_mode = #tpu.pipeline_mode<synchronous>, transform_indices = @transform_4, window_bounds = array<i64: 96, 288>}, {pipeline_mode = #tpu.pipeline_mode<synchronous>, transform_indices = @transform_5, window_bounds = array<i64: 1, 288>}, {pipeline_mode = #tpu.pipeline_mode<synchronous>, transform_indices = @transform_6, window_bounds = array<i64: 128, 32>}, {pipeline_mode = #tpu.pipeline_mode<synchronous>, transform_indices = @transform_7, window_bounds = array<i64: 1, 32>}, {pipeline_mode = #tpu.pipeline_mode<synchronous>, transform_indices = @transform_8, window_bounds = array<i64: 128, 128>}, {pipeline_mode = #tpu.pipeline_mode<synchronous>, transform_indices = @transform_9, window_bounds = array<i64: 1, 128>}, {pipeline_mode = #tpu.pipeline_mode<synchronous>, transform_indices = @transform_10, window_bounds = array<i64: 128, 32>}, {pipeline_mode = #tpu.pipeline_mode<synchronous>, transform_indices = @transform_11, window_bounds = array<i64: 1, 32>}, {transform_indices = @transform_12, window_bounds = array<i64: 8, 64>}]} {
    %0 = tpu.iota {dimensions = array<i32: 1>} : vector<8x8xi32>
    %c0 = arith.constant 0 : index
    %c0_0 = arith.constant 0 : index
    %1 = vector.load %arg4[%c0, %c0_0] : memref<8x32xbf16, #tpu.memory_space<vmem>>, vector<8x32xbf16>
    %c0_1 = arith.constant 0 : index
    %c0_2 = arith.constant 0 : index
    %2 = vector.load %arg1[%c0_1, %c0_2] : memref<8x1xi32, #tpu.memory_space<vmem>>, vector<8x1xi32>
    %3 = vector.broadcast %2 : vector<8x1xi32> to vector<8x8xi32>
    %4 = arith.cmpi eq, %3, %0 : vector<8x8xi32>
    %5 = arith.extui %4 : vector<8x8xi1> to vector<8x8xi32>
    %6 = arith.sitofp %5 : vector<8x8xi32> to vector<8x8xf32>
    %7 = arith.truncf %6 : vector<8x8xf32> to vector<8x8xbf16>
    %c0_3 = arith.constant 0 : index
    %c0_4 = arith.constant 0 : index
    %8 = vector.load %arg2[%c0_3, %c0_4] : memref<8x1xi32, #tpu.memory_space<vmem>>, vector<8x1xi32>
    %9 = vector.broadcast %8 : vector<8x1xi32> to vector<8x8xi32>
    %10 = arith.cmpi eq, %9, %0 : vector<8x8xi32>
    %11 = arith.extui %10 : vector<8x8xi1> to vector<8x8xi32>
    %12 = arith.sitofp %11 : vector<8x8xi32> to vector<8x8xf32>
    %13 = arith.truncf %12 : vector<8x8xf32> to vector<8x8xbf16>
    %cst = arith.constant dense<0.000000e+00> : vector<8x32xf32>
    %14 = tpu.matmul %7, %1, %cst {dimension_numbers = #tpu.dot_dimension_numbers<[1], [0], [0], [1], [0, 0, 1, 1], [], []>} : vector<8x8xbf16>, vector<8x32xbf16>, vector<8x32xf32> -> vector<8x32xf32>
    %15 = arith.truncf %14 : vector<8x32xf32> to vector<8x32xbf16>
    %cst_5 = arith.constant dense<0.000000e+00> : vector<8x32xf32>
    %16 = tpu.matmul %13, %1, %cst_5 {dimension_numbers = #tpu.dot_dimension_numbers<[1], [0], [0], [1], [0, 0, 1, 1], [], []>} : vector<8x8xbf16>, vector<8x32xbf16>, vector<8x32xf32> -> vector<8x32xf32>
    %17 = arith.truncf %16 : vector<8x32xf32> to vector<8x32xbf16>
    %c0_6 = arith.constant 0 : index
    %c0_7 = arith.constant 0 : index
    %18 = vector.load %arg3[%c0_6, %c0_7] : memref<8x32xbf16, #tpu.memory_space<vmem>>, vector<8x32xbf16>
    %19 = tpu.concatenate %15, %18, %17 in 1 : vector<8x32xbf16>, vector<8x32xbf16>, vector<8x32xbf16> -> vector<8x96xbf16>
    %c0_8 = arith.constant 0 : index
    %c0_9 = arith.constant 0 : index
    %20 = vector.load %arg5[%c0_8, %c0_9] : memref<96x288xbf16, #tpu.memory_space<vmem>>, vector<96x288xbf16>
    %cst_10 = arith.constant dense<0.000000e+00> : vector<8x288xf32>
    %21 = tpu.matmul %19, %20, %cst_10 {dimension_numbers = #tpu.dot_dimension_numbers<[1], [0], [0], [1], [0, 0, 1, 1], [], []>} : vector<8x96xbf16>, vector<96x288xbf16>, vector<8x288xf32> -> vector<8x288xf32>
    %c0_11 = arith.constant 0 : index
    %c0_12 = arith.constant 0 : index
    %22 = vector.load %arg6[%c0_11, %c0_12] : memref<1x288xf32, #tpu.memory_space<vmem>>, vector<1x288xf32>
    %23 = vector.broadcast %22 : vector<1x288xf32> to vector<8x288xf32>
    %24 = arith.addf %21, %23 : vector<8x288xf32>
    %25 = vector.extract_strided_slice %24 {offsets = [0, 0], sizes = [8, 128], strides = [1, 1]} : vector<8x288xf32> to vector<8x128xf32>
    %cst_13 = arith.constant 0.000000e+00 : f32
    %26 = vector.broadcast %cst_13 : f32 to vector<8x128xf32>
    %27 = arith.maximumf %25, %26 : vector<8x128xf32>
    %28 = vector.extract_strided_slice %24 {offsets = [0, 128], sizes = [8, 128], strides = [1, 1]} : vector<8x288xf32> to vector<8x128xf32>
    %29 = vector.extract_strided_slice %24 {offsets = [0, 256], sizes = [8, 32], strides = [1, 1]} : vector<8x288xf32> to vector<8x32xf32>
    %30 = arith.truncf %27 : vector<8x128xf32> to vector<8x128xbf16>
    %c0_14 = arith.constant 0 : index
    %c0_15 = arith.constant 0 : index
    %31 = vector.load %arg7[%c0_14, %c0_15] : memref<128x32xbf16, #tpu.memory_space<vmem>>, vector<128x32xbf16>
    %cst_16 = arith.constant dense<0.000000e+00> : vector<8x32xf32>
    %32 = tpu.matmul %30, %31, %cst_16 {dimension_numbers = #tpu.dot_dimension_numbers<[1], [0], [0], [1], [0, 0, 1, 1], [], []>} : vector<8x128xbf16>, vector<128x32xbf16>, vector<8x32xf32> -> vector<8x32xf32>
    %c0_17 = arith.constant 0 : index
    %c0_18 = arith.constant 0 : index
    %33 = vector.load %arg8[%c0_17, %c0_18] : memref<1x32xf32, #tpu.memory_space<vmem>>, vector<1x32xf32>
    %34 = vector.broadcast %33 : vector<1x32xf32> to vector<8x32xf32>
    %35 = arith.addf %32, %34 : vector<8x32xf32>
    %cst_19 = arith.constant 0.000000e+00 : f32
    %36 = vector.broadcast %cst_19 : f32 to vector<8x32xf32>
    %37 = arith.maximumf %35, %36 : vector<8x32xf32>
    %38 = arith.truncf %28 : vector<8x128xf32> to vector<8x128xbf16>
    %c0_20 = arith.constant 0 : index
    %c0_21 = arith.constant 0 : index
    %39 = vector.load %arg9[%c0_20, %c0_21] : memref<128x128xbf16, #tpu.memory_space<vmem>>, vector<128x128xbf16>
    %cst_22 = arith.constant dense<0.000000e+00> : vector<8x128xf32>
    %40 = tpu.matmul %38, %39, %cst_22 {dimension_numbers = #tpu.dot_dimension_numbers<[1], [0], [0], [1], [0, 0, 1, 1], [], []>} : vector<8x128xbf16>, vector<128x128xbf16>, vector<8x128xf32> -> vector<8x128xf32>
    %c0_23 = arith.constant 0 : index
    %c0_24 = arith.constant 0 : index
    %41 = vector.load %arg10[%c0_23, %c0_24] : memref<1x128xf32, #tpu.memory_space<vmem>>, vector<1x128xf32>
    %42 = vector.broadcast %41 : vector<1x128xf32> to vector<8x128xf32>
    %43 = arith.addf %40, %42 : vector<8x128xf32>
    %cst_25 = arith.constant 0.000000e+00 : f32
    %44 = vector.broadcast %cst_25 : f32 to vector<8x128xf32>
    %45 = arith.maximumf %43, %44 : vector<8x128xf32>
    %46 = arith.truncf %45 : vector<8x128xf32> to vector<8x128xbf16>
    %c0_26 = arith.constant 0 : index
    %c0_27 = arith.constant 0 : index
    %47 = vector.load %arg11[%c0_26, %c0_27] : memref<128x32xbf16, #tpu.memory_space<vmem>>, vector<128x32xbf16>
    %cst_28 = arith.constant dense<0.000000e+00> : vector<8x32xf32>
    %48 = tpu.matmul %46, %47, %cst_28 {dimension_numbers = #tpu.dot_dimension_numbers<[1], [0], [0], [1], [0, 0, 1, 1], [], []>} : vector<8x128xbf16>, vector<128x32xbf16>, vector<8x32xf32> -> vector<8x32xf32>
    %c0_29 = arith.constant 0 : index
    %c0_30 = arith.constant 0 : index
    %49 = vector.load %arg12[%c0_29, %c0_30] : memref<1x32xf32, #tpu.memory_space<vmem>>, vector<1x32xf32>
    %50 = vector.broadcast %49 : vector<1x32xf32> to vector<8x32xf32>
    %51 = arith.addf %48, %50 : vector<8x32xf32>
    %cst_31 = arith.constant dense<0xFF800000> : vector<8xf32>
    %52 = vector.multi_reduction <maximumf>, %51, %cst_31 [1] : vector<8x32xf32> to vector<8xf32>
    %53 = vector.shape_cast %52 : vector<8xf32> to vector<8x1xf32>
    %54 = vector.broadcast %53 : vector<8x1xf32> to vector<8x32xf32>
    %55 = arith.subf %51, %54 : vector<8x32xf32>
    %56 = math.exp %55 : vector<8x32xf32>
    %cst_32 = arith.constant dense<0.000000e+00> : vector<8xf32>
    %57 = vector.multi_reduction <add>, %56, %cst_32 [1] : vector<8x32xf32> to vector<8xf32>
    %58 = vector.shape_cast %57 : vector<8xf32> to vector<8x1xf32>
    %59 = vector.broadcast %58 : vector<8x1xf32> to vector<8x32xf32>
    %60 = arith.divf %56, %59 : vector<8x32xf32>
    %61 = arith.mulf %60, %29 : vector<8x32xf32>
    %62 = tpu.concatenate %61, %37 in 1 : vector<8x32xf32>, vector<8x32xf32> -> vector<8x64xf32>
    %c0_33 = arith.constant 0 : index
    %c0_34 = arith.constant 0 : index
    %63 = vector.load %arg13[%c0_33, %c0_34] : memref<8x64xf32, #tpu.memory_space<vmem>>, vector<8x64xf32>
    tpu.vector_store %arg13[%c0_33, %c0_34], %62 {strides = array<i32>} : memref<8x64xf32, #tpu.memory_space<vmem>>, vector<8x64xf32>,
    return
  }
  func.func @transform_0(%arg0: i32) -> (i32, i32) {
    %c0_i32 = arith.constant 0 : i32
    %c0_i32_0 = arith.constant 0 : i32
    return %arg0, %c0_i32 : i32, i32
  }
  func.func @transform_1(%arg0: i32) -> (i32, i32) {
    %c0_i32 = arith.constant 0 : i32
    %c0_i32_0 = arith.constant 0 : i32
    return %arg0, %c0_i32 : i32, i32
  }
  func.func @transform_2(%arg0: i32) -> (i32, i32) {
    %c0_i32 = arith.constant 0 : i32
    %c0_i32_0 = arith.constant 0 : i32
    return %arg0, %c0_i32 : i32, i32
  }
  func.func @transform_3(%arg0: i32) -> (i32, i32) {
    %c0_i32 = arith.constant 0 : i32
    %c0_i32_0 = arith.constant 0 : i32
    %c0_i32_1 = arith.constant 0 : i32
    return %c0_i32, %c0_i32_0 : i32, i32
  }
  func.func @transform_4(%arg0: i32) -> (i32, i32) {
    %c0_i32 = arith.constant 0 : i32
    %c0_i32_0 = arith.constant 0 : i32
    %c0_i32_1 = arith.constant 0 : i32
    return %c0_i32, %c0_i32_0 : i32, i32
  }
  func.func @transform_5(%arg0: i32) -> (i32, i32) {
    %c0_i32 = arith.constant 0 : i32
    %c0_i32_0 = arith.constant 0 : i32
    %c0_i32_1 = arith.constant 0 : i32
    return %c0_i32, %c0_i32_0 : i32, i32
  }
  func.func @transform_6(%arg0: i32) -> (i32, i32) {
    %c0_i32 = arith.constant 0 : i32
    %c0_i32_0 = arith.constant 0 : i32
    %c0_i32_1 = arith.constant 0 : i32
    return %c0_i32, %c0_i32_0 : i32, i32
  }
  func.func @transform_7(%arg0: i32) -> (i32, i32) {
    %c0_i32 = arith.constant 0 : i32
    %c0_i32_0 = arith.constant 0 : i32
    %c0_i32_1 = arith.constant 0 : i32
    return %c0_i32, %c0_i32_0 : i32, i32
  }
  func.func @transform_8(%arg0: i32) -> (i32, i32) {
    %c0_i32 = arith.constant 0 : i32
    %c0_i32_0 = arith.constant 0 : i32
    %c0_i32_1 = arith.constant 0 : i32
    return %c0_i32, %c0_i32_0 : i32, i32
  }
  func.func @transform_9(%arg0: i32) -> (i32, i32) {
    %c0_i32 = arith.constant 0 : i32
    %c0_i32_0 = arith.constant 0 : i32
    %c0_i32_1 = arith.constant 0 : i32
    return %c0_i32, %c0_i32_0 : i32, i32
  }
  func.func @transform_10(%arg0: i32) -> (i32, i32) {
    %c0_i32 = arith.constant 0 : i32
    %c0_i32_0 = arith.constant 0 : i32
    %c0_i32_1 = arith.constant 0 : i32
    return %c0_i32, %c0_i32_0 : i32, i32
  }
  func.func @transform_11(%arg0: i32) -> (i32, i32) {
    %c0_i32 = arith.constant 0 : i32
    %c0_i32_0 = arith.constant 0 : i32
    %c0_i32_1 = arith.constant 0 : i32
    return %c0_i32, %c0_i32_0 : i32, i32
  }
  func.func @transform_12(%arg0: i32) -> (i32, i32) {
    %c0_i32 = arith.constant 0 : i32
    %c0_i32_0 = arith.constant 0 : i32
    return %arg0, %c0_i32 : i32, i32
  }
}

module attributes {stable_mosaic.version = 11 : i64} {
  func.func @_prop_kernel(%arg0: i32, %arg1: memref<8x32xbf16, #tpu.memory_space<vmem>>, %arg2: memref<8x32xbf16, #tpu.memory_space<vmem>>, %arg3: memref<64x64xbf16, #tpu.memory_space<vmem>>, %arg4: memref<1x64xf32, #tpu.memory_space<vmem>>, %arg5: memref<64x32xbf16, #tpu.memory_space<vmem>>, %arg6: memref<1x32xf32, #tpu.memory_space<vmem>>, %arg7: memref<8x32xf32, #tpu.memory_space<vmem>>) attributes {dimension_semantics = [#tpu.dimension_semantics<parallel>], iteration_bounds = array<i64: 1>, scalar_prefetch = 0 : i64, scratch_operands = 0 : i64, tpu.core_type = #tpu.core_type<tc>, window_params = [{transform_indices = @transform_0, window_bounds = array<i64: 8, 32>}, {transform_indices = @transform_1, window_bounds = array<i64: 8, 32>}, {pipeline_mode = #tpu.pipeline_mode<synchronous>, transform_indices = @transform_2, window_bounds = array<i64: 64, 64>}, {pipeline_mode = #tpu.pipeline_mode<synchronous>, transform_indices = @transform_3, window_bounds = array<i64: 1, 64>}, {pipeline_mode = #tpu.pipeline_mode<synchronous>, transform_indices = @transform_4, window_bounds = array<i64: 64, 32>}, {pipeline_mode = #tpu.pipeline_mode<synchronous>, transform_indices = @transform_5, window_bounds = array<i64: 1, 32>}, {transform_indices = @transform_6, window_bounds = array<i64: 8, 32>}]} {
    %c0 = arith.constant 0 : index
    %c0_0 = arith.constant 0 : index
    %0 = vector.load %arg1[%c0, %c0_0] : memref<8x32xbf16, #tpu.memory_space<vmem>>, vector<8x32xbf16>
    %c0_1 = arith.constant 0 : index
    %c0_2 = arith.constant 0 : index
    %1 = vector.load %arg2[%c0_1, %c0_2] : memref<8x32xbf16, #tpu.memory_space<vmem>>, vector<8x32xbf16>
    %2 = tpu.concatenate %0, %1 in 1 : vector<8x32xbf16>, vector<8x32xbf16> -> vector<8x64xbf16>
    %c0_3 = arith.constant 0 : index
    %c0_4 = arith.constant 0 : index
    %3 = vector.load %arg3[%c0_3, %c0_4] : memref<64x64xbf16, #tpu.memory_space<vmem>>, vector<64x64xbf16>
    %cst = arith.constant dense<0.000000e+00> : vector<8x64xf32>
    %4 = tpu.matmul %2, %3, %cst {dimension_numbers = #tpu.dot_dimension_numbers<[1], [0], [0], [1], [0, 0, 1, 1], [], []>} : vector<8x64xbf16>, vector<64x64xbf16>, vector<8x64xf32> -> vector<8x64xf32>
    %c0_5 = arith.constant 0 : index
    %c0_6 = arith.constant 0 : index
    %5 = vector.load %arg4[%c0_5, %c0_6] : memref<1x64xf32, #tpu.memory_space<vmem>>, vector<1x64xf32>
    %6 = vector.broadcast %5 : vector<1x64xf32> to vector<8x64xf32>
    %7 = arith.addf %4, %6 : vector<8x64xf32>
    %cst_7 = arith.constant 0.000000e+00 : f32
    %8 = vector.broadcast %cst_7 : f32 to vector<8x64xf32>
    %9 = arith.maximumf %7, %8 : vector<8x64xf32>
    %10 = arith.truncf %9 : vector<8x64xf32> to vector<8x64xbf16>
    %c0_8 = arith.constant 0 : index
    %c0_9 = arith.constant 0 : index
    %11 = vector.load %arg5[%c0_8, %c0_9] : memref<64x32xbf16, #tpu.memory_space<vmem>>, vector<64x32xbf16>
    %cst_10 = arith.constant dense<0.000000e+00> : vector<8x32xf32>
    %12 = tpu.matmul %10, %11, %cst_10 {dimension_numbers = #tpu.dot_dimension_numbers<[1], [0], [0], [1], [0, 0, 1, 1], [], []>} : vector<8x64xbf16>, vector<64x32xbf16>, vector<8x32xf32> -> vector<8x32xf32>
    %c0_11 = arith.constant 0 : index
    %c0_12 = arith.constant 0 : index
    %13 = vector.load %arg6[%c0_11, %c0_12] : memref<1x32xf32, #tpu.memory_space<vmem>>, vector<1x32xf32>
    %14 = vector.broadcast %13 : vector<1x32xf32> to vector<8x32xf32>
    %15 = arith.addf %12, %14 : vector<8x32xf32>
    %cst_13 = arith.constant 0.000000e+00 : f32
    %16 = vector.broadcast %cst_13 : f32 to vector<8x32xf32>
    %17 = arith.maximumf %15, %16 : vector<8x32xf32>
    %c0_14 = arith.constant 0 : index
    %c0_15 = arith.constant 0 : index
    %18 = vector.load %arg7[%c0_14, %c0_15] : memref<8x32xf32, #tpu.memory_space<vmem>>, vector<8x32xf32>
    tpu.vector_store %arg7[%c0_14, %c0_15], %17 {strides = array<i32>} : memref<8x32xf32, #tpu.memory_space<vmem>>, vector<8x32xf32>,
    return
  }
  func.func @transform_0(%arg0: i32) -> (i32, i32) {
    %c0_i32 = arith.constant 0 : i32
    %c0_i32_0 = arith.constant 0 : i32
    return %arg0, %c0_i32 : i32, i32
  }
  func.func @transform_1(%arg0: i32) -> (i32, i32) {
    %c0_i32 = arith.constant 0 : i32
    %c0_i32_0 = arith.constant 0 : i32
    return %arg0, %c0_i32 : i32, i32
  }
  func.func @transform_2(%arg0: i32) -> (i32, i32) {
    %c0_i32 = arith.constant 0 : i32
    %c0_i32_0 = arith.constant 0 : i32
    %c0_i32_1 = arith.constant 0 : i32
    return %c0_i32, %c0_i32_0 : i32, i32
  }
  func.func @transform_3(%arg0: i32) -> (i32, i32) {
    %c0_i32 = arith.constant 0 : i32
    %c0_i32_0 = arith.constant 0 : i32
    %c0_i32_1 = arith.constant 0 : i32
    return %c0_i32, %c0_i32_0 : i32, i32
  }
  func.func @transform_4(%arg0: i32) -> (i32, i32) {
    %c0_i32 = arith.constant 0 : i32
    %c0_i32_0 = arith.constant 0 : i32
    %c0_i32_1 = arith.constant 0 : i32
    return %c0_i32, %c0_i32_0 : i32, i32
  }
  func.func @transform_5(%arg0: i32) -> (i32, i32) {
    %c0_i32 = arith.constant 0 : i32
    %c0_i32_0 = arith.constant 0 : i32
    %c0_i32_1 = arith.constant 0 : i32
    return %c0_i32, %c0_i32_0 : i32, i32
  }
  func.func @transform_6(%arg0: i32) -> (i32, i32) {
    %c0_i32 = arith.constant 0 : i32
    %c0_i32_0 = arith.constant 0 : i32
    return %arg0, %c0_i32 : i32, i32
  }
}

</mosaic_0001>

<llo_original>
// kernel: mmg_student_forward.6
$region0: #{mmg_student_forward.6}
  #allocation0 [shape = 'u32[]', space=smem, size = 0x4, offset = 0x4, fixed_abs, tag = 'smem constant byte address 0x4 - core index']
  #allocation1 [shape = 'u32[144,128]{1,0:T(1,128)}', space=vmem, size = 0x12000, scoped, tag = 'internal scratch']
  %s0 = inlined_call_operand.hbm [shape: f32[8,32], index: 0, kind: input, shape index: {}]
  %s1 = inlined_call_operand.hbm [shape: bf16[32,96], index: 1, kind: input, shape index: {}]
  %s2 = inlined_call_operand.hbm [shape: f32[1,96], index: 2, kind: input, shape index: {}]
  %s3 = inlined_call_operand.hbm [shape: bf16[8,64], index: 3, kind: output, shape index: {0}]
  %s4 = inlined_call_operand.hbm [shape: bf16[32,8], index: 4, kind: output, shape index: {1}]
  %5 = xla_tuple %s3, %s4
  %s6 = sld [smem:[#allocation0]]
  $region42: #{mmg_student_forward.6} parent=0
    _
  %s8 = ssub.s32 1, %s6
  %s9 = scalar_select 0, %s8, %s6
  $region1: #{mmg_student_forward.6} parent=0
    #allocation2 [shape = 'u8[4096]{0}', space=vmem, size = 0x1000, scoped, tag = 'input window, operand 0, single buffered']
    #allocation3 [shape = 's32[1]{0}', space=sflag, size = 0x4, scoped, tag = 'scoped memory for mmg_student_forward.6']
    #allocation4 [shape = 's32[1]{0}', space=sflag, size = 0x4, scoped, tag = 'scoped memory for mmg_student_forward.6']
    #allocation5 [shape = 'u8[8192]{0}', space=vmem, size = 0x2000, scoped, tag = 'input window, operand 1, single buffered']
    #allocation6 [shape = 's32[1]{0}', space=sflag, size = 0x4, scoped, tag = 'scoped memory for mmg_student_forward.6']
    #allocation7 [shape = 'u8[512]{0}', space=vmem, size = 0x400, scoped, tag = 'input window, operand 2, single buffered']
    #allocation8 [shape = 'u8[2048]{0}', space=vmem, size = 0x800, scoped, tag = 'output window, operand 0, single buffered']
    #allocation9 [shape = 'u8[8192]{0}', space=vmem, size = 0x2000, scoped, tag = 'output window, operand 1, single buffered']
    #allocation10 [shape = 's32[1]{0}', space=sflag, size = 0x4, scoped, tag = 'scoped memory for mmg_student_forward.6']
    %10 = vsyncpa [#allocation3], 0
    %11 = vsyncpa [#allocation6], 0
    %12 = vsyncpa [#allocation4], 0
    %13 = vsyncpa [#allocation10], 0
    // Predicated region
    $region2: #{mmg_student_forward.6} parent=1 // pred_check
      _
    $region3: #{mmg_student_forward.6} parent=1 // pred_check_branch
      %15 = sbr.rel (0) target = $region5
    $region4: #{mmg_student_forward.6} parent=1 // pred_region
      %s17 = ssub.s32 128, 128
      %18 = vsyncadd [#allocation3], %s17
      %s20 = sshll.u32 [#allocation2], 4
      %s21 = int_to_ptr.vmem [resolvable:$true] %s20
      %23 = dma.hbm_to_vmem [thread:$0]  %s0, 128, %s21, [#allocation3]
    $region5: #{mmg_student_forward.6} parent=1 // pred_fallthru
      _
    // Predicated region
    $region6: #{mmg_student_forward.6} parent=1 // pred_check
      _
    $region7: #{mmg_student_forward.6} parent=1 // pred_check_branch
      %25 = sbr.rel (0) target = $region9
    $region8: #{mmg_student_forward.6} parent=1 // pred_region
      %s27 = ssub.s32 256, 256
      %28 = vsyncadd [#allocation6], %s27
      %s29 = sshll.u32 [#allocation5], 4
      %s30 = int_to_ptr.vmem [resolvable:$true] %s29
      %35 = dma.hbm_to_vmem [thread:$0]  %s1, 256, %s30, [#allocation6], 64, 64, 4
    $region9: #{mmg_student_forward.6} parent=1 // pred_fallthru
      _
    // Predicated region
    $region10: #{mmg_student_forward.6} parent=1 // pred_check
      _
    $region11: #{mmg_student_forward.6} parent=1 // pred_check_branch
      %37 = sbr.rel (0) target = $region13
    $region12: #{mmg_student_forward.6} parent=1 // pred_region
      %s39 = ssub.s32 16, 16
      %40 = vsyncadd [#allocation6], %s39
      %s42 = sshll.u32 [#allocation7], 4
      %s43 = int_to_ptr.vmem [resolvable:$true] %s42
      %45 = dma.hbm_to_vmem [thread:$0]  %s2, 16, %s43, [#allocation6]
    $region13: #{mmg_student_forward.6} parent=1 // pred_fallthru
      _
    // Predicated region
    $region14: #{mmg_student_forward.6} parent=1 // pred_check
      _
    $region15: #{mmg_student_forward.6} parent=1 // pred_check_branch
      %47 = sbr.rel (0) target = $region17
    $region16: #{mmg_student_forward.6} parent=1 // pred_region
      %48 = dma.done [#allocation3], 128
    $region17: #{mmg_student_forward.6} parent=1 // pred_fallthru
      _
    // Predicated region
    $region18: #{mmg_student_forward.6} parent=1 // pred_check
      _
    $region19: #{mmg_student_forward.6} parent=1 // pred_check_branch
      %50 = sbr.rel (0) target = $region21
    $region20: #{mmg_student_forward.6} parent=1 // pred_region
      %51 = dma.done [#allocation6], 256
    $region21: #{mmg_student_forward.6} parent=1 // pred_fallthru
      _
    // Predicated region
    $region22: #{mmg_student_forward.6} parent=1 // pred_check
      _
    $region23: #{mmg_student_forward.6} parent=1 // pred_check_branch
      %53 = sbr.rel (0) target = $region25
    $region24: #{mmg_student_forward.6} parent=1 // pred_region
      %54 = dma.done [#allocation6], 16
    $region25: #{mmg_student_forward.6} parent=1 // pred_fallthru
      _
    %v56 = vld [vmem:[#allocation2] sm:$0xff]
    %v57 = vpack.c.bf16 %v56, %v56
    %v58 = vld [vmem:[#allocation5] sm:$0xf]
    %v59 = vld [vmem:[#allocation5 + $0x4] sm:$0xf]
    %v60 = vld [vmem:[#allocation5 + $0x8] sm:$0xf]
    %v61 = vld [vmem:[#allocation5 + $0xc] sm:$0xf]
    %v62 = vld [vmem:[#allocation7] sm:$0x1]
    %v64 = vlaneseq
    %v65 = vshrl.u32 %v64, 7
    %v66 = vsub.s32 0, %v65
    %v67 = vrot.slane %v62, %v66
    %v73 = vunpack.c.l.b16 %v58
    %v74 = vunpack.c.l.b16 %v59
    %v75 = vunpack.c.l.b16 %v60
    %v76 = vunpack.c.l.b16 %v61
    %v77 = vpack.c.b16 %v74, %v73
    %v78 = vpack.c.b16 %v76, %v75
    %vm81 = vcmask 261120
    %v83 = vsel %vm81, %v57, 0
    %85 = vmatprep.subr.bf16.mxu0 0
    %86 = vmatpush1.bf16.msra.mxu0 %v77
    %87 = vmatprep.subr.bf16.mxu0 0
    %88 = vmatpush1.bf16.msra.mxu0 %v78
    %89 = vmatprep.subr.bf16.mxu0 0
    %90 = vmatpush1.bf16.msra.mxu0 0
    %91 = vmatprep.subr.bf16.mxu0 0
    %92 = vmatpush1.bf16.msra.mxu0 0
    %93 = vmatprep.subr.bf16.mxu0 0
    %94 = vmatpush1.bf16.msra.mxu0 0
    %95 = vmatprep.subr.bf16.mxu0 0
    %96 = vmatpush1.bf16.msra.mxu0 0
    %97 = vmatprep.subr.bf16.mxu0 0
    %98 = vmatpush1.bf16.msra.mxu0 0
    %99 = vmatprep.subr.bf16.mxu0 0
    %100 = vmatpush1.bf16.msra.mxu0 0
    %101 = vmatprep.subr.bf16.mxu0 0
    %102 = vmatpush1.bf16.msra.mxu0 0
    %103 = vmatprep.subr.bf16.mxu0 0
    %104 = vmatpush1.bf16.msra.mxu0 0
    %105 = vmatprep.subr.bf16.mxu0 0
    %106 = vmatpush1.bf16.msra.mxu0 0
    %107 = vmatprep.subr.bf16.mxu0 0
    %108 = vmatpush1.bf16.msra.mxu0 0
    %109 = vmatprep.subr.bf16.mxu0 0
    %110 = vmatpush1.bf16.msra.mxu0 0
    %111 = vmatprep.subr.bf16.mxu0 0
    %112 = vmatpush1.bf16.msra.mxu0 0
    %113 = vmatprep.subr.bf16.mxu0 0
    %114 = vmatpush1.bf16.msra.mxu0 0
    %115 = vmatprep.subr.bf16.mxu0 0
    %116 = vmatpush1.bf16.msra.mxu0 0
    %117 = vmatprep.mubr.bf16.mxu0 0
    %118 = vmatmul.mubr.bf16.gmra.mrb[0].mxu0 %v83
    %v119 = vpop.f32.mrb[0].mxu0
    %v120 = vadd.f32 %v67, %v119
    %v121 = vpop.f32.mrb[0].mxu0
    %v122 = vpop.f32.mrb[0].mxu0
    %v123 = vpop.f32.mrb[0].mxu0
    %124 = vdwg.mxu0
    %126 = vrot.lane.b32.xlu0 %v120, 64
    %v127 = vpop.permute.xlu0 %126
    %129 = vrot.lane.b32.xlu0 %v120, 32
    %v130 = vpop.permute.xlu0 %129
    %v132 = vsel %vm81, %v127, %v130
    %v133 = vpack.c.bf16 %v132, %v132
    %vm134 = vcmask 519168
    %135 = vst.msk [vmem:[#allocation8] sm:$0xf] %vm134, %v133
    %136 = vrot.lane.b32.xlu0 %v120, 96
    %v137 = vpop.permute.xlu0 %136
    %139 = vxpose.xlu0.b32.start [1/16] %v137, 128
    %140 = vxpose.xlu0.b32.cont [2/16] 0.0, 128
    %141 = vxpose.xlu0.b32.cont [3/16] 0.0, 128
    %142 = vxpose.xlu0.b32.cont [4/16] 0.0, 128
    %143 = vxpose.xlu0.b32.cont [5/16] 0.0, 128
    %144 = vxpose.xlu0.b32.cont [6/16] 0.0, 128
    %145 = vxpose.xlu0.b32.cont [7/16] 0.0, 128
    %146 = vxpose.xlu0.b32.cont [8/16] 0.0, 128
    %147 = vxpose.xlu0.b32.cont [9/16] 0.0, 128
    %148 = vxpose.xlu0.b32.cont [10/16] 0.0, 128
    %149 = vxpose.xlu0.b32.cont [11/16] 0.0, 128
    %150 = vxpose.xlu0.b32.cont [12/16] 0.0, 128
    %151 = vxpose.xlu0.b32.cont [13/16] 0.0, 128
    %152 = vxpose.xlu0.b32.cont [14/16] 0.0, 128
    %153 = vxpose.xlu0.b32.cont [15/16] 0.0, 128
    %154 = vxpose.xlu0.b32.end [16/16] 0.0, 128
    %v155 = vpop.trf.xlu0
    %v156 = vpop.trf.xlu0
    %v157 = vpop.trf.xlu0
    %v158 = vpop.trf.xlu0
    %v159 = vpop.trf.xlu0
    %v160 = vpop.trf.xlu0
    %v161 = vpop.trf.xlu0
    %v162 = vpop.trf.xlu0
    %v163 = vpop.trf.xlu0
    %v164 = vpop.trf.xlu0
    %v165 = vpop.trf.xlu0
    %v166 = vpop.trf.xlu0
    %v167 = vpop.trf.xlu0
    %v168 = vpop.trf.xlu0
    %v169 = vpop.trf.xlu0
    %v170 = vpop.trf.xlu0
    %v171 = vpack.c.bf16 %v156, %v155
    %v172 = vpack.c.bf16 %v158, %v157
    %v175 = vunpack.c.l.b16 %v171
    %v176 = vunpack.c.h.b16 %v171
    %v177 = vunpack.c.l.b16 %v172
    %v178 = vunpack.c.h.b16 %v172
    %v179 = vpack.c.b16 %v175, %v175
    %v180 = vpack.c.b16 %v176, %v176
    %v181 = vpack.c.b16 %v177, %v177
    %v182 = vpack.c.b16 %v178, %v178
    %vm187 = vcmask 60416
    %188 = vst.msk [vmem:[#allocation9] sm:$0xf] %vm187, %v179
    %189 = vst.msk [vmem:[#allocation9 + $0x4] sm:$0xf] %vm187, %v180
    %190 = vst.msk [vmem:[#allocation9 + $0x8] sm:$0xf] %vm187, %v181
    %191 = vst.msk [vmem:[#allocation9 + $0xc] sm:$0xf] %vm187, %v182
    // Predicated region
    $region26: #{mmg_student_forward.6} parent=1 // pred_check
      _
    $region27: #{mmg_student_forward.6} parent=1 // pred_check_branch
      %193 = sbr.rel (0) target = $region29
    $region28: #{mmg_student_forward.6} parent=1 // pred_region
      %s195 = ssub.s32 64, 64
      %196 = vsyncadd [#allocation4], %s195
      %s198 = sshll.u32 [#allocation8], 4
      %s199 = int_to_ptr.vmem [resolvable:$true] %s198
      %201 = dma.vmem_to_hbm [thread:$0]  %s199, 64, %s3, [#allocation4]
    $region29: #{mmg_student_forward.6} parent=1 // pred_fallthru
      _
    // Predicated region
    $region30: #{mmg_student_forward.6} parent=1 // pred_check
      _
    $region31: #{mmg_student_forward.6} parent=1 // pred_check_branch
      %203 = sbr.rel (0) target = $region33
    $region32: #{mmg_student_forward.6} parent=1 // pred_region
      %s205 = ssub.s32 256, 256
      %206 = vsyncadd [#allocation10], %s205
      %s207 = sshll.u32 [#allocation9], 4
      %s208 = int_to_ptr.vmem [resolvable:$true] %s207
      %213 = dma.vmem_to_hbm [thread:$0]  %s208, 256, %s4, [#allocation10], 64, 64, 4
    $region33: #{mmg_student_forward.6} parent=1 // pred_fallthru
      _
    // Predicated region
    $region34: #{mmg_student_forward.6} parent=1 // pred_check
      _
    $region35: #{mmg_student_forward.6} parent=1 // pred_check_branch
      %215 = sbr.rel (0) target = $region37
    $region36: #{mmg_student_forward.6} parent=1 // pred_region
      %216 = dma.done [#allocation4], 64
    $region37: #{mmg_student_forward.6} parent=1 // pred_fallthru
      _
    // Predicated region
    $region38: #{mmg_student_forward.6} parent=1 // pred_check
      _
    $region39: #{mmg_student_forward.6} parent=1 // pred_check_branch
      %218 = sbr.rel (0) target = $region41
    $region40: #{mmg_student_forward.6} parent=1 // pred_region
      %219 = dma.done [#allocation10], 256
    $region41: #{mmg_student_forward.6} parent=1 // pred_fallthru
      _
    %220 = vsyncpa [#allocation3], 1
    %221 = vsyncpa [#allocation6], 1
    %222 = vsyncpa [#allocation4], 1
    %223 = vsyncpa [#allocation10], 1

// kernel: mmg_student_forward.7
$region0: #{mmg_student_forward.7}
  #allocation0 [shape = 'u32[]', space=smem, size = 0x4, offset = 0x4, fixed_abs, tag = 'smem constant byte address 0x4 - core index']
  #allocation1 [shape = 'u32[144,128]{1,0:T(1,128)}', space=vmem, size = 0x12000, scoped, tag = 'internal scratch']
  %s0 = inlined_call_operand.hbm [shape: f32[8,32], index: 0, kind: input, shape index: {}]
  %s1 = inlined_call_operand.hbm [shape: bf16[8,64], index: 1, kind: input, shape index: {}, may-alias: {1,2}]
  %s2 = inlined_call_operand.hbm [shape: bf16[8,64], index: 2, kind: input, shape index: {}, may-alias: {1,2}]
  %s3 = inlined_call_operand.hbm [shape: bf16[32,8], index: 3, kind: input, shape index: {}]
  %s4 = inlined_call_operand.hbm [shape: bf16[32,32], index: 4, kind: input, shape index: {}]
  %s5 = inlined_call_operand.hbm [shape: f32[1,32], index: 5, kind: input, shape index: {}]
  %s6 = inlined_call_operand.hbm [shape: f32[1,32], index: 6, kind: input, shape index: {}]
  %s7 = inlined_call_operand.hbm [shape: f32[1,32], index: 7, kind: input, shape index: {}]
  %s8 = inlined_call_operand.hbm [shape: f32[8,32], index: 8, kind: output, shape index: {}]
  %s9 = sld [smem:[#allocation0]]
  $region74: #{mmg_student_forward.7} parent=0
    _
  %s11 = ssub.s32 1, %s9
  %s12 = scalar_select 0, %s11, %s9
  $region1: #{mmg_student_forward.7} parent=0
    #allocation2 [shape = 'u8[4096]{0}', space=vmem, size = 0x1000, scoped, tag = 'input window, operand 0, single buffered']
    #allocation3 [shape = 's32[1]{0}', space=sflag, size = 0x4, scoped, tag = 'scoped memory for mmg_student_forward.7']
    #allocation4 [shape = 's32[1]{0}', space=sflag, size = 0x4, scoped, tag = 'scoped memory for mmg_student_forward.7']
    #allocation5 [shape = 'u8[2048]{0}', space=vmem, size = 0x800, scoped, tag = 'input window, operand 1, single buffered']
    #allocation6 [shape = 's32[1]{0}', space=sflag, size = 0x4, scoped, tag = 'scoped memory for mmg_student_forward.7']
    #allocation7 [shape = 'u8[2048]{0}', space=vmem, size = 0x800, scoped, tag = 'input window, operand 2, single buffered']
    #allocation8 [shape = 'u8[8192]{0}', space=vmem, size = 0x2000, scoped, tag = 'input window, operand 3, single buffered']
    #allocation9 [shape = 's32[1]{0}', space=sflag, size = 0x4, scoped, tag = 'scoped memory for mmg_student_forward.7']
    #allocation10 [shape = 'u8[8192]{0}', space=vmem, size = 0x2000, scoped, tag = 'input window, operand 4, single buffered']
    #allocation11 [shape = 'u8[512]{0}', space=vmem, size = 0x400, scoped, tag = 'input window, operand 5, single buffered']
    #allocation12 [shape = 's32[1]{0}', space=sflag, size = 0x4, scoped, tag = 'scoped memory for mmg_student_forward.7']
    #allocation13 [shape = 'u8[512]{0}', space=vmem, size = 0x400, scoped, tag = 'input window, operand 6, single buffered']
    #allocation14 [shape = 'u8[512]{0}', space=vmem, size = 0x400, scoped, tag = 'input window, operand 7, single buffered']
    #allocation15 [shape = 's32[1]{0}', space=sflag, size = 0x4, scoped, tag = 'scoped memory for mmg_student_forward.7']
    #allocation16 [shape = 'u8[4096]{0}', space=vmem, size = 0x1000, scoped, tag = 'output window, operand 0, single buffered']
    %13 = vsyncpa [#allocation3], 0
    %14 = vsyncpa [#allocation6], 0
    %15 = vsyncpa [#allocation9], 0
    %16 = vsyncpa [#allocation12], 0
    %17 = vsyncpa [#allocation15], 0
    %18 = vsyncpa [#allocation4], 0
    // Predicated region
    $region2: #{mmg_student_forward.7} parent=1 // pred_check
      _
    $region3: #{mmg_student_forward.7} parent=1 // pred_check_branch
      %20 = sbr.rel (0) target = $region5
    $region4: #{mmg_student_forward.7} parent=1 // pred_region
      %s22 = ssub.s32 128, 128
      %23 = vsyncadd [#allocation3], %s22
      %s25 = sshll.u32 [#allocation2], 4
      %s26 = int_to_ptr.vmem [resolvable:$true] %s25
      %28 = dma.hbm_to_vmem [thread:$0]  %s0, 128, %s26, [#allocation3]
    $region5: #{mmg_student_forward.7} parent=1 // pred_fallthru
      _
    // Predicated region
    $region6: #{mmg_student_forward.7} parent=1 // pred_check
      _
    $region7: #{mmg_student_forward.7} parent=1 // pred_check_branch
      %30 = sbr.rel (0) target = $region9
    $region8: #{mmg_student_forward.7} parent=1 // pred_region
      %s32 = ssub.s32 64, 64
      %33 = vsyncadd [#allocation6], %s32
      %s35 = sshll.u32 [#allocation5], 4
      %s36 = int_to_ptr.vmem [resolvable:$true] %s35
      %38 = dma.hbm_to_vmem [thread:$0]  %s1, 64, %s36, [#allocation6]
    $region9: #{mmg_student_forward.7} parent=1 // pred_fallthru
      _
    // Predicated region
    $region10: #{mmg_student_forward.7} parent=1 // pred_check
      _
    $region11: #{mmg_student_forward.7} parent=1 // pred_check_branch
      %40 = sbr.rel (0) target = $region13
    $region12: #{mmg_student_forward.7} parent=1 // pred_region
      %s42 = ssub.s32 64, 64
      %43 = vsyncadd [#allocation6], %s42
      %s45 = sshll.u32 [#allocation7], 4
      %s46 = int_to_ptr.vmem [resolvable:$true] %s45
      %48 = dma.hbm_to_vmem [thread:$0]  %s2, 64, %s46, [#allocation6]
    $region13: #{mmg_student_forward.7} parent=1 // pred_fallthru
      _
    // Predicated region
    $region14: #{mmg_student_forward.7} parent=1 // pred_check
      _
    $region15: #{mmg_student_forward.7} parent=1 // pred_check_branch
      %50 = sbr.rel (0) target = $region17
    $region16: #{mmg_student_forward.7} parent=1 // pred_region
      %s52 = ssub.s32 256, 256
      %53 = vsyncadd [#allocation9], %s52
      %s54 = sshll.u32 [#allocation8], 4
      %s55 = int_to_ptr.vmem [resolvable:$true] %s54
      %60 = dma.hbm_to_vmem [thread:$0]  %s3, 256, %s55, [#allocation9], 64, 64, 4
    $region17: #{mmg_student_forward.7} parent=1 // pred_fallthru
      _
    // Predicated region
    $region18: #{mmg_student_forward.7} parent=1 // pred_check
      _
    $region19: #{mmg_student_forward.7} parent=1 // pred_check_branch
      %62 = sbr.rel (0) target = $region21
    $region20: #{mmg_student_forward.7} parent=1 // pred_region
      %s64 = ssub.s32 256, 256
      %65 = vsyncadd [#allocation9], %s64
      %s66 = sshll.u32 [#allocation10], 4
      %s67 = int_to_ptr.vmem [resolvable:$true] %s66
      %72 = dma.hbm_to_vmem [thread:$0]  %s4, 256, %s67, [#allocation9], 64, 64, 4
    $region21: #{mmg_student_forward.7} parent=1 // pred_fallthru
      _
    // Predicated region
    $region22: #{mmg_student_forward.7} parent=1 // pred_check
      _
    $region23: #{mmg_student_forward.7} parent=1 // pred_check_branch
      %74 = sbr.rel (0) target = $region25
    $region24: #{mmg_student_forward.7} parent=1 // pred_region
      %s76 = ssub.s32 16, 16
      %77 = vsyncadd [#allocation12], %s76
      %s79 = sshll.u32 [#allocation11], 4
      %s80 = int_to_ptr.vmem [resolvable:$true] %s79
      %82 = dma.hbm_to_vmem [thread:$0]  %s5, 16, %s80, [#allocation12]
    $region25: #{mmg_student_forward.7} parent=1 // pred_fallthru
      _
    // Predicated region
    $region26: #{mmg_student_forward.7} parent=1 // pred_check
      _
    $region27: #{mmg_student_forward.7} parent=1 // pred_check_branch
      %84 = sbr.rel (0) target = $region29
    $region28: #{mmg_student_forward.7} parent=1 // pred_region
      %s86 = ssub.s32 16, 16
      %87 = vsyncadd [#allocation12], %s86
      %s89 = sshll.u32 [#allocation13], 4
      %s90 = int_to_ptr.vmem [resolvable:$true] %s89
      %92 = dma.hbm_to_vmem [thread:$0]  %s6, 16, %s90, [#allocation12]
    $region29: #{mmg_student_forward.7} parent=1 // pred_fallthru
      _
    // Predicated region
    $region30: #{mmg_student_forward.7} parent=1 // pred_check
      _
    $region31: #{mmg_student_forward.7} parent=1 // pred_check_branch
      %94 = sbr.rel (0) target = $region33
    $region32: #{mmg_student_forward.7} parent=1 // pred_region
      %s96 = ssub.s32 16, 16
      %97 = vsyncadd [#allocation15], %s96
      %s99 = sshll.u32 [#allocation14], 4
      %s100 = int_to_ptr.vmem [resolvable:$true] %s99
      %102 = dma.hbm_to_vmem [thread:$0]  %s7, 16, %s100, [#allocation15]
    $region33: #{mmg_student_forward.7} parent=1 // pred_fallthru
      _
    // Predicated region
    $region34: #{mmg_student_forward.7} parent=1 // pred_check
      _
    $region35: #{mmg_student_forward.7} parent=1 // pred_check_branch
      %104 = sbr.rel (0) target = $region37
    $region36: #{mmg_student_forward.7} parent=1 // pred_region
      %105 = dma.done [#allocation3], 128
    $region37: #{mmg_student_forward.7} parent=1 // pred_fallthru
      _
    // Predicated region
    $region38: #{mmg_student_forward.7} parent=1 // pred_check
      _
    $region39: #{mmg_student_forward.7} parent=1 // pred_check_branch
      %107 = sbr.rel (0) target = $region41
    $region40: #{mmg_student_forward.7} parent=1 // pred_region
      %108 = dma.done [#allocation6], 64
    $region41: #{mmg_student_forward.7} parent=1 // pred_fallthru
      _
    // Predicated region
    $region42: #{mmg_student_forward.7} parent=1 // pred_check
      _
    $region43: #{mmg_student_forward.7} parent=1 // pred_check_branch
      %110 = sbr.rel (0) target = $region45
    $region44: #{mmg_student_forward.7} parent=1 // pred_region
      %111 = dma.done [#allocation6], 64
    $region45: #{mmg_student_forward.7} parent=1 // pred_fallthru
      _
    // Predicated region
    $region46: #{mmg_student_forward.7} parent=1 // pred_check
      _
    $region47: #{mmg_student_forward.7} parent=1 // pred_check_branch
      %113 = sbr.rel (0) target = $region49
    $region48: #{mmg_student_forward.7} parent=1 // pred_region
      %114 = dma.done [#allocation9], 256
    $region49: #{mmg_student_forward.7} parent=1 // pred_fallthru
      _
    // Predicated region
    $region50: #{mmg_student_forward.7} parent=1 // pred_check
      _
    $region51: #{mmg_student_forward.7} parent=1 // pred_check_branch
      %116 = sbr.rel (0) target = $region53
    $region52: #{mmg_student_forward.7} parent=1 // pred_region
      %117 = dma.done [#allocation9], 256
    $region53: #{mmg_student_forward.7} parent=1 // pred_fallthru
      _
    // Predicated region
    $region54: #{mmg_student_forward.7} parent=1 // pred_check
      _
    $region55: #{mmg_student_forward.7} parent=1 // pred_check_branch
      %119 = sbr.rel (0) target = $region57
    $region56: #{mmg_student_forward.7} parent=1 // pred_region
      %120 = dma.done [#allocation12], 16
    $region57: #{mmg_student_forward.7} parent=1 // pred_fallthru
      _
    // Predicated region
    $region58: #{mmg_student_forward.7} parent=1 // pred_check
      _
    $region59: #{mmg_student_forward.7} parent=1 // pred_check_branch
      %122 = sbr.rel (0) target = $region61
    $region60: #{mmg_student_forward.7} parent=1 // pred_region
      %123 = dma.done [#allocation12], 16
    $region61: #{mmg_student_forward.7} parent=1 // pred_fallthru
      _
    // Predicated region
    $region62: #{mmg_student_forward.7} parent=1 // pred_check
      _
    $region63: #{mmg_student_forward.7} parent=1 // pred_check_branch
      %125 = sbr.rel (0) target = $region65
    $region64: #{mmg_student_forward.7} parent=1 // pred_region
      %126 = dma.done [#allocation15], 16
    $region65: #{mmg_student_forward.7} parent=1 // pred_fallthru
      _
    %v128 = vld [vmem:[#allocation5] sm:$0xf]
    %v129 = vld [vmem:[#allocation8] sm:$0xf]
    %v130 = vld [vmem:[#allocation8 + $0x4] sm:$0xf]
    %v131 = vld [vmem:[#allocation8 + $0x8] sm:$0xf]
    %v132 = vld [vmem:[#allocation8 + $0xc] sm:$0xf]
    %v134 = vunpack.c.l.b16 %v128
    %v135 = vpack.c.b16 %v134, %v134
    %136 = vrot.lane.b32.xlu0 %v135, 96
    %v137 = vpop.permute.xlu0 %136
    %v142 = vunpack.c.l.b16 %v129
    %v143 = vunpack.c.l.b16 %v130
    %v144 = vunpack.c.l.b16 %v131
    %v145 = vunpack.c.l.b16 %v132
    %v146 = vpack.c.b16 %v143, %v142
    %v147 = vpack.c.b16 %v145, %v144
    %vm150 = vcmask 261120
    %v152 = vsel %vm150, %v137, 0
    %154 = vmatprep.subr.bf16.mxu0 0
    %155 = vmatpush1.bf16.msra.mxu0 %v146
    %156 = vmatprep.subr.bf16.mxu0 0
    %157 = vmatpush1.bf16.msra.mxu0 %v147
    %158 = vmatprep.subr.bf16.mxu0 0
    %159 = vmatpush1.bf16.msra.mxu0 0
    %160 = vmatprep.subr.bf16.mxu0 0
    %161 = vmatpush1.bf16.msra.mxu0 0
    %162 = vmatprep.subr.bf16.mxu0 0
    %163 = vmatpush1.bf16.msra.mxu0 0
    %164 = vmatprep.subr.bf16.mxu0 0
    %165 = vmatpush1.bf16.msra.mxu0 0
    %166 = vmatprep.subr.bf16.mxu0 0
    %167 = vmatpush1.bf16.msra.mxu0 0
    %168 = vmatprep.subr.bf16.mxu0 0
    %169 = vmatpush1.bf16.msra.mxu0 0
    %170 = vmatprep.subr.bf16.mxu0 0
    %171 = vmatpush1.bf16.msra.mxu0 0
    %172 = vmatprep.subr.bf16.mxu0 0
    %173 = vmatpush1.bf16.msra.mxu0 0
    %174 = vmatprep.subr.bf16.mxu0 0
    %175 = vmatpush1.bf16.msra.mxu0 0
    %176 = vmatprep.subr.bf16.mxu0 0
    %177 = vmatpush1.bf16.msra.mxu0 0
    %178 = vmatprep.subr.bf16.mxu0 0
    %179 = vmatpush1.bf16.msra.mxu0 0
    %180 = vmatprep.subr.bf16.mxu0 0
    %181 = vmatpush1.bf16.msra.mxu0 0
    %182 = vmatprep.subr.bf16.mxu0 0
    %183 = vmatpush1.bf16.msra.mxu0 0
    %184 = vmatprep.subr.bf16.mxu0 0
    %185 = vmatpush1.bf16.msra.mxu0 0
    %186 = vmatprep.mubr.bf16.mxu0 0
    %187 = vmatmul.mubr.bf16.gmra.mrb[0].mxu0 %v152
    %v188 = vpop.f32.mrb[0].mxu0
    %v189 = vadd.f32 0.0, %v188
    %v190 = vpop.f32.mrb[0].mxu0
    %v191 = vpop.f32.mrb[0].mxu0
    %v192 = vpop.f32.mrb[0].mxu0
    %193 = vdwg.mxu0
    %v194 = vlaneseq
    %v195 = vand.u32 %v194, 127
    %vm196 = vcmp.lt.s32.totalorder %v195, 8
    %v197 = vsel %vm196, %v189, -1e+30
    %vm198 = vcmask 64512
    %v199 = vsel %vm198, %v197, -inf
    %200 = vmax.xlane.f32.xlu0 %v199
    %v201 = vpop.xlane.xlu0 %200
    %v202 = vsub.f32 %v197, %v201
    %v203 = vmul.f32 %v202, 1.442695
    %v204 = vpow.pop %v203
    %v205 = vsel %vm198, %v204, 0.0
    %206 = vadd.xlane.f32.xlu0 %v205
    %v207 = vpop.xlane.xlu0 %206
    %v208 = vld [vmem:[#allocation7] sm:$0xf]
    %v209 = vpack.c.bf16 %v204, %v204
    %v211 = vsel %vm198, %v209, 0
    %vm213 = vcmask 1043456
    %v215 = vsel %vm213, %v208, 0
    %217 = vmatprep.subr.bf16.mxu0 0
    %218 = vmatpush1.bf16.msra.mxu0 %v215
    %219 = vmatprep.subr.bf16.mxu0 0
    %220 = vmatpush1.bf16.msra.mxu0 0
    %221 = vmatprep.subr.bf16.mxu0 0
    %222 = vmatpush1.bf16.msra.mxu0 0
    %223 = vmatprep.subr.bf16.mxu0 0
    %224 = vmatpush1.bf16.msra.mxu0 0
    %225 = vmatprep.subr.bf16.mxu0 0
    %226 = vmatpush1.bf16.msra.mxu0 0
    %227 = vmatprep.subr.bf16.mxu0 0
    %228 = vmatpush1.bf16.msra.mxu0 0
    %229 = vmatprep.subr.bf16.mxu0 0
    %230 = vmatpush1.bf16.msra.mxu0 0
    %231 = vmatprep.subr.bf16.mxu0 0
    %232 = vmatpush1.bf16.msra.mxu0 0
    %233 = vmatprep.subr.bf16.mxu0 0
    %234 = vmatpush1.bf16.msra.mxu0 0
    %235 = vmatprep.subr.bf16.mxu0 0
    %236 = vmatpush1.bf16.msra.mxu0 0
    %237 = vmatprep.subr.bf16.mxu0 0
    %238 = vmatpush1.bf16.msra.mxu0 0
    %239 = vmatprep.subr.bf16.mxu0 0
    %240 = vmatpush1.bf16.msra.mxu0 0
    %241 = vmatprep.subr.bf16.mxu0 0
    %242 = vmatpush1.bf16.msra.mxu0 0
    %243 = vmatprep.subr.bf16.mxu0 0
    %244 = vmatpush1.bf16.msra.mxu0 0
    %245 = vmatprep.subr.bf16.mxu0 0
    %246 = vmatpush1.bf16.msra.mxu0 0
    %247 = vmatprep.subr.bf16.mxu0 0
    %248 = vmatpush1.bf16.msra.mxu0 0
    %249 = vmatprep.mubr.bf16.mxu0 0
    %250 = vmatmul.mubr.bf16.gmra.mrb[0].mxu0 %v211
    %v251 = vpop.f32.mrb[0].mxu0
    %v252 = vadd.f32 0.0, %v251
    %v253 = vpop.f32.mrb[0].mxu0
    %v254 = vpop.f32.mrb[0].mxu0
    %v255 = vpop.f32.mrb[0].mxu0
    %256 = vdwg.mxu0
    %v257 = vrcp.pop %v207
    %v258 = vmul.f32 %v252, %v257
    %v259 = vpack.c.bf16 %v258, %v258
    %v260 = vld [vmem:[#allocation10] sm:$0xf]
    %v261 = vld [vmem:[#allocation10 + $0x4] sm:$0xf]
    %v262 = vld [vmem:[#allocation10 + $0x8] sm:$0xf]
    %v263 = vld [vmem:[#allocation10 + $0xc] sm:$0xf]
    %v264 = vld [vmem:[#allocation11] sm:$0x1]
    %v266 = vlaneseq
    %v267 = vshrl.u32 %v266, 7
    %v268 = vsub.s32 0, %v267
    %v269 = vrot.slane %v264, %v268
    %v275 = vunpack.c.l.b16 %v260
    %v276 = vunpack.c.l.b16 %v261
    %v277 = vunpack.c.l.b16 %v262
    %v278 = vunpack.c.l.b16 %v263
    %v279 = vpack.c.b16 %v276, %v275
    %v280 = vpack.c.b16 %v278, %v277
    %v284 = vsel %vm150, %v259, 0
    %286 = vmatprep.subr.bf16.mxu0 0
    %287 = vmatpush1.bf16.msra.mxu0 %v279
    %288 = vmatprep.subr.bf16.mxu0 0
    %289 = vmatpush1.bf16.msra.mxu0 %v280
    %290 = vmatprep.subr.bf16.mxu0 0
    %291 = vmatpush1.bf16.msra.mxu0 0
    %292 = vmatprep.subr.bf16.mxu0 0
    %293 = vmatpush1.bf16.msra.mxu0 0
    %294 = vmatprep.subr.bf16.mxu0 0
    %295 = vmatpush1.bf16.msra.mxu0 0
    %296 = vmatprep.subr.bf16.mxu0 0
    %297 = vmatpush1.bf16.msra.mxu0 0
    %298 = vmatprep.subr.bf16.mxu0 0
    %299 = vmatpush1.bf16.msra.mxu0 0
    %300 = vmatprep.subr.bf16.mxu0 0
    %301 = vmatpush1.bf16.msra.mxu0 0
    %302 = vmatprep.subr.bf16.mxu0 0
    %303 = vmatpush1.bf16.msra.mxu0 0
    %304 = vmatprep.subr.bf16.mxu0 0
    %305 = vmatpush1.bf16.msra.mxu0 0
    %306 = vmatprep.subr.bf16.mxu0 0
    %307 = vmatpush1.bf16.msra.mxu0 0
    %308 = vmatprep.subr.bf16.mxu0 0
    %309 = vmatpush1.bf16.msra.mxu0 0
    %310 = vmatprep.subr.bf16.mxu0 0
    %311 = vmatpush1.bf16.msra.mxu0 0
    %312 = vmatprep.subr.bf16.mxu0 0
    %313 = vmatpush1.bf16.msra.mxu0 0
    %314 = vmatprep.subr.bf16.mxu0 0
    %315 = vmatpush1.bf16.msra.mxu0 0
    %316 = vmatprep.subr.bf16.mxu0 0
    %317 = vmatpush1.bf16.msra.mxu0 0
    %318 = vmatprep.mubr.bf16.mxu0 0
    %319 = vmatmul.mubr.bf16.gmra.mrb[0].mxu0 %v284
    %v320 = vpop.f32.mrb[0].mxu0
    %v321 = vadd.f32 %v269, %v320
    %v322 = vpop.f32.mrb[0].mxu0
    %v323 = vpop.f32.mrb[0].mxu0
    %v324 = vpop.f32.mrb[0].mxu0
    %325 = vdwg.mxu0
    %v326 = vld [vmem:[#allocation2] sm:$0xff]
    %v327 = vadd.f32 %v326, %v321
    %v328 = vsel %vm150, %v327, 0.0
    %329 = vadd.xlane.f32.xlu0 %v328
    %v330 = vpop.xlane.xlu0 %329
    %v331 = vrcp.pop 32.0
    %v332 = vmul.f32 %v330, %v331
    %v333 = vsub.f32 %v327, %v332
    %v334 = vmul.f32 %v333, %v333
    %v335 = vsel %vm150, %v334, 0.0
    %336 = vadd.xlane.f32.xlu0 %v335
    %v337 = vpop.xlane.xlu0 %336
    %v338 = vmul.f32 %v337, %v331
    %v339 = vadd.f32 %v338, 1e-05
    %v340 = vrsqrt.pop %v339
    %v341 = vmul.f32 %v333, %v340
    %v342 = vld [vmem:[#allocation13] sm:$0x1]
    %v344 = vlaneseq
    %v345 = vshrl.u32 %v344, 7
    %v346 = vsub.s32 0, %v345
    %v347 = vrot.slane %v342, %v346
    %v349 = vmul.f32 %v341, %v347
    %v350 = vld [vmem:[#allocation14] sm:$0x1]
    %v352 = vlaneseq
    %v353 = vshrl.u32 %v352, 7
    %v354 = vsub.s32 0, %v353
    %v355 = vrot.slane %v350, %v354
    %v357 = vadd.f32 %v349, %v355
    %358 = vst.msk [vmem:[#allocation16] sm:$0xff] %vm150, %v357
    // Predicated region
    $region66: #{mmg_student_forward.7} parent=1 // pred_check
      _
    $region67: #{mmg_student_forward.7} parent=1 // pred_check_branch
      %360 = sbr.rel (0) target = $region69
    $region68: #{mmg_student_forward.7} parent=1 // pred_region
      %s362 = ssub.s32 128, 128
      %363 = vsyncadd [#allocation4], %s362
      %s365 = sshll.u32 [#allocation16], 4
      %s366 = int_to_ptr.vmem [resolvable:$true] %s365
      %368 = dma.vmem_to_hbm [thread:$0]  %s366, 128, %s8, [#allocation4]
    $region69: #{mmg_student_forward.7} parent=1 // pred_fallthru
      _
    // Predicated region
    $region70: #{mmg_student_forward.7} parent=1 // pred_check
      _
    $region71: #{mmg_student_forward.7} parent=1 // pred_check_branch
      %370 = sbr.rel (0) target = $region73
    $region72: #{mmg_student_forward.7} parent=1 // pred_region
      %371 = dma.done [#allocation4], 128
    $region73: #{mmg_student_forward.7} parent=1 // pred_fallthru
      _
    %372 = vsyncpa [#allocation3], 1
    %373 = vsyncpa [#allocation6], 1
    %374 = vsyncpa [#allocation9], 1
    %375 = vsyncpa [#allocation12], 1
    %376 = vsyncpa [#allocation15], 1
    %377 = vsyncpa [#allocation4], 1

// kernel: mmg_student_forward.10
$region0: #{mmg_student_forward.10}
  #allocation0 [shape = 'u32[]', space=smem, size = 0x4, offset = 0x4, fixed_abs, tag = 'smem constant byte address 0x4 - core index']
  #allocation1 [shape = 'u32[144,128]{1,0:T(1,128)}', space=vmem, size = 0x12000, scoped, tag = 'internal scratch']
  %s0 = inlined_call_operand.hbm [shape: s32[16,1], index: 0, kind: input, shape index: {}]
  %s1 = inlined_call_operand.hbm [shape: s32[16,1], index: 1, kind: input, shape index: {}]
  %s2 = inlined_call_operand.hbm [shape: bf16[16,32], index: 2, kind: input, shape index: {}]
  %s3 = inlined_call_operand.hbm [shape: bf16[8,32], index: 3, kind: input, shape index: {}]
  %s4 = inlined_call_operand.hbm [shape: bf16[96,288], index: 4, kind: input, shape index: {}]
  %s5 = inlined_call_operand.hbm [shape: f32[1,288], index: 5, kind: input, shape index: {}]
  %s6 = inlined_call_operand.hbm [shape: bf16[128,32], index: 6, kind: input, shape index: {}]
  %s7 = inlined_call_operand.hbm [shape: f32[1,32], index: 7, kind: input, shape index: {}]
  %s8 = inlined_call_operand.hbm [shape: bf16[128,128], index: 8, kind: input, shape index: {}]
  %s9 = inlined_call_operand.hbm [shape: f32[1,128], index: 9, kind: input, shape index: {}]
  %s10 = inlined_call_operand.hbm [shape: bf16[128,32], index: 10, kind: input, shape index: {}]
  %s11 = inlined_call_operand.hbm [shape: f32[1,32], index: 11, kind: input, shape index: {}]
  %s12 = inlined_call_operand.hbm [shape: f32[16,64], index: 12, kind: output, shape index: {}]
  %s13 = sld [smem:[#allocation0]]
  $region129: #{mmg_student_forward.10} parent=0
    _
  %s15 = ssub.s32 1, %s13
  %s16 = scalar_select 0, %s15, %s13
  $region1: #{mmg_student_forward.10} parent=0
    #allocation2 [shape = 'u8[8192]{0}', space=vmem, size = 0x2000, scoped, tag = 'input window, operand 0']
    #allocation3 [shape = 's32[2]{0}', space=sflag, size = 0x8, scoped, tag = 'scoped memory for mmg_student_forward.10']
    #allocation4 [shape = 's32[2]{0}', space=sflag, size = 0x8, scoped, tag = 'scoped memory for mmg_student_forward.10']
    #allocation5 [shape = 'u8[8192]{0}', space=vmem, size = 0x2000, scoped, tag = 'input window, operand 1']
    #allocation6 [shape = 's32[2]{0}', space=sflag, size = 0x8, scoped, tag = 'scoped memory for mmg_student_forward.10']
    #allocation7 [shape = 'u8[4096]{0}', space=vmem, size = 0x1000, scoped, tag = 'input window, operand 2']
    #allocation8 [shape = 'u8[2048]{0}', space=vmem, size = 0x800, scoped, tag = 'input window, operand 3, single buffered']
    #allocation9 [shape = 's32[1]{0}', space=sflag, size = 0x4, scoped, tag = 'scoped memory for mmg_student_forward.10']
    #allocation10 [shape = 'u8[73728]{0}', space=vmem, size = 0x12000, scoped, tag = 'input window, operand 4, single buffered']
    #allocation11 [shape = 'u8[1536]{0}', space=vmem, size = 0x800, scoped, tag = 'input window, operand 5, single buffered']
    #allocation12 [shape = 's32[1]{0}', space=sflag, size = 0x4, scoped, tag = 'scoped memory for mmg_student_forward.10']
    #allocation13 [shape = 'u8[32768]{0}', space=vmem, size = 0x8000, scoped, tag = 'input window, operand 6, single buffered']
    #allocation14 [shape = 'u8[512]{0}', space=vmem, size = 0x400, scoped, tag = 'input window, operand 7, single buffered']
    #allocation15 [shape = 's32[1]{0}', space=sflag, size = 0x4, scoped, tag = 'scoped memory for mmg_student_forward.10']
    #allocation16 [shape = 'u8[32768]{0}', space=vmem, size = 0x8000, scoped, tag = 'input window, operand 8, single buffered']
    #allocation17 [shape = 'u8[512]{0}', space=vmem, size = 0x400, scoped, tag = 'input window, operand 9, single buffered']
    #allocation18 [shape = 's32[1]{0}', space=sflag, size = 0x4, scoped, tag = 'scoped memory for mmg_student_forward.10']
    #allocation19 [shape = 'u8[32768]{0}', space=vmem, size = 0x8000, scoped, tag = 'input window, operand 10, single buffered']
    #allocation20 [shape = 'u8[512]{0}', space=vmem, size = 0x400, scoped, tag = 'input window, operand 11, single buffered']
    #allocation21 [shape = 's32[1]{0}', space=sflag, size = 0x4, scoped, tag = 'scoped memory for mmg_student_forward.10']
    #allocation22 [shape = 'u8[8192]{0}', space=vmem, size = 0x2000, scoped, tag = 'output window, operand 0']
    %17 = vsyncpa [#allocation3], 0
    %s18 = scalar_lea.sflag [#allocation3], 1
    %19 = vsyncpa %s18, 0
    %20 = vsyncpa [#allocation6], 0
    %s21 = scalar_lea.sflag [#allocation6], 1
    %22 = vsyncpa %s21, 0
    %23 = vsyncpa [#allocation9], 0
    %24 = vsyncpa [#allocation12], 0
    %25 = vsyncpa [#allocation15], 0
    %26 = vsyncpa [#allocation18], 0
    %27 = vsyncpa [#allocation21], 0
    %28 = vsyncpa [#allocation4], 0
    %s29 = scalar_lea.sflag [#allocation4], 1
    %30 = vsyncpa %s29, 0
    loop: start=0, step=1, limit=4
    $region2: #{mmg_student_forward.10} parent=1 // loop_pre_header
      _
    $region3: #{mmg_student_forward.10} parent=1 // loop_header
      %s32 = sphi 0, %s36
      %p33 = scmp.ge.s32.totalorder %s32, 4
      %s42 = sphi 0, %s44
      %s45 = sphi 0, %s42
      %s46 = sphi 0, %s45
      %s62 = sphi 0, %s46
      %s68 = sphi 0, %s70
      %s71 = sphi 0, %s68
      %s72 = sphi 0, %s71
      %s88 = sphi 0, %s72
      %s94 = sphi 0, %s96
      %s97 = sphi 0, %s94
      %s98 = sphi 0, %s97
      %s114 = sphi 0, %s98
      %s118 = sphi 0, %s118
      %s120 = sphi 0, %s118
      %s121 = sphi 0, %s120
      %s135 = sphi 0, %s121
      %s139 = sphi 0, %s139
      %s141 = sphi 0, %s139
      %s142 = sphi 0, %s141
      %s156 = sphi 0, %s142
      %s160 = sphi 0, %s160
      %s162 = sphi 0, %s160
      %s163 = sphi 0, %s162
      %s177 = sphi 0, %s163
      %s181 = sphi 0, %s181
      %s183 = sphi 0, %s181
      %s184 = sphi 0, %s183
      %s198 = sphi 0, %s184
      %s202 = sphi 0, %s202
      %s204 = sphi 0, %s202
      %s205 = sphi 0, %s204
      %s219 = sphi 0, %s205
      %s223 = sphi 0, %s223
      %s225 = sphi 0, %s223
      %s226 = sphi 0, %s225
      %s240 = sphi 0, %s226
      %s244 = sphi 0, %s244
      %s246 = sphi 0, %s244
      %s247 = sphi 0, %s246
      %s261 = sphi 0, %s247
      %s265 = sphi 0, %s265
      %s267 = sphi 0, %s265
      %s268 = sphi 0, %s267
      %s282 = sphi 0, %s268
      %s286 = sphi 0, %s286
      %s288 = sphi 0, %s286
      %s289 = sphi 0, %s288
      %s303 = sphi 0, %s289
      %s309 = sphi 0, %s311
      %s312 = sphi 0, %s309
      %s313 = sphi 0, %s312
      %s329 = sphi 0, %s313
    $region4: #{mmg_student_forward.10} parent=1 // loop_header_branch
      %35 = sbr.rel (%p33) target = $region8
    $region5: #{mmg_student_forward.10} parent=1 // loop_body
      %s37 = ssub.s32 %s32, 1
      %s38 = ssub.s32 %s32, 2
      %s39 = sadd.s32 %s32, 1
      %s40 = ssub.s32 %s32, %s39
      %p41 = scmp.eq.s32.totalorder %s40, 0
      %s43 = sadd.s32 %s42, 1
      %s44 = scalar_select %p41, %s42, %s43
      %p47 = pneg %p41
      %p48 = scmp.eq.s32.totalorder %s32, 1
      %p49 = por %p47, %p48
      %p50 = scmp.ne.s32.totalorder %s42, %s45
      %p51 = scmp.eq.s32.totalorder %s32, 0
      %p52 = por %p50, %p51
      %p53 = scmp.ne.s32.totalorder %s42, %s45
      %p54 = scmp.eq.s32.totalorder %s37, 1
      %p55 = por %p53, %p54
      %p56 = scmp.ne.s32.totalorder %s45, %s46
      %p57 = scmp.eq.s32.totalorder %s37, 0
      %p58 = por %p56, %p57
      %p59 = scmp.ne.s32.totalorder %s45, %s46
      %p60 = scmp.eq.s32.totalorder %s38, 1
      %p61 = por %p59, %p60
      %p63 = scmp.ne.s32.totalorder %s46, %s62
      %p64 = scmp.eq.s32.totalorder %s38, 0
      %p65 = por %p63, %p64
      %s66 = ssub.s32 %s32, %s39
      %p67 = scmp.eq.s32.totalorder %s66, 0
      %s69 = sadd.s32 %s68, 1
      %s70 = scalar_select %p67, %s68, %s69
      %p73 = pneg %p67
      %p74 = scmp.eq.s32.totalorder %s32, 1
      %p75 = por %p73, %p74
      %p76 = scmp.ne.s32.totalorder %s68, %s71
      %p77 = scmp.eq.s32.totalorder %s32, 0
      %p78 = por %p76, %p77
      %p79 = scmp.ne.s32.totalorder %s68, %s71
      %p80 = scmp.eq.s32.totalorder %s37, 1
      %p81 = por %p79, %p80
      %p82 = scmp.ne.s32.totalorder %s71, %s72
      %p83 = scmp.eq.s32.totalorder %s37, 0
      %p84 = por %p82, %p83
      %p85 = scmp.ne.s32.totalorder %s71, %s72
      %p86 = scmp.eq.s32.totalorder %s38, 1
      %p87 = por %p85, %p86
      %p89 = scmp.ne.s32.totalorder %s72, %s88
      %p90 = scmp.eq.s32.totalorder %s38, 0
      %p91 = por %p89, %p90
      %s92 = ssub.s32 %s32, %s39
      %p93 = scmp.eq.s32.totalorder %s92, 0
      %s95 = sadd.s32 %s94, 1
      %s96 = scalar_select %p93, %s94, %s95
      %p99 = pneg %p93
      %p100 = scmp.eq.s32.totalorder %s32, 1
      %p101 = por %p99, %p100
      %p102 = scmp.ne.s32.totalorder %s94, %s97
      %p103 = scmp.eq.s32.totalorder %s32, 0
      %p104 = por %p102, %p103
      %p105 = scmp.ne.s32.totalorder %s94, %s97
      %p106 = scmp.eq.s32.totalorder %s37, 1
      %p107 = por %p105, %p106
      %p108 = scmp.ne.s32.totalorder %s97, %s98
      %p109 = scmp.eq.s32.totalorder %s37, 0
      %p110 = por %p108, %p109
      %p111 = scmp.ne.s32.totalorder %s97, %s98
      %p112 = scmp.eq.s32.totalorder %s38, 1
      %p113 = por %p111, %p112
      %p115 = scmp.ne.s32.totalorder %s98, %s114
      %p116 = scmp.eq.s32.totalorder %s38, 0
      %p117 = por %p115, %p116
      %s119 = sadd.s32 %s118, 1
      %p122 = scmp.eq.s32.totalorder %s32, 1
      %p123 = scmp.ne.s32.totalorder %s118, %s120
      %p124 = scmp.eq.s32.totalorder %s32, 0
      %p125 = por %p123, %p124
      %p126 = scmp.ne.s32.totalorder %s118, %s120
      %p127 = scmp.eq.s32.totalorder %s37, 1
      %p128 = por %p126, %p127
      %p129 = scmp.ne.s32.totalorder %s120, %s121
      %p130 = scmp.eq.s32.totalorder %s37, 0
      %p131 = por %p129, %p130
      %p132 = scmp.ne.s32.totalorder %s120, %s121
      %p133 = scmp.eq.s32.totalorder %s38, 1
      %p134 = por %p132, %p133
      %p136 = scmp.ne.s32.totalorder %s121, %s135
      %p137 = scmp.eq.s32.totalorder %s38, 0
      %p138 = por %p136, %p137
      %s140 = sadd.s32 %s139, 1
      %p143 = scmp.eq.s32.totalorder %s32, 1
      %p144 = scmp.ne.s32.totalorder %s139, %s141
      %p145 = scmp.eq.s32.totalorder %s32, 0
      %p146 = por %p144, %p145
      %p147 = scmp.ne.s32.totalorder %s139, %s141
      %p148 = scmp.eq.s32.totalorder %s37, 1
      %p149 = por %p147, %p148
      %p150 = scmp.ne.s32.totalorder %s141, %s142
      %p151 = scmp.eq.s32.totalorder %s37, 0
      %p152 = por %p150, %p151
      %p153 = scmp.ne.s32.totalorder %s141, %s142
      %p154 = scmp.eq.s32.totalorder %s38, 1
      %p155 = por %p153, %p154
      %p157 = scmp.ne.s32.totalorder %s142, %s156
      %p158 = scmp.eq.s32.totalorder %s38, 0
      %p159 = por %p157, %p158
      %s161 = sadd.s32 %s160, 1
      %p164 = scmp.eq.s32.totalorder %s32, 1
      %p165 = scmp.ne.s32.totalorder %s160, %s162
      %p166 = scmp.eq.s32.totalorder %s32, 0
      %p167 = por %p165, %p166
      %p168 = scmp.ne.s32.totalorder %s160, %s162
      %p169 = scmp.eq.s32.totalorder %s37, 1
      %p170 = por %p168, %p169
      %p171 = scmp.ne.s32.totalorder %s162, %s163
      %p172 = scmp.eq.s32.totalorder %s37, 0
      %p173 = por %p171, %p172
      %p174 = scmp.ne.s32.totalorder %s162, %s163
      %p175 = scmp.eq.s32.totalorder %s38, 1
      %p176 = por %p174, %p175
      %p178 = scmp.ne.s32.totalorder %s163, %s177
      %p179 = scmp.eq.s32.totalorder %s38, 0
      %p180 = por %p178, %p179
      %s182 = sadd.s32 %s181, 1
      %p185 = scmp.eq.s32.totalorder %s32, 1
      %p186 = scmp.ne.s32.totalorder %s181, %s183
      %p187 = scmp.eq.s32.totalorder %s32, 0
      %p188 = por %p186, %p187
      %p189 = scmp.ne.s32.totalorder %s181, %s183
      %p190 = scmp.eq.s32.totalorder %s37, 1
      %p191 = por %p189, %p190
      %p192 = scmp.ne.s32.totalorder %s183, %s184
      %p193 = scmp.eq.s32.totalorder %s37, 0
      %p194 = por %p192, %p193
      %p195 = scmp.ne.s32.totalorder %s183, %s184
      %p196 = scmp.eq.s32.totalorder %s38, 1
      %p197 = por %p195, %p196
      %p199 = scmp.ne.s32.totalorder %s184, %s198
      %p200 = scmp.eq.s32.totalorder %s38, 0
      %p201 = por %p199, %p200
      %s203 = sadd.s32 %s202, 1
      %p206 = scmp.eq.s32.totalorder %s32, 1
      %p207 = scmp.ne.s32.totalorder %s202, %s204
      %p208 = scmp.eq.s32.totalorder %s32, 0
      %p209 = por %p207, %p208
      %p210 = scmp.ne.s32.totalorder %s202, %s204
      %p211 = scmp.eq.s32.totalorder %s37, 1
      %p212 = por %p210, %p211
      %p213 = scmp.ne.s32.totalorder %s204, %s205
      %p214 = scmp.eq.s32.totalorder %s37, 0
      %p215 = por %p213, %p214
      %p216 = scmp.ne.s32.totalorder %s204, %s205
      %p217 = scmp.eq.s32.totalorder %s38, 1
      %p218 = por %p216, %p217
      %p220 = scmp.ne.s32.totalorder %s205, %s219
      %p221 = scmp.eq.s32.totalorder %s38, 0
      %p222 = por %p220, %p221
      %s224 = sadd.s32 %s223, 1
      %p227 = scmp.eq.s32.totalorder %s32, 1
      %p228 = scmp.ne.s32.totalorder %s223, %s225
      %p229 = scmp.eq.s32.totalorder %s32, 0
      %p230 = por %p228, %p229
      %p231 = scmp.ne.s32.totalorder %s223, %s225
      %p232 = scmp.eq.s32.totalorder %s37, 1
      %p233 = por %p231, %p232
      %p234 = scmp.ne.s32.totalorder %s225, %s226
      %p235 = scmp.eq.s32.totalorder %s37, 0
      %p236 = por %p234, %p235
      %p237 = scmp.ne.s32.totalorder %s225, %s226
      %p238 = scmp.eq.s32.totalorder %s38, 1
      %p239 = por %p237, %p238
      %p241 = scmp.ne.s32.totalorder %s226, %s240
      %p242 = scmp.eq.s32.totalorder %s38, 0
      %p243 = por %p241, %p242
      %s245 = sadd.s32 %s244, 1
      %p248 = scmp.eq.s32.totalorder %s32, 1
      %p249 = scmp.ne.s32.totalorder %s244, %s246
      %p250 = scmp.eq.s32.totalorder %s32, 0
      %p251 = por %p249, %p250
      %p252 = scmp.ne.s32.totalorder %s244, %s246
      %p253 = scmp.eq.s32.totalorder %s37, 1
      %p254 = por %p252, %p253
      %p255 = scmp.ne.s32.totalorder %s246, %s247
      %p256 = scmp.eq.s32.totalorder %s37, 0
      %p257 = por %p255, %p256
      %p258 = scmp.ne.s32.totalorder %s246, %s247
      %p259 = scmp.eq.s32.totalorder %s38, 1
      %p260 = por %p258, %p259
      %p262 = scmp.ne.s32.totalorder %s247, %s261
      %p263 = scmp.eq.s32.totalorder %s38, 0
      %p264 = por %p262, %p263
      %s266 = sadd.s32 %s265, 1
      %p269 = scmp.eq.s32.totalorder %s32, 1
      %p270 = scmp.ne.s32.totalorder %s265, %s267
      %p271 = scmp.eq.s32.totalorder %s32, 0
      %p272 = por %p270, %p271
      %p273 = scmp.ne.s32.totalorder %s265, %s267
      %p274 = scmp.eq.s32.totalorder %s37, 1
      %p275 = por %p273, %p274
      %p276 = scmp.ne.s32.totalorder %s267, %s268
      %p277 = scmp.eq.s32.totalorder %s37, 0
      %p278 = por %p276, %p277
      %p279 = scmp.ne.s32.totalorder %s267, %s268
      %p280 = scmp.eq.s32.totalorder %s38, 1
      %p281 = por %p279, %p280
      %p283 = scmp.ne.s32.totalorder %s268, %s282
      %p284 = scmp.eq.s32.totalorder %s38, 0
      %p285 = por %p283, %p284
      %s287 = sadd.s32 %s286, 1
      %p290 = scmp.eq.s32.totalorder %s32, 1
      %p291 = scmp.ne.s32.totalorder %s286, %s288
      %p292 = scmp.eq.s32.totalorder %s32, 0
      %p293 = por %p291, %p292
      %p294 = scmp.ne.s32.totalorder %s286, %s288
      %p295 = scmp.eq.s32.totalorder %s37, 1
      %p296 = por %p294, %p295
      %p297 = scmp.ne.s32.totalorder %s288, %s289
      %p298 = scmp.eq.s32.totalorder %s37, 0
      %p299 = por %p297, %p298
      %p300 = scmp.ne.s32.totalorder %s288, %s289
      %p301 = scmp.eq.s32.totalorder %s38, 1
      %p302 = por %p300, %p301
      %p304 = scmp.ne.s32.totalorder %s289, %s303
      %p305 = scmp.eq.s32.totalorder %s38, 0
      %p306 = por %p304, %p305
      %s307 = ssub.s32 %s32, %s39
      %p308 = scmp.eq.s32.totalorder %s307, 0
      %s310 = sadd.s32 %s309, 1
      %s311 = scalar_select %p308, %s309, %s310
      %p314 = pneg %p308
      %p315 = scmp.eq.s32.totalorder %s32, 1
      %p316 = por %p314, %p315
      %p317 = scmp.ne.s32.totalorder %s309, %s312
      %p318 = scmp.eq.s32.totalorder %s32, 0
      %p319 = por %p317, %p318
      %p320 = scmp.ne.s32.totalorder %s309, %s312
      %p321 = scmp.eq.s32.totalorder %s37, 1
      %p322 = por %p320, %p321
      %p323 = scmp.ne.s32.totalorder %s312, %s313
      %p324 = scmp.eq.s32.totalorder %s37, 0
      %p325 = por %p323, %p324
      %p326 = scmp.ne.s32.totalorder %s312, %s313
      %p327 = scmp.eq.s32.totalorder %s38, 1
      %p328 = por %p326, %p327
      %p330 = scmp.ne.s32.totalorder %s313, %s329
      %p331 = scmp.eq.s32.totalorder %s38, 0
      %p332 = por %p330, %p331
      %p333 = scmp.le.s32.totalorder 1, %s32
      %p334 = scmp.lt.s32.totalorder %s32, 3
      %p335 = pnand %p333, %p334
      %p336 = pneg %p335
      // Predicated region
      $region9: #{mmg_student_forward.10} parent=5 // pred_check
        _
      $region10: #{mmg_student_forward.10} parent=5 // pred_check_branch
        %338 = sbr.rel (%p335) target = $region12
      $region11: #{mmg_student_forward.10} parent=5 // pred_region
        %s339 = ssub.s32 %s32, 1
        // Predicated region
        $region13: #{mmg_student_forward.10} parent=11 // pred_check
          %p340 = pneg %p131
        $region14: #{mmg_student_forward.10} parent=11 // pred_check_branch
          %342 = sbr.rel (%p340) target = $region16
        $region15: #{mmg_student_forward.10} parent=11 // pred_region
          %s344 = ssub.s32 64, 64
          %345 = vsyncadd [#allocation9], %s344
          %s347 = sshll.u32 [#allocation8], 4
          %s348 = int_to_ptr.vmem [resolvable:$true] %s347
          %350 = dma.hbm_to_vmem [thread:$0]  %s3, 64, %s348, [#allocation9]
        $region16: #{mmg_student_forward.10} parent=11 // pred_fallthru
          _
        // Predicated region
        $region17: #{mmg_student_forward.10} parent=11 // pred_check
          %p351 = pneg %p152
        $region18: #{mmg_student_forward.10} parent=11 // pred_check_branch
          %353 = sbr.rel (%p351) target = $region20
        $region19: #{mmg_student_forward.10} parent=11 // pred_region
          %s355 = ssub.s32 2304, 2304
          %356 = vsyncadd [#allocation9], %s355
          %s357 = sshll.u32 [#allocation10], 4
          %s358 = int_to_ptr.vmem [resolvable:$true] %s357
          %363 = dma.hbm_to_vmem [thread:$0]  %s4, 2304, %s358, [#allocation9], 192, 192, 12
        $region20: #{mmg_student_forward.10} parent=11 // pred_fallthru
          _
        // Predicated region
        $region21: #{mmg_student_forward.10} parent=11 // pred_check
          %p364 = pneg %p173
        $region22: #{mmg_student_forward.10} parent=11 // pred_check_branch
          %366 = sbr.rel (%p364) target = $region24
        $region23: #{mmg_student_forward.10} parent=11 // pred_region
          %s368 = ssub.s32 48, 48
          %369 = vsyncadd [#allocation12], %s368
          %s371 = sshll.u32 [#allocation11], 4
          %s372 = int_to_ptr.vmem [resolvable:$true] %s371
          %374 = dma.hbm_to_vmem [thread:$0]  %s5, 48, %s372, [#allocation12]
        $region24: #{mmg_student_forward.10} parent=11 // pred_fallthru
          _
        // Predicated region
        $region25: #{mmg_student_forward.10} parent=11 // pred_check
          %p375 = pneg %p194
        $region26: #{mmg_student_forward.10} parent=11 // pred_check_branch
          %377 = sbr.rel (%p375) target = $region28
        $region27: #{mmg_student_forward.10} parent=11 // pred_region
          %s379 = ssub.s32 1024, 1024
          %380 = vsyncadd [#allocation12], %s379
          %s381 = sshll.u32 [#allocation13], 4
          %s382 = int_to_ptr.vmem [resolvable:$true] %s381
          %387 = dma.hbm_to_vmem [thread:$0]  %s6, 1024, %s382, [#allocation12], 64, 64, 4
        $region28: #{mmg_student_forward.10} parent=11 // pred_fallthru
          _
        // Predicated region
        $region29: #{mmg_student_forward.10} parent=11 // pred_check
          %p388 = pneg %p215
        $region30: #{mmg_student_forward.10} parent=11 // pred_check_branch
          %390 = sbr.rel (%p388) target = $region32
        $region31: #{mmg_student_forward.10} parent=11 // pred_region
          %s392 = ssub.s32 16, 16
          %393 = vsyncadd [#allocation15], %s392
          %s395 = sshll.u32 [#allocation14], 4
          %s396 = int_to_ptr.vmem [resolvable:$true] %s395
          %398 = dma.hbm_to_vmem [thread:$0]  %s7, 16, %s396, [#allocation15]
        $region32: #{mmg_student_forward.10} parent=11 // pred_fallthru
          _
        // Predicated region
        $region33: #{mmg_student_forward.10} parent=11 // pred_check
          %p399 = pneg %p236
        $region34: #{mmg_student_forward.10} parent=11 // pred_check_branch
          %401 = sbr.rel (%p399) target = $region36
        $region35: #{mmg_student_forward.10} parent=11 // pred_region
          %s403 = ssub.s32 1024, 1024
          %404 = vsyncadd [#allocation15], %s403
          %s405 = sshll.u32 [#allocation16], 4
          %s406 = int_to_ptr.vmem [resolvable:$true] %s405
          %411 = dma.hbm_to_vmem [thread:$0]  %s8, 1024, %s406, [#allocation15], 64, 64, 4
        $region36: #{mmg_student_forward.10} parent=11 // pred_fallthru
          _
        // Predicated region
        $region37: #{mmg_student_forward.10} parent=11 // pred_check
          %p412 = pneg %p257
        $region38: #{mmg_student_forward.10} parent=11 // pred_check_branch
          %414 = sbr.rel (%p412) target = $region40
        $region39: #{mmg_student_forward.10} parent=11 // pred_region
          %s416 = ssub.s32 16, 16
          %417 = vsyncadd [#allocation18], %s416
          %s419 = sshll.u32 [#allocation17], 4
          %s420 = int_to_ptr.vmem [resolvable:$true] %s419
          %422 = dma.hbm_to_vmem [thread:$0]  %s9, 16, %s420, [#allocation18]
        $region40: #{mmg_student_forward.10} parent=11 // pred_fallthru
          _
        // Predicated region
        $region41: #{mmg_student_forward.10} parent=11 // pred_check
          %p423 = pneg %p278
        $region42: #{mmg_student_forward.10} parent=11 // pred_check_branch
          %425 = sbr.rel (%p423) target = $region44
        $region43: #{mmg_student_forward.10} parent=11 // pred_region
          %s427 = ssub.s32 1024, 1024
          %428 = vsyncadd [#allocation18], %s427
          %s429 = sshll.u32 [#allocation19], 4
          %s430 = int_to_ptr.vmem [resolvable:$true] %s429
          %435 = dma.hbm_to_vmem [thread:$0]  %s10, 1024, %s430, [#allocation18], 64, 64, 4
        $region44: #{mmg_student_forward.10} parent=11 // pred_fallthru
          _
        // Predicated region
        $region45: #{mmg_student_forward.10} parent=11 // pred_check
          %p436 = pneg %p299
        $region46: #{mmg_student_forward.10} parent=11 // pred_check_branch
          %438 = sbr.rel (%p436) target = $region48
        $region47: #{mmg_student_forward.10} parent=11 // pred_region
          %s440 = ssub.s32 16, 16
          %441 = vsyncadd [#allocation21], %s440
          %s443 = sshll.u32 [#allocation20], 4
          %s444 = int_to_ptr.vmem [resolvable:$true] %s443
          %446 = dma.hbm_to_vmem [thread:$0]  %s11, 16, %s444, [#allocation21]
        $region48: #{mmg_student_forward.10} parent=11 // pred_fallthru
          _
      $region12: #{mmg_student_forward.10} parent=5 // pred_fallthru
        _
      %p447 = scmp.lt.s32.totalorder %s32, 2
      // Predicated region
      $region49: #{mmg_student_forward.10} parent=5 // pred_check
        %p448 = pneg %p447
      $region50: #{mmg_student_forward.10} parent=5 // pred_check_branch
        %450 = sbr.rel (%p448) target = $region52
      $region51: #{mmg_student_forward.10} parent=5 // pred_region
        // Predicated region
        $region53: #{mmg_student_forward.10} parent=51 // pred_check
          %p451 = pneg %p52
        $region54: #{mmg_student_forward.10} parent=51 // pred_check_branch
          %453 = sbr.rel (%p451) target = $region56
        $region55: #{mmg_student_forward.10} parent=51 // pred_region
          %s454 = sand.u32 %s42, 1
          %s455 = scalar_lea.sflag [#allocation3], %s454
          %s456 = sand.u32 %s42, 1
          %s457 = smul.addr %s456, 8
          %s458 = scalar_lea.vmem [#allocation2], %s457
          %s460 = ssub.s32 128, 128
          %461 = vsyncadd %s455, %s460
          %s462 = smul.addr %s32, 128
          %s463 = scalar_lea.hbm %s0, %s462
          %s465 = sshll.u32 %s458, 4
          %s466 = int_to_ptr.vmem [resolvable:$true] %s465
          %468 = dma.hbm_to_vmem [thread:$0]  %s463, 128, %s466, %s455
        $region56: #{mmg_student_forward.10} parent=51 // pred_fallthru
          _
        // Predicated region
        $region57: #{mmg_student_forward.10} parent=51 // pred_check
          %p469 = pneg %p78
        $region58: #{mmg_student_forward.10} parent=51 // pred_check_branch
          %471 = sbr.rel (%p469) target = $region60
        $region59: #{mmg_student_forward.10} parent=51 // pred_region
          %s472 = sand.u32 %s32, 1
          %s473 = scalar_lea.sflag [#allocation6], %s472
          %s474 = sand.u32 %s68, 1
          %s475 = smul.addr %s474, 8
          %s476 = scalar_lea.vmem [#allocation5], %s475
          %s478 = ssub.s32 128, 128
          %479 = vsyncadd %s473, %s478
          %s480 = smul.addr %s32, 128
          %s481 = scalar_lea.hbm %s1, %s480
          %s483 = sshll.u32 %s476, 4
          %s484 = int_to_ptr.vmem [resolvable:$true] %s483
          %486 = dma.hbm_to_vmem [thread:$0]  %s481, 128, %s484, %s473
        $region60: #{mmg_student_forward.10} parent=51 // pred_fallthru
          _
        // Predicated region
        $region61: #{mmg_student_forward.10} parent=51 // pred_check
          %p487 = pneg %p104
        $region62: #{mmg_student_forward.10} parent=51 // pred_check_branch
          %489 = sbr.rel (%p487) target = $region64
        $region63: #{mmg_student_forward.10} parent=51 // pred_region
          %s490 = sand.u32 %s32, 1
          %s491 = scalar_lea.sflag [#allocation6], %s490
          %s492 = sand.u32 %s94, 1
          %s493 = smul.addr %s492, 4
          %s494 = scalar_lea.vmem [#allocation7], %s493
          %s496 = ssub.s32 64, 64
          %497 = vsyncadd %s491, %s496
          %s498 = smul.addr %s32, 64
          %s499 = scalar_lea.hbm %s2, %s498
          %s501 = sshll.u32 %s494, 4
          %s502 = int_to_ptr.vmem [resolvable:$true] %s501
          %504 = dma.hbm_to_vmem [thread:$0]  %s499, 64, %s502, %s491
        $region64: #{mmg_student_forward.10} parent=51 // pred_fallthru
          _
      $region52: #{mmg_student_forward.10} parent=5 // pred_fallthru
        _
      %p505 = scmp.le.s32.totalorder 1, %s32
      %p506 = scmp.lt.s32.totalorder %s32, 3
      %p507 = pnand %p505, %p506
      %p508 = pneg %p507
      // Predicated region
      $region65: #{mmg_student_forward.10} parent=5 // pred_check
        _
      $region66: #{mmg_student_forward.10} parent=5 // pred_check_branch
        %510 = sbr.rel (%p507) target = $region68
      $region67: #{mmg_student_forward.10} parent=5 // pred_region
        %s511 = ssub.s32 %s32, 1
        %s512 = sand.u32 %s45, 1
        %s513 = scalar_lea.sflag [#allocation3], %s512
        %s514 = sand.u32 %s45, 1
        %s515 = smul.addr %s514, 8
        %s516 = scalar_lea.vmem [#allocation2], %s515
        // Predicated region
        $region69: #{mmg_student_forward.10} parent=67 // pred_check
          %p517 = pneg %p58
        $region70: #{mmg_student_forward.10} parent=67 // pred_check_branch
          %519 = sbr.rel (%p517) target = $region72
        $region71: #{mmg_student_forward.10} parent=67 // pred_region
          %520 = dma.done %s513, 128
        $region72: #{mmg_student_forward.10} parent=67 // pred_fallthru
          _
        %s521 = sand.u32 %s37, 1
        %s522 = scalar_lea.sflag [#allocation6], %s521
        %s523 = sand.u32 %s71, 1
        %s524 = smul.addr %s523, 8
        %s525 = scalar_lea.vmem [#allocation5], %s524
        // Predicated region
        $region73: #{mmg_student_forward.10} parent=67 // pred_check
          %p526 = pneg %p84
        $region74: #{mmg_student_forward.10} parent=67 // pred_check_branch
          %528 = sbr.rel (%p526) target = $region76
        $region75: #{mmg_student_forward.10} parent=67 // pred_region
          %529 = dma.done %s522, 128
        $region76: #{mmg_student_forward.10} parent=67 // pred_fallthru
          _
        %s530 = sand.u32 %s37, 1
        %s531 = scalar_lea.sflag [#allocation6], %s530
        %s532 = sand.u32 %s97, 1
        %s533 = smul.addr %s532, 4
        %s534 = scalar_lea.vmem [#allocation7], %s533
        // Predicated region
        $region77: #{mmg_student_forward.10} parent=67 // pred_check
          %p535 = pneg %p110
        $region78: #{mmg_student_forward.10} parent=67 // pred_check_branch
          %537 = sbr.rel (%p535) target = $region80
        $region79: #{mmg_student_forward.10} parent=67 // pred_region
          %538 = dma.done %s531, 64
        $region80: #{mmg_student_forward.10} parent=67 // pred_fallthru
          _
        // Predicated region
        $region81: #{mmg_student_forward.10} parent=67 // pred_check
          %p539 = pneg %p131
        $region82: #{mmg_student_forward.10} parent=67 // pred_check_branch
          %541 = sbr.rel (%p539) target = $region84
        $region83: #{mmg_student_forward.10} parent=67 // pred_region
          %542 = dma.done [#allocation9], 64
        $region84: #{mmg_student_forward.10} parent=67 // pred_fallthru
          _
        // Predicated region
        $region85: #{mmg_student_forward.10} parent=67 // pred_check
          %p543 = pneg %p152
        $region86: #{mmg_student_forward.10} parent=67 // pred_check_branch
          %545 = sbr.rel (%p543) target = $region88
        $region87: #{mmg_student_forward.10} parent=67 // pred_region
          %546 = dma.done [#allocation9], 2304
        $region88: #{mmg_student_forward.10} parent=67 // pred_fallthru
          _
        // Predicated region
        $region89: #{mmg_student_forward.10} parent=67 // pred_check
          %p547 = pneg %p173
        $region90: #{mmg_student_forward.10} parent=67 // pred_check_branch
          %549 = sbr.rel (%p547) target = $region92
        $region91: #{mmg_student_forward.10} parent=67 // pred_region
          %550 = dma.done [#allocation12], 48
        $region92: #{mmg_student_forward.10} parent=67 // pred_fallthru
          _
        // Predicated region
        $region93: #{mmg_student_forward.10} parent=67 // pred_check
          %p551 = pneg %p194
        $region94: #{mmg_student_forward.10} parent=67 // pred_check_branch
          %553 = sbr.rel (%p551) target = $region96
        $region95: #{mmg_student_forward.10} parent=67 // pred_region
          %554 = dma.done [#allocation12], 1024
        $region96: #{mmg_student_forward.10} parent=67 // pred_fallthru
          _
        // Predicated region
        $region97: #{mmg_student_forward.10} parent=67 // pred_check
          %p555 = pneg %p215
        $region98: #{mmg_student_forward.10} parent=67 // pred_check_branch
          %557 = sbr.rel (%p555) target = $region100
        $region99: #{mmg_student_forward.10} parent=67 // pred_region
          %558 = dma.done [#allocation15], 16
        $region100: #{mmg_student_forward.10} parent=67 // pred_fallthru
          _
        // Predicated region
        $region101: #{mmg_student_forward.10} parent=67 // pred_check
          %p559 = pneg %p236
        $region102: #{mmg_student_forward.10} parent=67 // pred_check_branch
          %561 = sbr.rel (%p559) target = $region104
        $region103: #{mmg_student_forward.10} parent=67 // pred_region
          %562 = dma.done [#allocation15], 1024
        $region104: #{mmg_student_forward.10} parent=67 // pred_fallthru
          _
        // Predicated region
        $region105: #{mmg_student_forward.10} parent=67 // pred_check
          %p563 = pneg %p257
        $region106: #{mmg_student_forward.10} parent=67 // pred_check_branch
          %565 = sbr.rel (%p563) target = $region108
        $region107: #{mmg_student_forward.10} parent=67 // pred_region
          %566 = dma.done [#allocation18], 16
        $region108: #{mmg_student_forward.10} parent=67 // pred_fallthru
          _
        // Predicated region
        $region109: #{mmg_student_forward.10} parent=67 // pred_check
          %p567 = pneg %p278
        $region110: #{mmg_student_forward.10} parent=67 // pred_check_branch
          %569 = sbr.rel (%p567) target = $region112
        $region111: #{mmg_student_forward.10} parent=67 // pred_region
          %570 = dma.done [#allocation18], 1024
        $region112: #{mmg_student_forward.10} parent=67 // pred_fallthru
          _
        // Predicated region
        $region113: #{mmg_student_forward.10} parent=67 // pred_check
          %p571 = pneg %p299
        $region114: #{mmg_student_forward.10} parent=67 // pred_check_branch
          %573 = sbr.rel (%p571) target = $region116
        $region115: #{mmg_student_forward.10} parent=67 // pred_region
          %574 = dma.done [#allocation21], 16
        $region116: #{mmg_student_forward.10} parent=67 // pred_fallthru
          _
        %s575 = sand.u32 %s45, 1
        %s576 = scalar_lea.sflag [#allocation3], %s575
        %s577 = sand.u32 %s45, 1
        %s578 = smul.addr %s577, 8
        %s579 = scalar_lea.vmem [#allocation2], %s578
        %p580 = pneg %p58
        %p581 = pneg %p55
        %s582 = sand.u32 %s37, 1
        %s583 = scalar_lea.sflag [#allocation6], %s582
        %s584 = sand.u32 %s71, 1
        %s585 = smul.addr %s584, 8
        %s586 = scalar_lea.vmem [#allocation5], %s585
        %p587 = pneg %p84
        %p588 = pneg %p81
        %s589 = sand.u32 %s37, 1
        %s590 = scalar_lea.sflag [#allocation6], %s589
        %s591 = sand.u32 %s97, 1
        %s592 = smul.addr %s591, 4
        %s593 = scalar_lea.vmem [#allocation7], %s592
        %p594 = pneg %p110
        %p595 = pneg %p107
        %p596 = pneg %p131
        %p597 = pneg %p128
        %p598 = pneg %p152
        %p599 = pneg %p149
        %p600 = pneg %p173
        %p601 = pneg %p170
        %p602 = pneg %p194
        %p603 = pneg %p191
        %p604 = pneg %p215
        %p605 = pneg %p212
        %p606 = pneg %p236
        %p607 = pneg %p233
        %p608 = pneg %p257
        %p609 = pneg %p254
        %p610 = pneg %p278
        %p611 = pneg %p275
        %p612 = pneg %p299
        %p613 = pneg %p296
        %p614 = pneg %p325
        %p615 = pneg %p322
        %s616 = sand.u32 %s312, 1
        %s617 = scalar_lea.sflag [#allocation4], %s616
        %s618 = sand.u32 %s312, 1
        %s619 = smul.addr %s618, 8
        %s620 = scalar_lea.vmem [#allocation22], %s619
        %v622 = vlaneseq
        %v623 = vand.u32 %v622, 127
        %v624 = vld [vmem:[#allocation8] sm:$0xf]
        %v625 = vld [vmem:[%s516] sm:$0xff]
        %626 = vset.pattern.permute.xlu0 0
        %627 = vperm.xlu0 %626, %v625
        %v628 = vpop.permute.xlu0 %627
        %vm629 = vcmp.eq.s32.totalorder %v628, %v623
        %v630 = vsel %vm629, 1, 0
        %v631 = vcvt.s32.f32 %v630
        %v632 = vpack.c.bf16 %v631, %v631
        %v633 = vld [vmem:[%s525] sm:$0xff]
        %634 = vset.pattern.permute.xlu0 0
        %635 = vperm.xlu0 %634, %v633
        %v636 = vpop.permute.xlu0 %635
        %vm637 = vcmp.eq.s32.totalorder %v636, %v623
        %v638 = vsel %vm637, 1, 0
        %v639 = vcvt.s32.f32 %v638
        %v640 = vpack.c.bf16 %v639, %v639
        %vm641 = vcmask 64512
        %v643 = vsel %vm641, %v632, 0
        %vm645 = vcmask 1043456
        %v647 = vsel %vm645, %v624, 0
        %649 = vmatprep.subr.bf16.mxu0 0
        %650 = vmatpush1.bf16.msra.mxu0 %v647
        %651 = vmatprep.subr.bf16.mxu0 0
        %652 = vmatpush1.bf16.msra.mxu0 0
        %653 = vmatprep.subr.bf16.mxu0 0
        %654 = vmatpush1.bf16.msra.mxu0 0
        %655 = vmatprep.subr.bf16.mxu0 0
        %656 = vmatpush1.bf16.msra.mxu0 0
        %657 = vmatprep.subr.bf16.mxu0 0
        %658 = vmatpush1.bf16.msra.mxu0 0
        %659 = vmatprep.subr.bf16.mxu0 0
        %660 = vmatpush1.bf16.msra.mxu0 0
        %661 = vmatprep.subr.bf16.mxu0 0
        %662 = vmatpush1.bf16.msra.mxu0 0
        %663 = vmatprep.subr.bf16.mxu0 0
        %664 = vmatpush1.bf16.msra.mxu0 0
        %665 = vmatprep.subr.bf16.mxu0 0
        %666 = vmatpush1.bf16.msra.mxu0 0
        %667 = vmatprep.subr.bf16.mxu0 0
        %668 = vmatpush1.bf16.msra.mxu0 0
        %669 = vmatprep.subr.bf16.mxu0 0
        %670 = vmatpush1.bf16.msra.mxu0 0
        %671 = vmatprep.subr.bf16.mxu0 0
        %672 = vmatpush1.bf16.msra.mxu0 0
        %673 = vmatprep.subr.bf16.mxu0 0
        %674 = vmatpush1.bf16.msra.mxu0 0
        %675 = vmatprep.subr.bf16.mxu0 0
        %676 = vmatpush1.bf16.msra.mxu0 0
        %677 = vmatprep.subr.bf16.mxu0 0
        %678 = vmatpush1.bf16.msra.mxu0 0
        %679 = vmatprep.subr.bf16.mxu0 0
        %680 = vmatpush1.bf16.msra.mxu0 0
        %681 = vmatprep.mubr.bf16.mxu0 0
        %682 = vmatmul.mubr.bf16.gmra.mrb[0].mxu0 %v643
        %v683 = vpop.f32.mrb[0].mxu0
        %v684 = vadd.f32 0.0, %v683
        %v685 = vpop.f32.mrb[0].mxu0
        %v686 = vpop.f32.mrb[0].mxu0
        %v687 = vpop.f32.mrb[0].mxu0
        %688 = vdwg.mxu0
        %v689 = vpack.c.bf16 %v684, %v684
        %v691 = vsel %vm641, %v640, 0
        %693 = vmatprep.subr.bf16.mxu0 0
        %694 = vmatpush1.bf16.msra.mxu0 %v647
        %695 = vmatprep.subr.bf16.mxu0 0
        %696 = vmatpush1.bf16.msra.mxu0 0
        %697 = vmatprep.subr.bf16.mxu0 0
        %698 = vmatpush1.bf16.msra.mxu0 0
        %699 = vmatprep.subr.bf16.mxu0 0
        %700 = vmatpush1.bf16.msra.mxu0 0
        %701 = vmatprep.subr.bf16.mxu0 0
        %702 = vmatpush1.bf16.msra.mxu0 0
        %703 = vmatprep.subr.bf16.mxu0 0
        %704 = vmatpush1.bf16.msra.mxu0 0
        %705 = vmatprep.subr.bf16.mxu0 0
        %706 = vmatpush1.bf16.msra.mxu0 0
        %707 = vmatprep.subr.bf16.mxu0 0
        %708 = vmatpush1.bf16.msra.mxu0 0
        %709 = vmatprep.subr.bf16.mxu0 0
        %710 = vmatpush1.bf16.msra.mxu0 0
        %711 = vmatprep.subr.bf16.mxu0 0
        %712 = vmatpush1.bf16.msra.mxu0 0
        %713 = vmatprep.subr.bf16.mxu0 0
        %714 = vmatpush1.bf16.msra.mxu0 0
        %715 = vmatprep.subr.bf16.mxu0 0
        %716 = vmatpush1.bf16.msra.mxu0 0
        %717 = vmatprep.subr.bf16.mxu0 0
        %718 = vmatpush1.bf16.msra.mxu0 0
        %719 = vmatprep.subr.bf16.mxu0 0
        %720 = vmatpush1.bf16.msra.mxu0 0
        %721 = vmatprep.subr.bf16.mxu0 0
        %722 = vmatpush1.bf16.msra.mxu0 0
        %723 = vmatprep.subr.bf16.mxu0 0
        %724 = vmatpush1.bf16.msra.mxu0 0
        %725 = vmatprep.mubr.bf16.mxu0 0
        %726 = vmatmul.mubr.bf16.gmra.mrb[0].mxu0 %v691
        %v727 = vpop.f32.mrb[0].mxu0
        %v728 = vadd.f32 0.0, %v727
        %v729 = vpop.f32.mrb[0].mxu0
        %v730 = vpop.f32.mrb[0].mxu0
        %v731 = vpop.f32.mrb[0].mxu0
        %732 = vdwg.mxu0
        %v733 = vpack.c.bf16 %v728, %v728
        %v734 = vld [vmem:[%s534] sm:$0xf]
        %v736 = vunpack.c.l.b16 %v734
        %v737 = vpack.c.b16 %v736, %v736
        %738 = vrot.lane.b32.xlu0 %v737, 32
        %v739 = vpop.permute.xlu0 %738
        %741 = vrot.lane.b32.xlu0 %v733, 64
        %v742 = vpop.permute.xlu0 %741
        %vm743 = vcmask 261120
        %v746 = vsel %vm743, %v689, %v739
        %vm747 = vcmask 523264
        %v749 = vsel %vm747, %v746, %v742
        %v750 = vld [vmem:[#allocation10] sm:$0xff]
        %v751 = vld [vmem:[#allocation10 + $0x8] sm:$0xf]
        %v752 = vld [vmem:[#allocation10 + $0xc] sm:$0xff]
        %v753 = vld [vmem:[#allocation10 + $0x14] sm:$0xf]
        %v754 = vld [vmem:[#allocation10 + $0x18] sm:$0xff]
        %v755 = vld [vmem:[#allocation10 + $0x20] sm:$0xf]
        %v756 = vld [vmem:[#allocation10 + $0x24] sm:$0xff]
        %v757 = vld [vmem:[#allocation10 + $0x2c] sm:$0xf]
        %v758 = vld [vmem:[#allocation10 + $0x30] sm:$0xff]
        %v759 = vld [vmem:[#allocation10 + $0x38] sm:$0xf]
        %v760 = vld [vmem:[#allocation10 + $0x3c] sm:$0xff]
        %v761 = vld [vmem:[#allocation10 + $0x44] sm:$0xf]
        %v762 = vld [vmem:[#allocation10 + $0x48] sm:$0xff]
        %v763 = vld [vmem:[#allocation10 + $0x50] sm:$0xf]
        %v764 = vld [vmem:[#allocation10 + $0x54] sm:$0xff]
        %v765 = vld [vmem:[#allocation10 + $0x5c] sm:$0xf]
        %v766 = vld [vmem:[#allocation10 + $0x60] sm:$0xff]
        %v767 = vld [vmem:[#allocation10 + $0x68] sm:$0xf]
        %v768 = vld [vmem:[#allocation10 + $0x6c] sm:$0xff]
        %v769 = vld [vmem:[#allocation10 + $0x74] sm:$0xf]
        %v770 = vld [vmem:[#allocation10 + $0x78] sm:$0xff]
        %v771 = vld [vmem:[#allocation10 + $0x80] sm:$0xf]
        %v772 = vld [vmem:[#allocation10 + $0x84] sm:$0xff]
        %v773 = vld [vmem:[#allocation10 + $0x8c] sm:$0xf]
        %v774 = vld [vmem:[#allocation11] sm:$0x7]
        %v776 = vlaneseq
        %v777 = vshrl.u32 %v776, 7
        %v778 = vsub.s32 0, %v777
        %v779 = vrot.slane %v774, %v778
        %v780 = vlaneseq
        %v781 = vshrl.u32 %v780, 7
        %v782 = vsub.s32 1, %v781
        %v783 = vrot.slane %v774, %v782
        %v784 = vlaneseq
        %v785 = vshrl.u32 %v784, 7
        %v786 = vsub.s32 2, %v785
        %v787 = vrot.slane %v774, %v786
        %v815 = vunpack.c.l.b16 %v750
        %v816 = vunpack.c.h.b16 %v750
        %v817 = vunpack.c.l.b16 %v751
        %v818 = vunpack.c.l.b16 %v752
        %v819 = vunpack.c.h.b16 %v752
        %v820 = vunpack.c.l.b16 %v753
        %v821 = vunpack.c.l.b16 %v754
        %v822 = vunpack.c.h.b16 %v754
        %v823 = vunpack.c.l.b16 %v755
        %v824 = vunpack.c.l.b16 %v756
        %v825 = vunpack.c.h.b16 %v756
        %v826 = vunpack.c.l.b16 %v757
        %v827 = vunpack.c.l.b16 %v758
        %v828 = vunpack.c.h.b16 %v758
        %v829 = vunpack.c.l.b16 %v759
        %v830 = vunpack.c.l.b16 %v760
        %v831 = vunpack.c.h.b16 %v760
        %v832 = vunpack.c.l.b16 %v761
        %v833 = vunpack.c.l.b16 %v762
        %v834 = vunpack.c.h.b16 %v762
        %v835 = vunpack.c.l.b16 %v763
        %v836 = vunpack.c.l.b16 %v764
        %v837 = vunpack.c.h.b16 %v764
        %v838 = vunpack.c.l.b16 %v765
        %v839 = vunpack.c.l.b16 %v766
        %v840 = vunpack.c.h.b16 %v766
        %v841 = vunpack.c.l.b16 %v767
        %v842 = vunpack.c.l.b16 %v768
        %v843 = vunpack.c.h.b16 %v768
        %v844 = vunpack.c.l.b16 %v769
        %v845 = vunpack.c.l.b16 %v770
        %v846 = vunpack.c.h.b16 %v770
        %v847 = vunpack.c.l.b16 %v771
        %v848 = vunpack.c.l.b16 %v772
        %v849 = vunpack.c.h.b16 %v772
        %v850 = vunpack.c.l.b16 %v773
        %v851 = vpack.c.b16 %v818, %v815
        %v852 = vpack.c.b16 %v819, %v816
        %v853 = vpack.c.b16 %v820, %v817
        %v854 = vpack.c.b16 %v824, %v821
        %v855 = vpack.c.b16 %v825, %v822
        %v856 = vpack.c.b16 %v826, %v823
        %v857 = vpack.c.b16 %v830, %v827
        %v858 = vpack.c.b16 %v831, %v828
        %v859 = vpack.c.b16 %v832, %v829
        %v860 = vpack.c.b16 %v836, %v833
        %v861 = vpack.c.b16 %v837, %v834
        %v862 = vpack.c.b16 %v838, %v835
        %v863 = vpack.c.b16 %v842, %v839
        %v864 = vpack.c.b16 %v843, %v840
        %v865 = vpack.c.b16 %v844, %v841
        %v866 = vpack.c.b16 %v848, %v845
        %v867 = vpack.c.b16 %v849, %v846
        %v868 = vpack.c.b16 %v850, %v847
        %vm887 = vcmask 785408
        %v888 = vsel %vm887, %v749, 0
        %890 = vmatprep.subr.bf16.mxu0 %v852
        %891 = vmatpush1.bf16.msra.mxu0 %v851
        %892 = vmatprep.subr.bf16.mxu0 %v855
        %893 = vmatpush1.bf16.msra.mxu0 %v854
        %894 = vmatprep.subr.bf16.mxu0 %v858
        %895 = vmatpush1.bf16.msra.mxu0 %v857
        %896 = vmatprep.subr.bf16.mxu0 %v861
        %897 = vmatpush1.bf16.msra.mxu0 %v860
        %898 = vmatprep.subr.bf16.mxu0 %v864
        %899 = vmatpush1.bf16.msra.mxu0 %v863
        %900 = vmatprep.subr.bf16.mxu0 %v867
        %901 = vmatpush1.bf16.msra.mxu0 %v866
        %902 = vmatprep.subr.bf16.mxu0 0
        %903 = vmatpush1.bf16.msra.mxu0 0
        %904 = vmatprep.subr.bf16.mxu0 0
        %905 = vmatpush1.bf16.msra.mxu0 0
        %906 = vmatprep.subr.bf16.mxu0 0
        %907 = vmatpush1.bf16.msra.mxu0 0
        %908 = vmatprep.subr.bf16.mxu0 0
        %909 = vmatpush1.bf16.msra.mxu0 0
        %910 = vmatprep.subr.bf16.mxu0 0
        %911 = vmatpush1.bf16.msra.mxu0 0
        %912 = vmatprep.subr.bf16.mxu0 0
        %913 = vmatpush1.bf16.msra.mxu0 0
        %914 = vmatprep.subr.bf16.mxu0 0
        %915 = vmatpush1.bf16.msra.mxu0 0
        %916 = vmatprep.subr.bf16.mxu0 0
        %917 = vmatpush1.bf16.msra.mxu0 0
        %918 = vmatprep.subr.bf16.mxu0 0
        %919 = vmatpush1.bf16.msra.mxu0 0
        %920 = vmatprep.subr.bf16.mxu0 0
        %921 = vmatpush1.bf16.msra.mxu0 0
        %922 = vmatprep.mubr.bf16.mxu0 0
        %923 = vmatmul.mubr.bf16.gmra.mrb[0].mxu0 %v888
        %v924 = vpop.f32.mrb[0].mxu0
        %v925 = vadd.f32 %v779, %v924
        %v926 = vpop.f32.mrb[0].mxu0
        %v927 = vadd.f32 %v783, %v926
        %v928 = vpop.f32.mrb[0].mxu0
        %v929 = vpop.f32.mrb[0].mxu0
        %930 = vdwg.mxu0
        %931 = vmatprep.subr.bf16.mxu0 0
        %932 = vmatpush1.bf16.msra.mxu0 %v853
        %933 = vmatprep.subr.bf16.mxu0 0
        %934 = vmatpush1.bf16.msra.mxu0 %v856
        %935 = vmatprep.subr.bf16.mxu0 0
        %936 = vmatpush1.bf16.msra.mxu0 %v859
        %937 = vmatprep.subr.bf16.mxu0 0
        %938 = vmatpush1.bf16.msra.mxu0 %v862
        %939 = vmatprep.subr.bf16.mxu0 0
        %940 = vmatpush1.bf16.msra.mxu0 %v865
        %941 = vmatprep.subr.bf16.mxu0 0
        %942 = vmatpush1.bf16.msra.mxu0 %v868
        %943 = vmatprep.subr.bf16.mxu0 0
        %944 = vmatpush1.bf16.msra.mxu0 0
        %945 = vmatprep.subr.bf16.mxu0 0
        %946 = vmatpush1.bf16.msra.mxu0 0
        %947 = vmatprep.subr.bf16.mxu0 0
        %948 = vmatpush1.bf16.msra.mxu0 0
        %949 = vmatprep.subr.bf16.mxu0 0
        %950 = vmatpush1.bf16.msra.mxu0 0
        %951 = vmatprep.subr.bf16.mxu0 0
        %952 = vmatpush1.bf16.msra.mxu0 0
        %953 = vmatprep.subr.bf16.mxu0 0
        %954 = vmatpush1.bf16.msra.mxu0 0
        %955 = vmatprep.subr.bf16.mxu0 0
        %956 = vmatpush1.bf16.msra.mxu0 0
        %957 = vmatprep.subr.bf16.mxu0 0
        %958 = vmatpush1.bf16.msra.mxu0 0
        %959 = vmatprep.subr.bf16.mxu0 0
        %960 = vmatpush1.bf16.msra.mxu0 0
        %961 = vmatprep.subr.bf16.mxu0 0
        %962 = vmatpush1.bf16.msra.mxu0 0
        %963 = vmatprep.mubr.bf16.mxu0 0
        %964 = vmatmul.mubr.bf16.gmra.mrb[0].mxu0 %v888
        %v965 = vpop.f32.mrb[0].mxu0
        %v966 = vadd.f32 %v787, %v965
        %v967 = vpop.f32.mrb[0].mxu0
        %v968 = vpop.f32.mrb[0].mxu0
        %v969 = vpop.f32.mrb[0].mxu0
        %970 = vdwg.mxu0
        %v971 = vmax.f32 %v925, 0.0
        %v972 = vpack.c.bf16 %v971, %v971
        %v973 = vld [vmem:[#allocation13] sm:$0xf]
        %v974 = vld [vmem:[#allocation13 + $0x4] sm:$0xf]
        %v975 = vld [vmem:[#allocation13 + $0x8] sm:$0xf]
        %v976 = vld [vmem:[#allocation13 + $0xc] sm:$0xf]
        %v977 = vld [vmem:[#allocation13 + $0x10] sm:$0xf]
        %v978 = vld [vmem:[#allocation13 + $0x14] sm:$0xf]
        %v979 = vld [vmem:[#allocation13 + $0x18] sm:$0xf]
        %v980 = vld [vmem:[#allocation13 + $0x1c] sm:$0xf]
        %v981 = vld [vmem:[#allocation13 + $0x20] sm:$0xf]
        %v982 = vld [vmem:[#allocation13 + $0x24] sm:$0xf]
        %v983 = vld [vmem:[#allocation13 + $0x28] sm:$0xf]
        %v984 = vld [vmem:[#allocation13 + $0x2c] sm:$0xf]
        %v985 = vld [vmem:[#allocation13 + $0x30] sm:$0xf]
        %v986 = vld [vmem:[#allocation13 + $0x34] sm:$0xf]
        %v987 = vld [vmem:[#allocation13 + $0x38] sm:$0xf]
        %v988 = vld [vmem:[#allocation13 + $0x3c] sm:$0xf]
        %v989 = vld [vmem:[#allocation14] sm:$0x1]
        %v991 = vlaneseq
        %v992 = vshrl.u32 %v991, 7
        %v993 = vsub.s32 0, %v992
        %v994 = vrot.slane %v989, %v993
        %v1012 = vunpack.c.l.b16 %v973
        %v1013 = vunpack.c.l.b16 %v974
        %v1014 = vunpack.c.l.b16 %v975
        %v1015 = vunpack.c.l.b16 %v976
        %v1016 = vunpack.c.l.b16 %v977
        %v1017 = vunpack.c.l.b16 %v978
        %v1018 = vunpack.c.l.b16 %v979
        %v1019 = vunpack.c.l.b16 %v980
        %v1020 = vunpack.c.l.b16 %v981
        %v1021 = vunpack.c.l.b16 %v982
        %v1022 = vunpack.c.l.b16 %v983
        %v1023 = vunpack.c.l.b16 %v984
        %v1024 = vunpack.c.l.b16 %v985
        %v1025 = vunpack.c.l.b16 %v986
        %v1026 = vunpack.c.l.b16 %v987
        %v1027 = vunpack.c.l.b16 %v988
        %v1028 = vpack.c.b16 %v1013, %v1012
        %v1029 = vpack.c.b16 %v1015, %v1014
        %v1030 = vpack.c.b16 %v1017, %v1016
        %v1031 = vpack.c.b16 %v1019, %v1018
        %v1032 = vpack.c.b16 %v1021, %v1020
        %v1033 = vpack.c.b16 %v1023, %v1022
        %v1034 = vpack.c.b16 %v1025, %v1024
        %v1035 = vpack.c.b16 %v1027, %v1026
        %1044 = vmatprep.subr.bf16.mxu0 0
        %1045 = vmatpush1.bf16.msra.mxu0 %v1028
        %1046 = vmatprep.subr.bf16.mxu0 0
        %1047 = vmatpush1.bf16.msra.mxu0 %v1029
        %1048 = vmatprep.subr.bf16.mxu0 0
        %1049 = vmatpush1.bf16.msra.mxu0 %v1030
        %1050 = vmatprep.subr.bf16.mxu0 0
        %1051 = vmatpush1.bf16.msra.mxu0 %v1031
        %1052 = vmatprep.subr.bf16.mxu0 0
        %1053 = vmatpush1.bf16.msra.mxu0 %v1032
        %1054 = vmatprep.subr.bf16.mxu0 0
        %1055 = vmatpush1.bf16.msra.mxu0 %v1033
        %1056 = vmatprep.subr.bf16.mxu0 0
        %1057 = vmatpush1.bf16.msra.mxu0 %v1034
        %1058 = vmatprep.subr.bf16.mxu0 0
        %1059 = vmatpush1.bf16.msra.mxu0 %v1035
        %1060 = vmatprep.subr.bf16.mxu0 0
        %1061 = vmatpush1.bf16.msra.mxu0 0
        %1062 = vmatprep.subr.bf16.mxu0 0
        %1063 = vmatpush1.bf16.msra.mxu0 0
        %1064 = vmatprep.subr.bf16.mxu0 0
        %1065 = vmatpush1.bf16.msra.mxu0 0
        %1066 = vmatprep.subr.bf16.mxu0 0
        %1067 = vmatpush1.bf16.msra.mxu0 0
        %1068 = vmatprep.subr.bf16.mxu0 0
        %1069 = vmatpush1.bf16.msra.mxu0 0
        %1070 = vmatprep.subr.bf16.mxu0 0
        %1071 = vmatpush1.bf16.msra.mxu0 0
        %1072 = vmatprep.subr.bf16.mxu0 0
        %1073 = vmatpush1.bf16.msra.mxu0 0
        %1074 = vmatprep.subr.bf16.mxu0 0
        %1075 = vmatpush1.bf16.msra.mxu0 0
        %1076 = vmatprep.mubr.bf16.mxu0 0
        %1077 = vmatmul.mubr.bf16.gmra.mrb[0].mxu0 %v972
        %v1078 = vpop.f32.mrb[0].mxu0
        %v1079 = vadd.f32 %v994, %v1078
        %v1080 = vpop.f32.mrb[0].mxu0
        %v1081 = vpop.f32.mrb[0].mxu0
        %v1082 = vpop.f32.mrb[0].mxu0
        %1083 = vdwg.mxu0
        %v1084 = vmax.f32 %v1079, 0.0
        %v1085 = vpack.c.bf16 %v927, %v927
        %v1086 = vld [vmem:[#allocation16] sm:$0xf]
        %v1087 = vld [vmem:[#allocation16 + $0x4] sm:$0xf]
        %v1088 = vld [vmem:[#allocation16 + $0x8] sm:$0xf]
        %v1089 = vld [vmem:[#allocation16 + $0xc] sm:$0xf]
        %v1090 = vld [vmem:[#allocation16 + $0x10] sm:$0xf]
        %v1091 = vld [vmem:[#allocation16 + $0x14] sm:$0xf]
        %v1092 = vld [vmem:[#allocation16 + $0x18] sm:$0xf]
        %v1093 = vld [vmem:[#allocation16 + $0x1c] sm:$0xf]
        %v1094 = vld [vmem:[#allocation16 + $0x20] sm:$0xf]
        %v1095 = vld [vmem:[#allocation16 + $0x24] sm:$0xf]
        %v1096 = vld [vmem:[#allocation16 + $0x28] sm:$0xf]
        %v1097 = vld [vmem:[#allocation16 + $0x2c] sm:$0xf]
        %v1098 = vld [vmem:[#allocation16 + $0x30] sm:$0xf]
        %v1099 = vld [vmem:[#allocation16 + $0x34] sm:$0xf]
        %v1100 = vld [vmem:[#allocation16 + $0x38] sm:$0xf]
        %v1101 = vld [vmem:[#allocation16 + $0x3c] sm:$0xf]
        %v1102 = vld [vmem:[#allocation17] sm:$0x1]
        %v1104 = vlaneseq
        %v1105 = vshrl.u32 %v1104, 7
        %v1106 = vsub.s32 0, %v1105
        %v1107 = vrot.slane %v1102, %v1106
        %v1125 = vunpack.c.l.b16 %v1086
        %v1126 = vunpack.c.l.b16 %v1087
        %v1127 = vunpack.c.l.b16 %v1088
        %v1128 = vunpack.c.l.b16 %v1089
        %v1129 = vunpack.c.l.b16 %v1090
        %v1130 = vunpack.c.l.b16 %v1091
        %v1131 = vunpack.c.l.b16 %v1092
        %v1132 = vunpack.c.l.b16 %v1093
        %v1133 = vunpack.c.l.b16 %v1094
        %v1134 = vunpack.c.l.b16 %v1095
        %v1135 = vunpack.c.l.b16 %v1096
        %v1136 = vunpack.c.l.b16 %v1097
        %v1137 = vunpack.c.l.b16 %v1098
        %v1138 = vunpack.c.l.b16 %v1099
        %v1139 = vunpack.c.l.b16 %v1100
        %v1140 = vunpack.c.l.b16 %v1101
        %v1141 = vpack.c.b16 %v1126, %v1125
        %v1142 = vpack.c.b16 %v1128, %v1127
        %v1143 = vpack.c.b16 %v1130, %v1129
        %v1144 = vpack.c.b16 %v1132, %v1131
        %v1145 = vpack.c.b16 %v1134, %v1133
        %v1146 = vpack.c.b16 %v1136, %v1135
        %v1147 = vpack.c.b16 %v1138, %v1137
        %v1148 = vpack.c.b16 %v1140, %v1139
        %1157 = vmatprep.subr.bf16.mxu0 0
        %1158 = vmatpush1.bf16.msra.mxu0 %v1141
        %1159 = vmatprep.subr.bf16.mxu0 0
        %1160 = vmatpush1.bf16.msra.mxu0 %v1142
        %1161 = vmatprep.subr.bf16.mxu0 0
        %1162 = vmatpush1.bf16.msra.mxu0 %v1143
        %1163 = vmatprep.subr.bf16.mxu0 0
        %1164 = vmatpush1.bf16.msra.mxu0 %v1144
        %1165 = vmatprep.subr.bf16.mxu0 0
        %1166 = vmatpush1.bf16.msra.mxu0 %v1145
        %1167 = vmatprep.subr.bf16.mxu0 0
        %1168 = vmatpush1.bf16.msra.mxu0 %v1146
        %1169 = vmatprep.subr.bf16.mxu0 0
        %1170 = vmatpush1.bf16.msra.mxu0 %v1147
        %1171 = vmatprep.subr.bf16.mxu0 0
        %1172 = vmatpush1.bf16.msra.mxu0 %v1148
        %1173 = vmatprep.subr.bf16.mxu0 0
        %1174 = vmatpush1.bf16.msra.mxu0 0
        %1175 = vmatprep.subr.bf16.mxu0 0
        %1176 = vmatpush1.bf16.msra.mxu0 0
        %1177 = vmatprep.subr.bf16.mxu0 0
        %1178 = vmatpush1.bf16.msra.mxu0 0
        %1179 = vmatprep.subr.bf16.mxu0 0
        %1180 = vmatpush1.bf16.msra.mxu0 0
        %1181 = vmatprep.subr.bf16.mxu0 0
        %1182 = vmatpush1.bf16.msra.mxu0 0
        %1183 = vmatprep.subr.bf16.mxu0 0
        %1184 = vmatpush1.bf16.msra.mxu0 0
        %1185 = vmatprep.subr.bf16.mxu0 0
        %1186 = vmatpush1.bf16.msra.mxu0 0
        %1187 = vmatprep.subr.bf16.mxu0 0
        %1188 = vmatpush1.bf16.msra.mxu0 0
        %1189 = vmatprep.mubr.bf16.mxu0 0
        %1190 = vmatmul.mubr.bf16.gmra.mrb[0].mxu0 %v1085
        %v1191 = vpop.f32.mrb[0].mxu0
        %v1192 = vadd.f32 %v1107, %v1191
        %v1193 = vpop.f32.mrb[0].mxu0
        %v1194 = vpop.f32.mrb[0].mxu0
        %v1195 = vpop.f32.mrb[0].mxu0
        %1196 = vdwg.mxu0
        %v1197 = vmax.f32 %v1192, 0.0
        %v1198 = vpack.c.bf16 %v1197, %v1197
        %v1199 = vld [vmem:[#allocation19] sm:$0xf]
        %v1200 = vld [vmem:[#allocation19 + $0x4] sm:$0xf]
        %v1201 = vld [vmem:[#allocation19 + $0x8] sm:$0xf]
        %v1202 = vld [vmem:[#allocation19 + $0xc] sm:$0xf]
        %v1203 = vld [vmem:[#allocation19 + $0x10] sm:$0xf]
        %v1204 = vld [vmem:[#allocation19 + $0x14] sm:$0xf]
        %v1205 = vld [vmem:[#allocation19 + $0x18] sm:$0xf]
        %v1206 = vld [vmem:[#allocation19 + $0x1c] sm:$0xf]
        %v1207 = vld [vmem:[#allocation19 + $0x20] sm:$0xf]
        %v1208 = vld [vmem:[#allocation19 + $0x24] sm:$0xf]
        %v1209 = vld [vmem:[#allocation19 + $0x28] sm:$0xf]
        %v1210 = vld [vmem:[#allocation19 + $0x2c] sm:$0xf]
        %v1211 = vld [vmem:[#allocation19 + $0x30] sm:$0xf]
        %v1212 = vld [vmem:[#allocation19 + $0x34] sm:$0xf]
        %v1213 = vld [vmem:[#allocation19 + $0x38] sm:$0xf]
        %v1214 = vld [vmem:[#allocation19 + $0x3c] sm:$0xf]
        %v1215 = vld [vmem:[#allocation20] sm:$0x1]
        %v1217 = vlaneseq
        %v1218 = vshrl.u32 %v1217, 7
        %v1219 = vsub.s32 0, %v1218
        %v1220 = vrot.slane %v1215, %v1219
        %v1238 = vunpack.c.l.b16 %v1199
        %v1239 = vunpack.c.l.b16 %v1200
        %v1240 = vunpack.c.l.b16 %v1201
        %v1241 = vunpack.c.l.b16 %v1202
        %v1242 = vunpack.c.l.b16 %v1203
        %v1243 = vunpack.c.l.b16 %v1204
        %v1244 = vunpack.c.l.b16 %v1205
        %v1245 = vunpack.c.l.b16 %v1206
        %v1246 = vunpack.c.l.b16 %v1207
        %v1247 = vunpack.c.l.b16 %v1208
        %v1248 = vunpack.c.l.b16 %v1209
        %v1249 = vunpack.c.l.b16 %v1210
        %v1250 = vunpack.c.l.b16 %v1211
        %v1251 = vunpack.c.l.b16 %v1212
        %v1252 = vunpack.c.l.b16 %v1213
        %v1253 = vunpack.c.l.b16 %v1214
        %v1254 = vpack.c.b16 %v1239, %v1238
        %v1255 = vpack.c.b16 %v1241, %v1240
        %v1256 = vpack.c.b16 %v1243, %v1242
        %v1257 = vpack.c.b16 %v1245, %v1244
        %v1258 = vpack.c.b16 %v1247, %v1246
        %v1259 = vpack.c.b16 %v1249, %v1248
        %v1260 = vpack.c.b16 %v1251, %v1250
        %v1261 = vpack.c.b16 %v1253, %v1252
        %1270 = vmatprep.subr.bf16.mxu0 0
        %1271 = vmatpush1.bf16.msra.mxu0 %v1254
        %1272 = vmatprep.subr.bf16.mxu0 0
        %1273 = vmatpush1.bf16.msra.mxu0 %v1255
        %1274 = vmatprep.subr.bf16.mxu0 0
        %1275 = vmatpush1.bf16.msra.mxu0 %v1256
        %1276 = vmatprep.subr.bf16.mxu0 0
        %1277 = vmatpush1.bf16.msra.mxu0 %v1257
        %1278 = vmatprep.subr.bf16.mxu0 0
        %1279 = vmatpush1.bf16.msra.mxu0 %v1258
        %1280 = vmatprep.subr.bf16.mxu0 0
        %1281 = vmatpush1.bf16.msra.mxu0 %v1259
        %1282 = vmatprep.subr.bf16.mxu0 0
        %1283 = vmatpush1.bf16.msra.mxu0 %v1260
        %1284 = vmatprep.subr.bf16.mxu0 0
        %1285 = vmatpush1.bf16.msra.mxu0 %v1261
        %1286 = vmatprep.subr.bf16.mxu0 0
        %1287 = vmatpush1.bf16.msra.mxu0 0
        %1288 = vmatprep.subr.bf16.mxu0 0
        %1289 = vmatpush1.bf16.msra.mxu0 0
        %1290 = vmatprep.subr.bf16.mxu0 0
        %1291 = vmatpush1.bf16.msra.mxu0 0
        %1292 = vmatprep.subr.bf16.mxu0 0
        %1293 = vmatpush1.bf16.msra.mxu0 0
        %1294 = vmatprep.subr.bf16.mxu0 0
        %1295 = vmatpush1.bf16.msra.mxu0 0
        %1296 = vmatprep.subr.bf16.mxu0 0
        %1297 = vmatpush1.bf16.msra.mxu0 0
        %1298 = vmatprep.subr.bf16.mxu0 0
        %1299 = vmatpush1.bf16.msra.mxu0 0
        %1300 = vmatprep.subr.bf16.mxu0 0
        %1301 = vmatpush1.bf16.msra.mxu0 0
        %1302 = vmatprep.mubr.bf16.mxu0 0
        %1303 = vmatmul.mubr.bf16.gmra.mrb[0].mxu0 %v1198
        %v1304 = vpop.f32.mrb[0].mxu0
        %v1305 = vadd.f32 %v1220, %v1304
        %v1306 = vpop.f32.mrb[0].mxu0
        %v1307 = vpop.f32.mrb[0].mxu0
        %v1308 = vpop.f32.mrb[0].mxu0
        %1309 = vdwg.mxu0
        %v1310 = vsel %vm743, %v1305, -inf
        %1311 = vmax.xlane.f32.xlu0 %v1310
        %v1312 = vpop.xlane.xlu0 %1311
        %v1313 = vsub.f32 %v1305, %v1312
        %v1314 = vmul.f32 %v1313, 1.442695
        %v1315 = vpow.pop %v1314
        %v1316 = vsel %vm743, %v1315, 0.0
        %1317 = vadd.xlane.f32.xlu0 %v1316
        %v1318 = vpop.xlane.xlu0 %1317
        %v1319 = vrcp.pop %v1318
        %v1320 = vmul.f32 %v1315, %v1319
        %v1321 = vmul.f32 %v1320, %v966
        %1323 = vrot.lane.b32.xlu0 %v1084, 32
        %v1324 = vpop.permute.xlu0 %1323
        %v1326 = vsel %vm743, %v1321, %v1324
        %1327 = vst.msk [vmem:[%s620] sm:$0xff] %vm747, %v1326
        %s1328 = sand.u32 %s312, 1
        %s1329 = scalar_lea.sflag [#allocation4], %s1328
        %s1330 = sand.u32 %s312, 1
        %s1331 = smul.addr %s1330, 8
        %s1332 = scalar_lea.vmem [#allocation22], %s1331
        // Predicated region
        $region117: #{mmg_student_forward.10} parent=67 // pred_check
          %p1333 = pneg %p322
        $region118: #{mmg_student_forward.10} parent=67 // pred_check_branch
          %1335 = sbr.rel (%p1333) target = $region120
        $region119: #{mmg_student_forward.10} parent=67 // pred_region
          %s1337 = ssub.s32 128, 128
          %1338 = vsyncadd %s1329, %s1337
          %s1339 = smul.addr %s37, 128
          %s1340 = scalar_lea.hbm %s12, %s1339
          %s1342 = sshll.u32 %s1332, 4
          %s1343 = int_to_ptr.vmem [resolvable:$true] %s1342
          %1345 = dma.vmem_to_hbm [thread:$0]  %s1343, 128, %s1340, %s1329
        $region120: #{mmg_student_forward.10} parent=67 // pred_fallthru
          _
      $region68: #{mmg_student_forward.10} parent=5 // pred_fallthru
        _
      %p1346 = scmp.le.s32.totalorder 2, %s32
      // Predicated region
      $region121: #{mmg_student_forward.10} parent=5 // pred_check
        %p1347 = pneg %p1346
      $region122: #{mmg_student_forward.10} parent=5 // pred_check_branch
        %1349 = sbr.rel (%p1347) target = $region124
      $region123: #{mmg_student_forward.10} parent=5 // pred_region
        %s1350 = ssub.s32 %s32, 2
        // Predicated region
        $region125: #{mmg_student_forward.10} parent=123 // pred_check
          %p1351 = pneg %p328
        $region126: #{mmg_student_forward.10} parent=123 // pred_check_branch
          %1353 = sbr.rel (%p1351) target = $region128
        $region127: #{mmg_student_forward.10} parent=123 // pred_region
          %s1354 = sand.u32 %s313, 1
          %s1355 = scalar_lea.sflag [#allocation4], %s1354
          %s1356 = sand.u32 %s313, 1
          %s1357 = smul.addr %s1356, 8
          %s1358 = scalar_lea.vmem [#allocation22], %s1357
          %1359 = dma.done %s1355, 128
        $region128: #{mmg_student_forward.10} parent=123 // pred_fallthru
          _
      $region124: #{mmg_student_forward.10} parent=5 // pred_fallthru
        _
    $region6: #{mmg_student_forward.10} parent=1 // loop_footer
      %s36 = sadd.s32 1, %s32
    $region7: #{mmg_student_forward.10} parent=1 // loop_footer_branch
      %31 = sbr.rel target = $region3
    $region8: #{mmg_student_forward.10} parent=1 // loop_exit
      _
    %1360 = vsyncpa [#allocation3], 1
    %s1361 = scalar_lea.sflag [#allocation3], 1
    %1362 = vsyncpa %s1361, 1
    %1363 = vsyncpa [#allocation6], 1
    %s1364 = scalar_lea.sflag [#allocation6], 1
    %1365 = vsyncpa %s1364, 1
    %1366 = vsyncpa [#allocation9], 1
    %1367 = vsyncpa [#allocation12], 1
    %1368 = vsyncpa [#allocation15], 1
    %1369 = vsyncpa [#allocation18], 1
    %1370 = vsyncpa [#allocation21], 1
    %1371 = vsyncpa [#allocation4], 1
    %s1372 = scalar_lea.sflag [#allocation4], 1
    %1373 = vsyncpa %s1372, 1

// kernel: mmg_student_forward.11
$region0: #{mmg_student_forward.11}
  #allocation0 [shape = 'u32[]', space=smem, size = 0x4, offset = 0x4, fixed_abs, tag = 'smem constant byte address 0x4 - core index']
  #allocation1 [shape = 'u32[144,128]{1,0:T(1,128)}', space=vmem, size = 0x12000, scoped, tag = 'internal scratch']
  %s0 = inlined_call_operand.hbm [shape: bf16[8,32], index: 0, kind: input, shape index: {}]
  %s1 = inlined_call_operand.hbm [shape: bf16[8,32], index: 1, kind: input, shape index: {}]
  %s2 = inlined_call_operand.hbm [shape: bf16[64,64], index: 2, kind: input, shape index: {}]
  %s3 = inlined_call_operand.hbm [shape: f32[1,64], index: 3, kind: input, shape index: {}]
  %s4 = inlined_call_operand.hbm [shape: bf16[64,32], index: 4, kind: input, shape index: {}]
  %s5 = inlined_call_operand.hbm [shape: f32[1,32], index: 5, kind: input, shape index: {}]
  %s6 = inlined_call_operand.hbm [shape: f32[8,32], index: 6, kind: output, shape index: {}]
  %s7 = sld [smem:[#allocation0]]
  $region58: #{mmg_student_forward.11} parent=0
    _
  %s9 = ssub.s32 1, %s7
  %s10 = scalar_select 0, %s9, %s7
  $region1: #{mmg_student_forward.11} parent=0
    #allocation2 [shape = 'u8[2048]{0}', space=vmem, size = 0x800, scoped, tag = 'input window, operand 0, single buffered']
    #allocation3 [shape = 's32[1]{0}', space=sflag, size = 0x4, scoped, tag = 'scoped memory for mmg_student_forward.11']
    #allocation4 [shape = 's32[1]{0}', space=sflag, size = 0x4, scoped, tag = 'scoped memory for mmg_student_forward.11']
    #allocation5 [shape = 'u8[2048]{0}', space=vmem, size = 0x800, scoped, tag = 'input window, operand 1, single buffered']
    #allocation6 [shape = 's32[1]{0}', space=sflag, size = 0x4, scoped, tag = 'scoped memory for mmg_student_forward.11']
    #allocation7 [shape = 'u8[16384]{0}', space=vmem, size = 0x4000, scoped, tag = 'input window, operand 2, single buffered']
    #allocation8 [shape = 'u8[512]{0}', space=vmem, size = 0x400, scoped, tag = 'input window, operand 3, single buffered']
    #allocation9 [shape = 's32[1]{0}', space=sflag, size = 0x4, scoped, tag = 'scoped memory for mmg_student_forward.11']
    #allocation10 [shape = 'u8[16384]{0}', space=vmem, size = 0x4000, scoped, tag = 'input window, operand 4, single buffered']
    #allocation11 [shape = 'u8[512]{0}', space=vmem, size = 0x400, scoped, tag = 'input window, operand 5, single buffered']
    #allocation12 [shape = 's32[1]{0}', space=sflag, size = 0x4, scoped, tag = 'scoped memory for mmg_student_forward.11']
    #allocation13 [shape = 'u8[4096]{0}', space=vmem, size = 0x1000, scoped, tag = 'output window, operand 0, single buffered']
    %11 = vsyncpa [#allocation3], 0
    %12 = vsyncpa [#allocation6], 0
    %13 = vsyncpa [#allocation9], 0
    %14 = vsyncpa [#allocation12], 0
    %15 = vsyncpa [#allocation4], 0
    // Predicated region
    $region2: #{mmg_student_forward.11} parent=1 // pred_check
      _
    $region3: #{mmg_student_forward.11} parent=1 // pred_check_branch
      %17 = sbr.rel (0) target = $region5
    $region4: #{mmg_student_forward.11} parent=1 // pred_region
      %s19 = ssub.s32 64, 64
      %20 = vsyncadd [#allocation3], %s19
      %s22 = sshll.u32 [#allocation2], 4
      %s23 = int_to_ptr.vmem [resolvable:$true] %s22
      %25 = dma.hbm_to_vmem [thread:$0]  %s0, 64, %s23, [#allocation3]
    $region5: #{mmg_student_forward.11} parent=1 // pred_fallthru
      _
    // Predicated region
    $region6: #{mmg_student_forward.11} parent=1 // pred_check
      _
    $region7: #{mmg_student_forward.11} parent=1 // pred_check_branch
      %27 = sbr.rel (0) target = $region9
    $region8: #{mmg_student_forward.11} parent=1 // pred_region
      %s29 = ssub.s32 64, 64
      %30 = vsyncadd [#allocation6], %s29
      %s32 = sshll.u32 [#allocation5], 4
      %s33 = int_to_ptr.vmem [resolvable:$true] %s32
      %35 = dma.hbm_to_vmem [thread:$0]  %s1, 64, %s33, [#allocation6]
    $region9: #{mmg_student_forward.11} parent=1 // pred_fallthru
      _
    // Predicated region
    $region10: #{mmg_student_forward.11} parent=1 // pred_check
      _
    $region11: #{mmg_student_forward.11} parent=1 // pred_check_branch
      %37 = sbr.rel (0) target = $region13
    $region12: #{mmg_student_forward.11} parent=1 // pred_region
      %s39 = ssub.s32 512, 512
      %40 = vsyncadd [#allocation6], %s39
      %s41 = sshll.u32 [#allocation7], 4
      %s42 = int_to_ptr.vmem [resolvable:$true] %s41
      %47 = dma.hbm_to_vmem [thread:$0]  %s2, 512, %s42, [#allocation6], 64, 64, 4
    $region13: #{mmg_student_forward.11} parent=1 // pred_fallthru
      _
    // Predicated region
    $region14: #{mmg_student_forward.11} parent=1 // pred_check
      _
    $region15: #{mmg_student_forward.11} parent=1 // pred_check_branch
      %49 = sbr.rel (0) target = $region17
    $region16: #{mmg_student_forward.11} parent=1 // pred_region
      %s51 = ssub.s32 16, 16
      %52 = vsyncadd [#allocation9], %s51
      %s54 = sshll.u32 [#allocation8], 4
      %s55 = int_to_ptr.vmem [resolvable:$true] %s54
      %57 = dma.hbm_to_vmem [thread:$0]  %s3, 16, %s55, [#allocation9]
    $region17: #{mmg_student_forward.11} parent=1 // pred_fallthru
      _
    // Predicated region
    $region18: #{mmg_student_forward.11} parent=1 // pred_check
      _
    $region19: #{mmg_student_forward.11} parent=1 // pred_check_branch
      %59 = sbr.rel (0) target = $region21
    $region20: #{mmg_student_forward.11} parent=1 // pred_region
      %s61 = ssub.s32 512, 512
      %62 = vsyncadd [#allocation9], %s61
      %s63 = sshll.u32 [#allocation10], 4
      %s64 = int_to_ptr.vmem [resolvable:$true] %s63
      %69 = dma.hbm_to_vmem [thread:$0]  %s4, 512, %s64, [#allocation9], 64, 64, 4
    $region21: #{mmg_student_forward.11} parent=1 // pred_fallthru
      _
    // Predicated region
    $region22: #{mmg_student_forward.11} parent=1 // pred_check
      _
    $region23: #{mmg_student_forward.11} parent=1 // pred_check_branch
      %71 = sbr.rel (0) target = $region25
    $region24: #{mmg_student_forward.11} parent=1 // pred_region
      %s73 = ssub.s32 16, 16
      %74 = vsyncadd [#allocation12], %s73
      %s76 = sshll.u32 [#allocation11], 4
      %s77 = int_to_ptr.vmem [resolvable:$true] %s76
      %79 = dma.hbm_to_vmem [thread:$0]  %s5, 16, %s77, [#allocation12]
    $region25: #{mmg_student_forward.11} parent=1 // pred_fallthru
      _
    // Predicated region
    $region26: #{mmg_student_forward.11} parent=1 // pred_check
      _
    $region27: #{mmg_student_forward.11} parent=1 // pred_check_branch
      %81 = sbr.rel (0) target = $region29
    $region28: #{mmg_student_forward.11} parent=1 // pred_region
      %82 = dma.done [#allocation3], 64
    $region29: #{mmg_student_forward.11} parent=1 // pred_fallthru
      _
    // Predicated region
    $region30: #{mmg_student_forward.11} parent=1 // pred_check
      _
    $region31: #{mmg_student_forward.11} parent=1 // pred_check_branch
      %84 = sbr.rel (0) target = $region33
    $region32: #{mmg_student_forward.11} parent=1 // pred_region
      %85 = dma.done [#allocation6], 64
    $region33: #{mmg_student_forward.11} parent=1 // pred_fallthru
      _
    // Predicated region
    $region34: #{mmg_student_forward.11} parent=1 // pred_check
      _
    $region35: #{mmg_student_forward.11} parent=1 // pred_check_branch
      %87 = sbr.rel (0) target = $region37
    $region36: #{mmg_student_forward.11} parent=1 // pred_region
      %88 = dma.done [#allocation6], 512
    $region37: #{mmg_student_forward.11} parent=1 // pred_fallthru
      _
    // Predicated region
    $region38: #{mmg_student_forward.11} parent=1 // pred_check
      _
    $region39: #{mmg_student_forward.11} parent=1 // pred_check_branch
      %90 = sbr.rel (0) target = $region41
    $region40: #{mmg_student_forward.11} parent=1 // pred_region
      %91 = dma.done [#allocation9], 16
    $region41: #{mmg_student_forward.11} parent=1 // pred_fallthru
      _
    // Predicated region
    $region42: #{mmg_student_forward.11} parent=1 // pred_check
      _
    $region43: #{mmg_student_forward.11} parent=1 // pred_check_branch
      %93 = sbr.rel (0) target = $region45
    $region44: #{mmg_student_forward.11} parent=1 // pred_region
      %94 = dma.done [#allocation9], 512
    $region45: #{mmg_student_forward.11} parent=1 // pred_fallthru
      _
    // Predicated region
    $region46: #{mmg_student_forward.11} parent=1 // pred_check
      _
    $region47: #{mmg_student_forward.11} parent=1 // pred_check_branch
      %96 = sbr.rel (0) target = $region49
    $region48: #{mmg_student_forward.11} parent=1 // pred_region
      %97 = dma.done [#allocation12], 16
    $region49: #{mmg_student_forward.11} parent=1 // pred_fallthru
      _
    %v99 = vld [vmem:[#allocation2] sm:$0xf]
    %v100 = vld [vmem:[#allocation5] sm:$0xf]
    %v102 = vunpack.c.l.b16 %v100
    %v103 = vpack.c.b16 %v102, %v102
    %104 = vrot.lane.b32.xlu0 %v103, 32
    %v105 = vpop.permute.xlu0 %104
    %vm106 = vcmask 261120
    %v109 = vsel %vm106, %v99, %v105
    %v110 = vld [vmem:[#allocation7] sm:$0xf]
    %v111 = vld [vmem:[#allocation7 + $0x4] sm:$0xf]
    %v112 = vld [vmem:[#allocation7 + $0x8] sm:$0xf]
    %v113 = vld [vmem:[#allocation7 + $0xc] sm:$0xf]
    %v114 = vld [vmem:[#allocation7 + $0x10] sm:$0xf]
    %v115 = vld [vmem:[#allocation7 + $0x14] sm:$0xf]
    %v116 = vld [vmem:[#allocation7 + $0x18] sm:$0xf]
    %v117 = vld [vmem:[#allocation7 + $0x1c] sm:$0xf]
    %v118 = vld [vmem:[#allocation8] sm:$0x1]
    %v120 = vlaneseq
    %v121 = vshrl.u32 %v120, 7
    %v122 = vsub.s32 0, %v121
    %v123 = vrot.slane %v118, %v122
    %v133 = vunpack.c.l.b16 %v110
    %v134 = vunpack.c.l.b16 %v111
    %v135 = vunpack.c.l.b16 %v112
    %v136 = vunpack.c.l.b16 %v113
    %v137 = vunpack.c.l.b16 %v114
    %v138 = vunpack.c.l.b16 %v115
    %v139 = vunpack.c.l.b16 %v116
    %v140 = vunpack.c.l.b16 %v117
    %v141 = vpack.c.b16 %v134, %v133
    %v142 = vpack.c.b16 %v136, %v135
    %v143 = vpack.c.b16 %v138, %v137
    %v144 = vpack.c.b16 %v140, %v139
    %vm149 = vcmask 523264
    %v150 = vsel %vm149, %v109, 0
    %152 = vmatprep.subr.bf16.mxu0 0
    %153 = vmatpush1.bf16.msra.mxu0 %v141
    %154 = vmatprep.subr.bf16.mxu0 0
    %155 = vmatpush1.bf16.msra.mxu0 %v142
    %156 = vmatprep.subr.bf16.mxu0 0
    %157 = vmatpush1.bf16.msra.mxu0 %v143
    %158 = vmatprep.subr.bf16.mxu0 0
    %159 = vmatpush1.bf16.msra.mxu0 %v144
    %160 = vmatprep.subr.bf16.mxu0 0
    %161 = vmatpush1.bf16.msra.mxu0 0
    %162 = vmatprep.subr.bf16.mxu0 0
    %163 = vmatpush1.bf16.msra.mxu0 0
    %164 = vmatprep.subr.bf16.mxu0 0
    %165 = vmatpush1.bf16.msra.mxu0 0
    %166 = vmatprep.subr.bf16.mxu0 0
    %167 = vmatpush1.bf16.msra.mxu0 0
    %168 = vmatprep.subr.bf16.mxu0 0
    %169 = vmatpush1.bf16.msra.mxu0 0
    %170 = vmatprep.subr.bf16.mxu0 0
    %171 = vmatpush1.bf16.msra.mxu0 0
    %172 = vmatprep.subr.bf16.mxu0 0
    %173 = vmatpush1.bf16.msra.mxu0 0
    %174 = vmatprep.subr.bf16.mxu0 0
    %175 = vmatpush1.bf16.msra.mxu0 0
    %176 = vmatprep.subr.bf16.mxu0 0
    %177 = vmatpush1.bf16.msra.mxu0 0
    %178 = vmatprep.subr.bf16.mxu0 0
    %179 = vmatpush1.bf16.msra.mxu0 0
    %180 = vmatprep.subr.bf16.mxu0 0
    %181 = vmatpush1.bf16.msra.mxu0 0
    %182 = vmatprep.subr.bf16.mxu0 0
    %183 = vmatpush1.bf16.msra.mxu0 0
    %184 = vmatprep.mubr.bf16.mxu0 0
    %185 = vmatmul.mubr.bf16.gmra.mrb[0].mxu0 %v150
    %v186 = vpop.f32.mrb[0].mxu0
    %v187 = vadd.f32 %v123, %v186
    %v188 = vpop.f32.mrb[0].mxu0
    %v189 = vpop.f32.mrb[0].mxu0
    %v190 = vpop.f32.mrb[0].mxu0
    %191 = vdwg.mxu0
    %v192 = vmax.f32 %v187, 0.0
    %v193 = vpack.c.bf16 %v192, %v192
    %v194 = vld [vmem:[#allocation10] sm:$0xf]
    %v195 = vld [vmem:[#allocation10 + $0x4] sm:$0xf]
    %v196 = vld [vmem:[#allocation10 + $0x8] sm:$0xf]
    %v197 = vld [vmem:[#allocation10 + $0xc] sm:$0xf]
    %v198 = vld [vmem:[#allocation10 + $0x10] sm:$0xf]
    %v199 = vld [vmem:[#allocation10 + $0x14] sm:$0xf]
    %v200 = vld [vmem:[#allocation10 + $0x18] sm:$0xf]
    %v201 = vld [vmem:[#allocation10 + $0x1c] sm:$0xf]
    %v202 = vld [vmem:[#allocation11] sm:$0x1]
    %v204 = vlaneseq
    %v205 = vshrl.u32 %v204, 7
    %v206 = vsub.s32 0, %v205
    %v207 = vrot.slane %v202, %v206
    %v217 = vunpack.c.l.b16 %v194
    %v218 = vunpack.c.l.b16 %v195
    %v219 = vunpack.c.l.b16 %v196
    %v220 = vunpack.c.l.b16 %v197
    %v221 = vunpack.c.l.b16 %v198
    %v222 = vunpack.c.l.b16 %v199
    %v223 = vunpack.c.l.b16 %v200
    %v224 = vunpack.c.l.b16 %v201
    %v225 = vpack.c.b16 %v218, %v217
    %v226 = vpack.c.b16 %v220, %v219
    %v227 = vpack.c.b16 %v222, %v221
    %v228 = vpack.c.b16 %v224, %v223
    %v234 = vsel %vm149, %v193, 0
    %236 = vmatprep.subr.bf16.mxu0 0
    %237 = vmatpush1.bf16.msra.mxu0 %v225
    %238 = vmatprep.subr.bf16.mxu0 0
    %239 = vmatpush1.bf16.msra.mxu0 %v226
    %240 = vmatprep.subr.bf16.mxu0 0
    %241 = vmatpush1.bf16.msra.mxu0 %v227
    %242 = vmatprep.subr.bf16.mxu0 0
    %243 = vmatpush1.bf16.msra.mxu0 %v228
    %244 = vmatprep.subr.bf16.mxu0 0
    %245 = vmatpush1.bf16.msra.mxu0 0
    %246 = vmatprep.subr.bf16.mxu0 0
    %247 = vmatpush1.bf16.msra.mxu0 0
    %248 = vmatprep.subr.bf16.mxu0 0
    %249 = vmatpush1.bf16.msra.mxu0 0
    %250 = vmatprep.subr.bf16.mxu0 0
    %251 = vmatpush1.bf16.msra.mxu0 0
    %252 = vmatprep.subr.bf16.mxu0 0
    %253 = vmatpush1.bf16.msra.mxu0 0
    %254 = vmatprep.subr.bf16.mxu0 0
    %255 = vmatpush1.bf16.msra.mxu0 0
    %256 = vmatprep.subr.bf16.mxu0 0
    %257 = vmatpush1.bf16.msra.mxu0 0
    %258 = vmatprep.subr.bf16.mxu0 0
    %259 = vmatpush1.bf16.msra.mxu0 0
    %260 = vmatprep.subr.bf16.mxu0 0
    %261 = vmatpush1.bf16.msra.mxu0 0
    %262 = vmatprep.subr.bf16.mxu0 0
    %263 = vmatpush1.bf16.msra.mxu0 0
    %264 = vmatprep.subr.bf16.mxu0 0
    %265 = vmatpush1.bf16.msra.mxu0 0
    %266 = vmatprep.subr.bf16.mxu0 0
    %267 = vmatpush1.bf16.msra.mxu0 0
    %268 = vmatprep.mubr.bf16.mxu0 0
    %269 = vmatmul.mubr.bf16.gmra.mrb[0].mxu0 %v234
    %v270 = vpop.f32.mrb[0].mxu0
    %v271 = vadd.f32 %v207, %v270
    %v272 = vpop.f32.mrb[0].mxu0
    %v273 = vpop.f32.mrb[0].mxu0
    %v274 = vpop.f32.mrb[0].mxu0
    %275 = vdwg.mxu0
    %v276 = vmax.f32 %v271, 0.0
    %277 = vst.msk [vmem:[#allocation13] sm:$0xff] %vm106, %v276
    // Predicated region
    $region50: #{mmg_student_forward.11} parent=1 // pred_check
      _
    $region51: #{mmg_student_forward.11} parent=1 // pred_check_branch
      %279 = sbr.rel (0) target = $region53
    $region52: #{mmg_student_forward.11} parent=1 // pred_region
      %s281 = ssub.s32 128, 128
      %282 = vsyncadd [#allocation4], %s281
      %s284 = sshll.u32 [#allocation13], 4
      %s285 = int_to_ptr.vmem [resolvable:$true] %s284
      %287 = dma.vmem_to_hbm [thread:$0]  %s285, 128, %s6, [#allocation4]
    $region53: #{mmg_student_forward.11} parent=1 // pred_fallthru
      _
    // Predicated region
    $region54: #{mmg_student_forward.11} parent=1 // pred_check
      _
    $region55: #{mmg_student_forward.11} parent=1 // pred_check_branch
      %289 = sbr.rel (0) target = $region57
    $region56: #{mmg_student_forward.11} parent=1 // pred_region
      %290 = dma.done [#allocation4], 128
    $region57: #{mmg_student_forward.11} parent=1 // pred_fallthru
      _
    %291 = vsyncpa [#allocation3], 1
    %292 = vsyncpa [#allocation6], 1
    %293 = vsyncpa [#allocation9], 1
    %294 = vsyncpa [#allocation12], 1
    %295 = vsyncpa [#allocation4], 1

</llo_original>
